<compile_context>
chip_gen: v7x
topology: tpu7x:2x2x1
jax: 0.10.0
libtpu: 0.0.40
codegen_flags: <defaults>
</compile_context>

<pallas_src>
import functools
import math

import jax
import jax.numpy as jnp
from jax import lax
from jax.experimental import pallas as pl
from jax.experimental.pallas import tpu as pltpu


def encoder_block_kernel(
    xq_ref, xs_ref,
    wq_ref, bq_ref, wk_ref, bk_ref, wv_ref, bv_ref, wo_ref, bo_ref,
    g1_ref, be1_ref,
    w1_ref, b1_ref, w2_ref, b2_ref,
    g2_ref, be2_ref,
    out_ref,
    k_cache, v_cache, attn_scratch,
    *, n_heads: int, ff_chunk: int, eps: float = 1e-5,
):
    f32 = jnp.float32
    bf16 = jnp.bfloat16

    xq = xq_ref[...].astype(f32)            # (tq, E) query tile (f32 residual)
    tq, E = xq.shape
    dh = E // n_heads
    scale = 1.0 / math.sqrt(dh)

    # ---- K/V projections for the whole sequence: ONCE per batch element ----
    # The query-tile grid axis is "arbitrary", so this cache persists across
    # all query tiles of the current batch element.
    @pl.when(pl.program_id(1) == 0)
    def _():
        xs_b = xs_ref[...]                  # (S, E) bf16 K/V source
        k = jnp.dot(xs_b, wk_ref[...], preferred_element_type=f32) + bk_ref[...]
        v = jnp.dot(xs_b, wv_ref[...], preferred_element_type=f32) + bv_ref[...]
        k_cache[...] = k.astype(bf16)
        v_cache[...] = v.astype(bf16)

    # ---- Q projection for this tile (fold 1/sqrt(dh) into Q once) ----
    q = jnp.dot(xq.astype(bf16), wq_ref[...], preferred_element_type=f32) + bq_ref[...]
    q_b = (q * scale).astype(bf16)

    # ---- per-head attention; PV results written into a bf16 VMEM slab ----
    # NOTE: dh < 128/256 under-utilises the v6e/v7x MXU for these two matmuls;
    # accepted — the QKV / output-projection / FF GEMMs carry the bulk FLOPs.
    # TODO(synk): optional padding-mask path (mask=None path implemented only).
    for h in range(n_heads):                # static unroll over (few) heads
        lo, hi = h * dh, (h + 1) * dh
        qh = q_b[:, lo:hi]                  # (tq, dh)
        kh = k_cache[:, lo:hi]              # (S, dh) bf16
        vh = v_cache[:, lo:hi]              # (S, dh) bf16
        # scores: contract last dims directly (no kh.T / XLU transpose)
        s = lax.dot_general(qh, kh, (((1,), (1,)), ((), ())),
                            preferred_element_type=f32)          # (tq, S)
        s = s - jnp.max(s, axis=-1, keepdims=True)
        p = jnp.exp(s)
        p = p * pl.reciprocal(jnp.sum(p, axis=-1, keepdims=True), approx=True)
        pv = jnp.dot(p.astype(bf16), vh, preferred_element_type=f32)
        attn_scratch[:, lo:hi] = pv.astype(bf16)

    attn = jnp.dot(attn_scratch[...], wo_ref[...],
                   preferred_element_type=f32) + bo_ref[...]

    # ---- residual + LayerNorm 1 (fused one-pass mean / mean-of-squares) ----
    y = attn + xq
    mu = jnp.mean(y, axis=-1, keepdims=True)
    var = jnp.maximum(jnp.mean(y * y, axis=-1, keepdims=True) - mu * mu, 0.0)
    y = (y - mu) * lax.rsqrt(var + eps) * g1_ref[...] + be1_ref[...]

    # ---- feed-forward: Linear(E,4E) -> ReLU -> Linear(4E,E), H-chunked ----
    y_b = y.astype(bf16)
    Hff = w1_ref.shape[1]
    ff = jnp.zeros((tq, E), f32)
    for c in range(0, Hff, ff_chunk):       # static unroll; chunk keeps the
        h1 = jnp.dot(y_b, w1_ref[:, c:c + ff_chunk],      # (tq, 4E) f32 temp
                     preferred_element_type=f32) + b1_ref[:, c:c + ff_chunk]
        h1 = jnp.maximum(h1, 0.0)           # small for big E on v7x
        ff = ff + jnp.dot(h1.astype(bf16), w2_ref[c:c + ff_chunk, :],
                          preferred_element_type=f32)
    ff = ff + b2_ref[...]

    # ---- residual + LayerNorm 2 ----
    z = ff + y
    mu2 = jnp.mean(z, axis=-1, keepdims=True)
    var2 = jnp.maximum(jnp.mean(z * z, axis=-1, keepdims=True) - mu2 * mu2, 0.0)
    z = (z - mu2) * lax.rsqrt(var2 + eps) * g2_ref[...] + be2_ref[...]

    out_ref[...] = z.astype(out_ref.dtype)


def _vmem_capacity_bytes():
    try:
        info = pltpu.get_tpu_info()
        return int(getattr(info, "vmem_capacity_bytes", 64 * 1024 * 1024))
    except Exception:
        return 64 * 1024 * 1024             # conservative (v7x per-TC)


def _pick_query_tile(S, vmem_cap):
    if S <= 1024:
        return S
    # v7x (64 MiB/TC) gets a smaller tile cap than v5e/v6e (128 MiB VMEM).
    cap = 256 if vmem_cap <= 64 * 1024 * 1024 else 512
    for t in (cap, cap // 2, 128, 64, 32, 16, 8):
        if S % t == 0:
            return t
    # TODO(synk): pad S to a multiple of 128 (masked tail) for odd seq lengths.
    return S


def _pick_ff_chunk(H):
    if H <= 2048:
        return H
    for c in (2048, 1024, 512, 256, 128):
        if H % c == 0:
            return c
    return H


def encoder_block(x, params, *, n_heads):
    B, S, E = x.shape
    H = params["w1"].shape[1]               # ff hidden size (4*E)
    vmem_cap = _vmem_capacity_bytes()
    tq = _pick_query_tile(S, vmem_cap)
    num_q_tiles = S // tq
    ff_chunk = _pick_ff_chunk(H)

    bf16 = jnp.bfloat16
    # Cast matmul weights to bf16 once (halves weight DMA / VMEM, feeds the MXU
    # at bf16 peak).  Biases / LayerNorm affine params stay f32.  The K/V
    # source sequence is also shipped as bf16 (halves the largest per-batch
    # DMA); the f32 query tile is kept for an exact-f32 residual path.
    wq, wk, wv, wo = (params[n].astype(bf16) for n in ("wq", "wk", "wv", "wo"))
    w1, w2 = params["w1"].astype(bf16), params["w2"].astype(bf16)
    x_bf16 = x.astype(bf16)

    # VMEM budget: weights (single-buffered), pipelined blocks, caches, temps.
    weight_bytes = (4 * E * E + 2 * E * H) * 2                  # bf16 matmul weights
    small_bytes = (8 * E + 2 * H) * 4                           # biases + LN params
    pipe_bytes = 2 * (2 * tq * E * 4) + 2 * (S * E * 2)         # xq/out f32, xs bf16 (2-deep)
    cache_bytes = 2 * S * E * 2 + tq * E * 2                    # K/V cache + PV slab (bf16)
    temp_bytes = (2 * tq * S + 2 * tq * ff_chunk + 12 * tq * E) * 4
    est = weight_bytes + small_bytes + pipe_bytes + cache_bytes + temp_bytes
    vmem_limit = int(min(int(vmem_cap * 0.96),
                         max(int(est * 1.25), 32 * 1024 * 1024)))

    # Advisory cost estimate so XLA schedules surrounding ops around the call.
    flops = int(2 * B * S * (4 * E * E + 2 * E * H) + 4 * B * S * S * E)
    transcendentals = int(B * S * S + 4 * B * S)
    bytes_accessed = int(weight_bytes + small_bytes + B * S * E * (4 + 2 + 4))
    cost = pl.CostEstimate(flops=flops, transcendentals=transcendentals,
                           bytes_accessed=bytes_accessed)

    kernel = functools.partial(encoder_block_kernel,
                               n_heads=n_heads, ff_chunk=ff_chunk)

    def build(single_buffer_weights):
        if single_buffer_weights:
            # Constant block index -> the second pipeline buffer is pure waste.
            const = lambda shp: pl.BlockSpec(shp, lambda b, i: (0, 0),
                                             pipeline_mode=pl.Buffered(1))
        else:
            const = lambda shp: pl.BlockSpec(shp, lambda b, i: (0, 0))
        weight_specs = [
            const((E, E)), const((1, E)),   # wq, bq
            const((E, E)), const((1, E)),   # wk, bk
            const((E, E)), const((1, E)),   # wv, bv
            const((E, E)), const((1, E)),   # wo, bo
            const((1, E)), const((1, E)),   # ln1 gamma, beta
            const((E, H)), const((1, H)),   # ff w1, b1
            const((H, E)), const((1, E)),   # ff w2, b2
            const((1, E)), const((1, E)),   # ln2 gamma, beta
        ]
        return pl.pallas_call(
            kernel,
            out_shape=jax.ShapeDtypeStruct((B, S, E), x.dtype),
            grid_spec=pltpu.PrefetchScalarGridSpec(
                num_scalar_prefetch=0,
                grid=(B, num_q_tiles),
                in_specs=[
                    pl.BlockSpec((None, tq, E), lambda b, i: (b, i, 0)),  # f32 query tile
                    pl.BlockSpec((None, S, E), lambda b, i: (b, 0, 0)),   # bf16 full seq
                ] + weight_specs,
                out_specs=pl.BlockSpec((None, tq, E), lambda b, i: (b, i, 0)),
                scratch_shapes=[
                    pltpu.VMEM((S, E), bf16),    # K projection cache (per batch)
                    pltpu.VMEM((S, E), bf16),    # V projection cache (per batch)
                    pltpu.VMEM((tq, E), bf16),   # concatenated per-head PV slab
                ],
            ),
            compiler_params=pltpu.CompilerParams(
                # query-tile axis must stay "arbitrary" so the K/V cache
                # written at i == 0 persists across the remaining tiles.
                dimension_semantics=("parallel", "arbitrary"),
                vmem_limit_bytes=vmem_limit,
            ),
            cost_estimate=cost,
        )

    operands = (
        x, x_bf16,
        wq, params["bq"], wk, params["bk"],
        wv, params["bv"], wo, params["bo"],
        params["g1"], params["be1"],
        w1, params["b1"], w2, params["b2"],
        params["g2"], params["be2"],
    )
    try:
        return build(single_buffer_weights=True)(*operands)
    except Exception:
        # TODO(synk): pl.Buffered(1) not accepted by this JAX/Mosaic version;
        # fall back to default double-buffering of the constant weight blocks.
        return build(single_buffer_weights=False)(*operands)


def init_params(key, E, n_heads):
    H = 4 * E
    keys = jax.random.split(key, 12)
    s = 1.0 / math.sqrt(E)
    sh = 1.0 / math.sqrt(H)
    p = {
        "wq": jax.random.uniform(keys[0], (E, E), jnp.float32, -s, s),
        "bq": jax.random.uniform(keys[1], (1, E), jnp.float32, -s, s),
        "wk": jax.random.uniform(keys[2], (E, E), jnp.float32, -s, s),
        "bk": jax.random.uniform(keys[3], (1, E), jnp.float32, -s, s),
        "wv": jax.random.uniform(keys[4], (E, E), jnp.float32, -s, s),
        "bv": jax.random.uniform(keys[5], (1, E), jnp.float32, -s, s),
        "wo": jax.random.uniform(keys[6], (E, E), jnp.float32, -s, s),
        "bo": jax.random.uniform(keys[7], (1, E), jnp.float32, -s, s),
        "g1": jnp.ones((1, E), jnp.float32),
        "be1": jnp.zeros((1, E), jnp.float32),
        "w1": jax.random.uniform(keys[8], (E, H), jnp.float32, -s, s),
        "b1": jax.random.uniform(keys[9], (1, H), jnp.float32, -s, s),
        "w2": jax.random.uniform(keys[10], (H, E), jnp.float32, -sh, sh),
        "b2": jax.random.uniform(keys[11], (1, E), jnp.float32, -sh, sh),
        "g2": jnp.ones((1, E), jnp.float32),
        "be2": jnp.zeros((1, E), jnp.float32),
    }
    return p


if __name__ == "__main__":
    B, S, E, n_heads = 2, 8, 32, 4
    key = jax.random.PRNGKey(0)
    kx, kp = jax.random.split(key)
    x = jax.random.normal(kx, (B, S, E), jnp.float32)
    params = init_params(kp, E, n_heads)

    out = encoder_block(x, params, n_heads=n_heads)
    out = jax.block_until_ready(out)
    assert out.shape == (B, S, E)
    assert bool(jnp.all(jnp.isfinite(out)))
    print("KERNEL_OK")
</pallas_src>

<mosaic_0001>
module attributes {stable_mosaic.version = 11 : i64} {
  func.func @encoder_block_kernel(%arg0: i32, %arg1: i32, %arg2: memref<1x8x32xf32, #tpu.memory_space<vmem>>, %arg3: memref<1x8x32xbf16, #tpu.memory_space<vmem>>, %arg4: memref<32x32xbf16, #tpu.memory_space<vmem>>, %arg5: memref<1x32xf32, #tpu.memory_space<vmem>>, %arg6: memref<32x32xbf16, #tpu.memory_space<vmem>>, %arg7: memref<1x32xf32, #tpu.memory_space<vmem>>, %arg8: memref<32x32xbf16, #tpu.memory_space<vmem>>, %arg9: memref<1x32xf32, #tpu.memory_space<vmem>>, %arg10: memref<32x32xbf16, #tpu.memory_space<vmem>>, %arg11: memref<1x32xf32, #tpu.memory_space<vmem>>, %arg12: memref<1x32xf32, #tpu.memory_space<vmem>>, %arg13: memref<1x32xf32, #tpu.memory_space<vmem>>, %arg14: memref<32x128xbf16, #tpu.memory_space<vmem>>, %arg15: memref<1x128xf32, #tpu.memory_space<vmem>>, %arg16: memref<128x32xbf16, #tpu.memory_space<vmem>>, %arg17: memref<1x32xf32, #tpu.memory_space<vmem>>, %arg18: memref<1x32xf32, #tpu.memory_space<vmem>>, %arg19: memref<1x32xf32, #tpu.memory_space<vmem>>, %arg20: memref<1x8x32xf32, #tpu.memory_space<vmem>>, %arg21: memref<8x32xbf16, #tpu.memory_space<vmem>>, %arg22: memref<8x32xbf16, #tpu.memory_space<vmem>>, %arg23: memref<8x32xbf16, #tpu.memory_space<vmem>>) attributes {dimension_semantics = [#tpu.dimension_semantics<parallel>, #tpu.dimension_semantics<arbitrary>], iteration_bounds = array<i64: 2, 1>, scalar_prefetch = 0 : i64, scratch_operands = 3 : i64, tpu.core_type = #tpu.core_type<tc>, window_params = [{transform_indices = @transform_0, window_bounds = array<i64: 1, 8, 32>}, {transform_indices = @transform_1, window_bounds = array<i64: 1, 8, 32>}, {pipeline_mode = #tpu.pipeline_mode<synchronous>, transform_indices = @transform_2, window_bounds = array<i64: 32, 32>}, {pipeline_mode = #tpu.pipeline_mode<synchronous>, transform_indices = @transform_3, window_bounds = array<i64: 1, 32>}, {pipeline_mode = #tpu.pipeline_mode<synchronous>, transform_indices = @transform_4, window_bounds = array<i64: 32, 32>}, {pipeline_mode = #tpu.pipeline_mode<synchronous>, transform_indices = @transform_5, window_bounds = array<i64: 1, 32>}, {pipeline_mode = #tpu.pipeline_mode<synchronous>, transform_indices = @transform_6, window_bounds = array<i64: 32, 32>}, {pipeline_mode = #tpu.pipeline_mode<synchronous>, transform_indices = @transform_7, window_bounds = array<i64: 1, 32>}, {pipeline_mode = #tpu.pipeline_mode<synchronous>, transform_indices = @transform_8, window_bounds = array<i64: 32, 32>}, {pipeline_mode = #tpu.pipeline_mode<synchronous>, transform_indices = @transform_9, window_bounds = array<i64: 1, 32>}, {pipeline_mode = #tpu.pipeline_mode<synchronous>, transform_indices = @transform_10, window_bounds = array<i64: 1, 32>}, {pipeline_mode = #tpu.pipeline_mode<synchronous>, transform_indices = @transform_11, window_bounds = array<i64: 1, 32>}, {pipeline_mode = #tpu.pipeline_mode<synchronous>, transform_indices = @transform_12, window_bounds = array<i64: 32, 128>}, {pipeline_mode = #tpu.pipeline_mode<synchronous>, transform_indices = @transform_13, window_bounds = array<i64: 1, 128>}, {pipeline_mode = #tpu.pipeline_mode<synchronous>, transform_indices = @transform_14, window_bounds = array<i64: 128, 32>}, {pipeline_mode = #tpu.pipeline_mode<synchronous>, transform_indices = @transform_15, window_bounds = array<i64: 1, 32>}, {pipeline_mode = #tpu.pipeline_mode<synchronous>, transform_indices = @transform_16, window_bounds = array<i64: 1, 32>}, {pipeline_mode = #tpu.pipeline_mode<synchronous>, transform_indices = @transform_17, window_bounds = array<i64: 1, 32>}, {transform_indices = @transform_18, window_bounds = array<i64: 1, 8, 32>}]} {
    %c0 = arith.constant 0 : index
    %c0_0 = arith.constant 0 : index
    %c0_1 = arith.constant 0 : index
    %0 = vector.load %arg2[%c0, %c0_0, %c0_1] : memref<1x8x32xf32, #tpu.memory_space<vmem>>, vector<1x8x32xf32>
    %1 = vector.shape_cast %0 : vector<1x8x32xf32> to vector<8x32xf32>
    %c0_i32 = arith.constant 0 : i32
    %2 = arith.cmpi eq, %arg1, %c0_i32 : i32
    %3 = arith.extui %2 : i1 to i32
    %c0_i32_2 = arith.constant 0 : i32
    %4 = arith.cmpi ne, %3, %c0_i32_2 : i32
    scf.if %4 {
      %c0_87 = arith.constant 0 : index
      %c0_88 = arith.constant 0 : index
      %c0_89 = arith.constant 0 : index
      %165 = vector.load %arg3[%c0_87, %c0_88, %c0_89] : memref<1x8x32xbf16, #tpu.memory_space<vmem>>, vector<1x8x32xbf16>
      %166 = vector.shape_cast %165 : vector<1x8x32xbf16> to vector<8x32xbf16>
      %c0_90 = arith.constant 0 : index
      %c0_91 = arith.constant 0 : index
      %167 = vector.load %arg6[%c0_90, %c0_91] : memref<32x32xbf16, #tpu.memory_space<vmem>>, vector<32x32xbf16>
      %cst_92 = arith.constant dense<0.000000e+00> : vector<8x32xf32>
      %168 = tpu.matmul %166, %167, %cst_92 {dimension_numbers = #tpu.dot_dimension_numbers<[1], [0], [0], [1], [0, 0, 1, 1], [], []>} : vector<8x32xbf16>, vector<32x32xbf16>, vector<8x32xf32> -> vector<8x32xf32>
      %c0_93 = arith.constant 0 : index
      %c0_94 = arith.constant 0 : index
      %169 = vector.load %arg7[%c0_93, %c0_94] : memref<1x32xf32, #tpu.memory_space<vmem>>, vector<1x32xf32>
      %170 = vector.broadcast %169 : vector<1x32xf32> to vector<8x32xf32>
      %171 = arith.addf %168, %170 : vector<8x32xf32>
      %c0_95 = arith.constant 0 : index
      %c0_96 = arith.constant 0 : index
      %172 = vector.load %arg8[%c0_95, %c0_96] : memref<32x32xbf16, #tpu.memory_space<vmem>>, vector<32x32xbf16>
      %cst_97 = arith.constant dense<0.000000e+00> : vector<8x32xf32>
      %173 = tpu.matmul %166, %172, %cst_97 {dimension_numbers = #tpu.dot_dimension_numbers<[1], [0], [0], [1], [0, 0, 1, 1], [], []>} : vector<8x32xbf16>, vector<32x32xbf16>, vector<8x32xf32> -> vector<8x32xf32>
      %c0_98 = arith.constant 0 : index
      %c0_99 = arith.constant 0 : index
      %174 = vector.load %arg9[%c0_98, %c0_99] : memref<1x32xf32, #tpu.memory_space<vmem>>, vector<1x32xf32>
      %175 = vector.broadcast %174 : vector<1x32xf32> to vector<8x32xf32>
      %176 = arith.addf %173, %175 : vector<8x32xf32>
      %177 = arith.truncf %171 : vector<8x32xf32> to vector<8x32xbf16>
      %c0_100 = arith.constant 0 : index
      %c0_101 = arith.constant 0 : index
      %178 = vector.load %arg21[%c0_100, %c0_101] : memref<8x32xbf16, #tpu.memory_space<vmem>>, vector<8x32xbf16>
      tpu.vector_store %arg21[%c0_100, %c0_101], %177 {strides = array<i32>} : memref<8x32xbf16, #tpu.memory_space<vmem>>, vector<8x32xbf16>,
      %179 = arith.truncf %176 : vector<8x32xf32> to vector<8x32xbf16>
      %c0_102 = arith.constant 0 : index
      %c0_103 = arith.constant 0 : index
      %180 = vector.load %arg22[%c0_102, %c0_103] : memref<8x32xbf16, #tpu.memory_space<vmem>>, vector<8x32xbf16>
      tpu.vector_store %arg22[%c0_102, %c0_103], %179 {strides = array<i32>} : memref<8x32xbf16, #tpu.memory_space<vmem>>, vector<8x32xbf16>,
    } else {
    }
    %5 = arith.truncf %1 : vector<8x32xf32> to vector<8x32xbf16>
    %c0_3 = arith.constant 0 : index
    %c0_4 = arith.constant 0 : index
    %6 = vector.load %arg4[%c0_3, %c0_4] : memref<32x32xbf16, #tpu.memory_space<vmem>>, vector<32x32xbf16>
    %cst = arith.constant dense<0.000000e+00> : vector<8x32xf32>
    %7 = tpu.matmul %5, %6, %cst {dimension_numbers = #tpu.dot_dimension_numbers<[1], [0], [0], [1], [0, 0, 1, 1], [], []>} : vector<8x32xbf16>, vector<32x32xbf16>, vector<8x32xf32> -> vector<8x32xf32>
    %c0_5 = arith.constant 0 : index
    %c0_6 = arith.constant 0 : index
    %8 = vector.load %arg5[%c0_5, %c0_6] : memref<1x32xf32, #tpu.memory_space<vmem>>, vector<1x32xf32>
    %9 = vector.broadcast %8 : vector<1x32xf32> to vector<8x32xf32>
    %10 = arith.addf %7, %9 : vector<8x32xf32>
    %cst_7 = arith.constant 0.353553385 : f32
    %11 = vector.broadcast %cst_7 : f32 to vector<8x32xf32>
    %12 = arith.mulf %10, %11 : vector<8x32xf32>
    %13 = arith.truncf %12 : vector<8x32xf32> to vector<8x32xbf16>
    %14 = vector.extract_strided_slice %13 {offsets = [0, 0], sizes = [8, 8], strides = [1, 1]} : vector<8x32xbf16> to vector<8x8xbf16>
    %c0_8 = arith.constant 0 : index
    %c0_9 = arith.constant 0 : index
    %15 = vector.load %arg21[%c0_8, %c0_9] : memref<8x32xbf16, #tpu.memory_space<vmem>>, vector<8x8xbf16>
    %c0_10 = arith.constant 0 : index
    %c0_11 = arith.constant 0 : index
    %16 = vector.load %arg22[%c0_10, %c0_11] : memref<8x32xbf16, #tpu.memory_space<vmem>>, vector<8x8xbf16>
    %cst_12 = arith.constant dense<0.000000e+00> : vector<8x8xf32>
    %17 = tpu.matmul %14, %15, %cst_12 {dimension_numbers = #tpu.dot_dimension_numbers<[1], [1], [0], [0], [0, 0, 1, 0], [], []>} : vector<8x8xbf16>, vector<8x8xbf16>, vector<8x8xf32> -> vector<8x8xf32>
    %cst_13 = arith.constant dense<0xFF800000> : vector<8xf32>
    %18 = vector.multi_reduction <maximumf>, %17, %cst_13 [1] : vector<8x8xf32> to vector<8xf32>
    %19 = vector.shape_cast %18 : vector<8xf32> to vector<8x1xf32>
    %20 = vector.broadcast %19 : vector<8x1xf32> to vector<8x8xf32>
    %21 = arith.subf %17, %20 : vector<8x8xf32>
    %22 = math.exp %21 : vector<8x8xf32>
    %cst_14 = arith.constant dense<0.000000e+00> : vector<8xf32>
    %23 = vector.multi_reduction <add>, %22, %cst_14 [1] : vector<8x8xf32> to vector<8xf32>
    %24 = vector.shape_cast %23 : vector<8xf32> to vector<8x1xf32>
    %25 = tpu.reciprocal %24 {approx = true} : vector<8x1xf32> -> vector<8x1xf32>
    %26 = vector.broadcast %25 : vector<8x1xf32> to vector<8x8xf32>
    %27 = arith.mulf %22, %26 : vector<8x8xf32>
    %28 = arith.truncf %27 : vector<8x8xf32> to vector<8x8xbf16>
    %cst_15 = arith.constant dense<0.000000e+00> : vector<8x8xf32>
    %29 = tpu.matmul %28, %16, %cst_15 {dimension_numbers = #tpu.dot_dimension_numbers<[1], [0], [0], [1], [0, 0, 1, 1], [], []>} : vector<8x8xbf16>, vector<8x8xbf16>, vector<8x8xf32> -> vector<8x8xf32>
    %30 = arith.truncf %29 : vector<8x8xf32> to vector<8x8xbf16>
    %c0_16 = arith.constant 0 : index
    %c0_17 = arith.constant 0 : index
    %31 = vector.load %arg23[%c0_16, %c0_17] : memref<8x32xbf16, #tpu.memory_space<vmem>>, vector<8x8xbf16>
    tpu.vector_store %arg23[%c0_16, %c0_17], %30 {strides = array<i32>} : memref<8x32xbf16, #tpu.memory_space<vmem>>, vector<8x8xbf16>,
    %32 = vector.extract_strided_slice %13 {offsets = [0, 8], sizes = [8, 8], strides = [1, 1]} : vector<8x32xbf16> to vector<8x8xbf16>
    %c0_18 = arith.constant 0 : index
    %c8 = arith.constant 8 : index
    %33 = vector.load %arg21[%c0_18, %c8] : memref<8x32xbf16, #tpu.memory_space<vmem>>, vector<8x8xbf16>
    %c0_19 = arith.constant 0 : index
    %c8_20 = arith.constant 8 : index
    %34 = vector.load %arg22[%c0_19, %c8_20] : memref<8x32xbf16, #tpu.memory_space<vmem>>, vector<8x8xbf16>
    %cst_21 = arith.constant dense<0.000000e+00> : vector<8x8xf32>
    %35 = tpu.matmul %32, %33, %cst_21 {dimension_numbers = #tpu.dot_dimension_numbers<[1], [1], [0], [0], [0, 0, 1, 0], [], []>} : vector<8x8xbf16>, vector<8x8xbf16>, vector<8x8xf32> -> vector<8x8xf32>
    %cst_22 = arith.constant dense<0xFF800000> : vector<8xf32>
    %36 = vector.multi_reduction <maximumf>, %35, %cst_22 [1] : vector<8x8xf32> to vector<8xf32>
    %37 = vector.shape_cast %36 : vector<8xf32> to vector<8x1xf32>
    %38 = vector.broadcast %37 : vector<8x1xf32> to vector<8x8xf32>
    %39 = arith.subf %35, %38 : vector<8x8xf32>
    %40 = math.exp %39 : vector<8x8xf32>
    %cst_23 = arith.constant dense<0.000000e+00> : vector<8xf32>
    %41 = vector.multi_reduction <add>, %40, %cst_23 [1] : vector<8x8xf32> to vector<8xf32>
    %42 = vector.shape_cast %41 : vector<8xf32> to vector<8x1xf32>
    %43 = tpu.reciprocal %42 {approx = true} : vector<8x1xf32> -> vector<8x1xf32>
    %44 = vector.broadcast %43 : vector<8x1xf32> to vector<8x8xf32>
    %45 = arith.mulf %40, %44 : vector<8x8xf32>
    %46 = arith.truncf %45 : vector<8x8xf32> to vector<8x8xbf16>
    %cst_24 = arith.constant dense<0.000000e+00> : vector<8x8xf32>
    %47 = tpu.matmul %46, %34, %cst_24 {dimension_numbers = #tpu.dot_dimension_numbers<[1], [0], [0], [1], [0, 0, 1, 1], [], []>} : vector<8x8xbf16>, vector<8x8xbf16>, vector<8x8xf32> -> vector<8x8xf32>
    %48 = arith.truncf %47 : vector<8x8xf32> to vector<8x8xbf16>
    %c0_25 = arith.constant 0 : index
    %c8_26 = arith.constant 8 : index
    %49 = vector.load %arg23[%c0_25, %c8_26] : memref<8x32xbf16, #tpu.memory_space<vmem>>, vector<8x8xbf16>
    tpu.vector_store %arg23[%c0_25, %c8_26], %48 {strides = array<i32>} : memref<8x32xbf16, #tpu.memory_space<vmem>>, vector<8x8xbf16>,
    %50 = vector.extract_strided_slice %13 {offsets = [0, 16], sizes = [8, 8], strides = [1, 1]} : vector<8x32xbf16> to vector<8x8xbf16>
    %c0_27 = arith.constant 0 : index
    %c16 = arith.constant 16 : index
    %51 = vector.load %arg21[%c0_27, %c16] : memref<8x32xbf16, #tpu.memory_space<vmem>>, vector<8x8xbf16>
    %c0_28 = arith.constant 0 : index
    %c16_29 = arith.constant 16 : index
    %52 = vector.load %arg22[%c0_28, %c16_29] : memref<8x32xbf16, #tpu.memory_space<vmem>>, vector<8x8xbf16>
    %cst_30 = arith.constant dense<0.000000e+00> : vector<8x8xf32>
    %53 = tpu.matmul %50, %51, %cst_30 {dimension_numbers = #tpu.dot_dimension_numbers<[1], [1], [0], [0], [0, 0, 1, 0], [], []>} : vector<8x8xbf16>, vector<8x8xbf16>, vector<8x8xf32> -> vector<8x8xf32>
    %cst_31 = arith.constant dense<0xFF800000> : vector<8xf32>
    %54 = vector.multi_reduction <maximumf>, %53, %cst_31 [1] : vector<8x8xf32> to vector<8xf32>
    %55 = vector.shape_cast %54 : vector<8xf32> to vector<8x1xf32>
    %56 = vector.broadcast %55 : vector<8x1xf32> to vector<8x8xf32>
    %57 = arith.subf %53, %56 : vector<8x8xf32>
    %58 = math.exp %57 : vector<8x8xf32>
    %cst_32 = arith.constant dense<0.000000e+00> : vector<8xf32>
    %59 = vector.multi_reduction <add>, %58, %cst_32 [1] : vector<8x8xf32> to vector<8xf32>
    %60 = vector.shape_cast %59 : vector<8xf32> to vector<8x1xf32>
    %61 = tpu.reciprocal %60 {approx = true} : vector<8x1xf32> -> vector<8x1xf32>
    %62 = vector.broadcast %61 : vector<8x1xf32> to vector<8x8xf32>
    %63 = arith.mulf %58, %62 : vector<8x8xf32>
    %64 = arith.truncf %63 : vector<8x8xf32> to vector<8x8xbf16>
    %cst_33 = arith.constant dense<0.000000e+00> : vector<8x8xf32>
    %65 = tpu.matmul %64, %52, %cst_33 {dimension_numbers = #tpu.dot_dimension_numbers<[1], [0], [0], [1], [0, 0, 1, 1], [], []>} : vector<8x8xbf16>, vector<8x8xbf16>, vector<8x8xf32> -> vector<8x8xf32>
    %66 = arith.truncf %65 : vector<8x8xf32> to vector<8x8xbf16>
    %c0_34 = arith.constant 0 : index
    %c16_35 = arith.constant 16 : index
    %67 = vector.load %arg23[%c0_34, %c16_35] : memref<8x32xbf16, #tpu.memory_space<vmem>>, vector<8x8xbf16>
    tpu.vector_store %arg23[%c0_34, %c16_35], %66 {strides = array<i32>} : memref<8x32xbf16, #tpu.memory_space<vmem>>, vector<8x8xbf16>,
    %68 = vector.extract_strided_slice %13 {offsets = [0, 24], sizes = [8, 8], strides = [1, 1]} : vector<8x32xbf16> to vector<8x8xbf16>
    %c0_36 = arith.constant 0 : index
    %c24 = arith.constant 24 : index
    %69 = vector.load %arg21[%c0_36, %c24] : memref<8x32xbf16, #tpu.memory_space<vmem>>, vector<8x8xbf16>
    %c0_37 = arith.constant 0 : index
    %c24_38 = arith.constant 24 : index
    %70 = vector.load %arg22[%c0_37, %c24_38] : memref<8x32xbf16, #tpu.memory_space<vmem>>, vector<8x8xbf16>
    %cst_39 = arith.constant dense<0.000000e+00> : vector<8x8xf32>
    %71 = tpu.matmul %68, %69, %cst_39 {dimension_numbers = #tpu.dot_dimension_numbers<[1], [1], [0], [0], [0, 0, 1, 0], [], []>} : vector<8x8xbf16>, vector<8x8xbf16>, vector<8x8xf32> -> vector<8x8xf32>
    %cst_40 = arith.constant dense<0xFF800000> : vector<8xf32>
    %72 = vector.multi_reduction <maximumf>, %71, %cst_40 [1] : vector<8x8xf32> to vector<8xf32>
    %73 = vector.shape_cast %72 : vector<8xf32> to vector<8x1xf32>
    %74 = vector.broadcast %73 : vector<8x1xf32> to vector<8x8xf32>
    %75 = arith.subf %71, %74 : vector<8x8xf32>
    %76 = math.exp %75 : vector<8x8xf32>
    %cst_41 = arith.constant dense<0.000000e+00> : vector<8xf32>
    %77 = vector.multi_reduction <add>, %76, %cst_41 [1] : vector<8x8xf32> to vector<8xf32>
    %78 = vector.shape_cast %77 : vector<8xf32> to vector<8x1xf32>
    %79 = tpu.reciprocal %78 {approx = true} : vector<8x1xf32> -> vector<8x1xf32>
    %80 = vector.broadcast %79 : vector<8x1xf32> to vector<8x8xf32>
    %81 = arith.mulf %76, %80 : vector<8x8xf32>
    %82 = arith.truncf %81 : vector<8x8xf32> to vector<8x8xbf16>
    %cst_42 = arith.constant dense<0.000000e+00> : vector<8x8xf32>
    %83 = tpu.matmul %82, %70, %cst_42 {dimension_numbers = #tpu.dot_dimension_numbers<[1], [0], [0], [1], [0, 0, 1, 1], [], []>} : vector<8x8xbf16>, vector<8x8xbf16>, vector<8x8xf32> -> vector<8x8xf32>
    %84 = arith.truncf %83 : vector<8x8xf32> to vector<8x8xbf16>
    %c0_43 = arith.constant 0 : index
    %c24_44 = arith.constant 24 : index
    %85 = vector.load %arg23[%c0_43, %c24_44] : memref<8x32xbf16, #tpu.memory_space<vmem>>, vector<8x8xbf16>
    tpu.vector_store %arg23[%c0_43, %c24_44], %84 {strides = array<i32>} : memref<8x32xbf16, #tpu.memory_space<vmem>>, vector<8x8xbf16>,
    %c0_45 = arith.constant 0 : index
    %c0_46 = arith.constant 0 : index
    %86 = vector.load %arg23[%c0_45, %c0_46] : memref<8x32xbf16, #tpu.memory_space<vmem>>, vector<8x32xbf16>
    %c0_47 = arith.constant 0 : index
    %c0_48 = arith.constant 0 : index
    %87 = vector.load %arg10[%c0_47, %c0_48] : memref<32x32xbf16, #tpu.memory_space<vmem>>, vector<32x32xbf16>
    %cst_49 = arith.constant dense<0.000000e+00> : vector<8x32xf32>
    %88 = tpu.matmul %86, %87, %cst_49 {dimension_numbers = #tpu.dot_dimension_numbers<[1], [0], [0], [1], [0, 0, 1, 1], [], []>} : vector<8x32xbf16>, vector<32x32xbf16>, vector<8x32xf32> -> vector<8x32xf32>
    %c0_50 = arith.constant 0 : index
    %c0_51 = arith.constant 0 : index
    %89 = vector.load %arg11[%c0_50, %c0_51] : memref<1x32xf32, #tpu.memory_space<vmem>>, vector<1x32xf32>
    %90 = vector.broadcast %89 : vector<1x32xf32> to vector<8x32xf32>
    %91 = arith.addf %88, %90 : vector<8x32xf32>
    %92 = arith.addf %91, %1 : vector<8x32xf32>
    %cst_52 = arith.constant dense<0.000000e+00> : vector<8xf32>
    %93 = vector.multi_reduction <add>, %92, %cst_52 [1] : vector<8x32xf32> to vector<8xf32>
    %94 = vector.shape_cast %93 : vector<8xf32> to vector<8x1xf32>
    %cst_53 = arith.constant 3.200000e+01 : f32
    %95 = vector.broadcast %cst_53 : f32 to vector<8x1xf32>
    %96 = arith.divf %94, %95 : vector<8x1xf32>
    %97 = arith.mulf %92, %92 : vector<8x32xf32>
    %cst_54 = arith.constant dense<0.000000e+00> : vector<8xf32>
    %98 = vector.multi_reduction <add>, %97, %cst_54 [1] : vector<8x32xf32> to vector<8xf32>
    %99 = vector.shape_cast %98 : vector<8xf32> to vector<8x1xf32>
    %cst_55 = arith.constant 3.200000e+01 : f32
    %100 = vector.broadcast %cst_55 : f32 to vector<8x1xf32>
    %101 = arith.divf %99, %100 : vector<8x1xf32>
    %102 = arith.mulf %96, %96 : vector<8x1xf32>
    %103 = arith.subf %101, %102 : vector<8x1xf32>
    %cst_56 = arith.constant 0.000000e+00 : f32
    %104 = vector.broadcast %cst_56 : f32 to vector<8x1xf32>
    %105 = arith.maximumf %103, %104 : vector<8x1xf32>
    %106 = vector.broadcast %96 : vector<8x1xf32> to vector<8x32xf32>
    %107 = arith.subf %92, %106 : vector<8x32xf32>
    %cst_57 = arith.constant 9.99999974E-6 : f32
    %108 = vector.broadcast %cst_57 : f32 to vector<8x1xf32>
    %109 = arith.addf %105, %108 : vector<8x1xf32>
    %110 = math.rsqrt %109 : vector<8x1xf32>
    %111 = vector.broadcast %110 : vector<8x1xf32> to vector<8x32xf32>
    %112 = arith.mulf %107, %111 : vector<8x32xf32>
    %c0_58 = arith.constant 0 : index
    %c0_59 = arith.constant 0 : index
    %113 = vector.load %arg12[%c0_58, %c0_59] : memref<1x32xf32, #tpu.memory_space<vmem>>, vector<1x32xf32>
    %114 = vector.broadcast %113 : vector<1x32xf32> to vector<8x32xf32>
    %115 = arith.mulf %112, %114 : vector<8x32xf32>
    %c0_60 = arith.constant 0 : index
    %c0_61 = arith.constant 0 : index
    %116 = vector.load %arg13[%c0_60, %c0_61] : memref<1x32xf32, #tpu.memory_space<vmem>>, vector<1x32xf32>
    %117 = vector.broadcast %116 : vector<1x32xf32> to vector<8x32xf32>
    %118 = arith.addf %115, %117 : vector<8x32xf32>
    %119 = arith.truncf %118 : vector<8x32xf32> to vector<8x32xbf16>
    %cst_62 = arith.constant 0.000000e+00 : f32
    %120 = vector.broadcast %cst_62 : f32 to vector<8x32xf32>
    %c0_63 = arith.constant 0 : index
    %c0_64 = arith.constant 0 : index
    %121 = vector.load %arg14[%c0_63, %c0_64] : memref<32x128xbf16, #tpu.memory_space<vmem>>, vector<32x128xbf16>
    %cst_65 = arith.constant dense<0.000000e+00> : vector<8x128xf32>
    %122 = tpu.matmul %119, %121, %cst_65 {dimension_numbers = #tpu.dot_dimension_numbers<[1], [0], [0], [1], [0, 0, 1, 1], [], []>} : vector<8x32xbf16>, vector<32x128xbf16>, vector<8x128xf32> -> vector<8x128xf32>
    %c0_66 = arith.constant 0 : index
    %c0_67 = arith.constant 0 : index
    %123 = vector.load %arg15[%c0_66, %c0_67] : memref<1x128xf32, #tpu.memory_space<vmem>>, vector<1x128xf32>
    %124 = vector.broadcast %123 : vector<1x128xf32> to vector<8x128xf32>
    %125 = arith.addf %122, %124 : vector<8x128xf32>
    %cst_68 = arith.constant 0.000000e+00 : f32
    %126 = vector.broadcast %cst_68 : f32 to vector<8x128xf32>
    %127 = arith.maximumf %125, %126 : vector<8x128xf32>
    %128 = arith.truncf %127 : vector<8x128xf32> to vector<8x128xbf16>
    %c0_69 = arith.constant 0 : index
    %c0_70 = arith.constant 0 : index
    %129 = vector.load %arg16[%c0_69, %c0_70] : memref<128x32xbf16, #tpu.memory_space<vmem>>, vector<128x32xbf16>
    %cst_71 = arith.constant dense<0.000000e+00> : vector<8x32xf32>
    %130 = tpu.matmul %128, %129, %cst_71 {dimension_numbers = #tpu.dot_dimension_numbers<[1], [0], [0], [1], [0, 0, 1, 1], [], []>} : vector<8x128xbf16>, vector<128x32xbf16>, vector<8x32xf32> -> vector<8x32xf32>
    %131 = arith.addf %120, %130 : vector<8x32xf32>
    %c0_72 = arith.constant 0 : index
    %c0_73 = arith.constant 0 : index
    %132 = vector.load %arg17[%c0_72, %c0_73] : memref<1x32xf32, #tpu.memory_space<vmem>>, vector<1x32xf32>
    %133 = vector.broadcast %132 : vector<1x32xf32> to vector<8x32xf32>
    %134 = arith.addf %131, %133 : vector<8x32xf32>
    %135 = arith.addf %134, %118 : vector<8x32xf32>
    %cst_74 = arith.constant dense<0.000000e+00> : vector<8xf32>
    %136 = vector.multi_reduction <add>, %135, %cst_74 [1] : vector<8x32xf32> to vector<8xf32>
    %137 = vector.shape_cast %136 : vector<8xf32> to vector<8x1xf32>
    %cst_75 = arith.constant 3.200000e+01 : f32
    %138 = vector.broadcast %cst_75 : f32 to vector<8x1xf32>
    %139 = arith.divf %137, %138 : vector<8x1xf32>
    %140 = arith.mulf %135, %135 : vector<8x32xf32>
    %cst_76 = arith.constant dense<0.000000e+00> : vector<8xf32>
    %141 = vector.multi_reduction <add>, %140, %cst_76 [1] : vector<8x32xf32> to vector<8xf32>
    %142 = vector.shape_cast %141 : vector<8xf32> to vector<8x1xf32>
    %cst_77 = arith.constant 3.200000e+01 : f32
    %143 = vector.broadcast %cst_77 : f32 to vector<8x1xf32>
    %144 = arith.divf %142, %143 : vector<8x1xf32>
    %145 = arith.mulf %139, %139 : vector<8x1xf32>
    %146 = arith.subf %144, %145 : vector<8x1xf32>
    %cst_78 = arith.constant 0.000000e+00 : f32
    %147 = vector.broadcast %cst_78 : f32 to vector<8x1xf32>
    %148 = arith.maximumf %146, %147 : vector<8x1xf32>
    %149 = vector.broadcast %139 : vector<8x1xf32> to vector<8x32xf32>
    %150 = arith.subf %135, %149 : vector<8x32xf32>
    %cst_79 = arith.constant 9.99999974E-6 : f32
    %151 = vector.broadcast %cst_79 : f32 to vector<8x1xf32>
    %152 = arith.addf %148, %151 : vector<8x1xf32>
    %153 = math.rsqrt %152 : vector<8x1xf32>
    %154 = vector.broadcast %153 : vector<8x1xf32> to vector<8x32xf32>
    %155 = arith.mulf %150, %154 : vector<8x32xf32>
    %c0_80 = arith.constant 0 : index
    %c0_81 = arith.constant 0 : index
    %156 = vector.load %arg18[%c0_80, %c0_81] : memref<1x32xf32, #tpu.memory_space<vmem>>, vector<1x32xf32>
    %157 = vector.broadcast %156 : vector<1x32xf32> to vector<8x32xf32>
    %158 = arith.mulf %155, %157 : vector<8x32xf32>
    %c0_82 = arith.constant 0 : index
    %c0_83 = arith.constant 0 : index
    %159 = vector.load %arg19[%c0_82, %c0_83] : memref<1x32xf32, #tpu.memory_space<vmem>>, vector<1x32xf32>
    %160 = vector.broadcast %159 : vector<1x32xf32> to vector<8x32xf32>
    %161 = arith.addf %158, %160 : vector<8x32xf32>
    %c0_84 = arith.constant 0 : index
    %c0_85 = arith.constant 0 : index
    %c0_86 = arith.constant 0 : index
    %162 = vector.load %arg20[%c0_84, %c0_85, %c0_86] : memref<1x8x32xf32, #tpu.memory_space<vmem>>, vector<1x8x32xf32>
    %163 = vector.shape_cast %162 : vector<1x8x32xf32> to vector<8x32xf32>
    %164 = vector.shape_cast %161 : vector<8x32xf32> to vector<1x8x32xf32>
    tpu.vector_store %arg20[%c0_84, %c0_85, %c0_86], %164 {strides = array<i32>} : memref<1x8x32xf32, #tpu.memory_space<vmem>>, vector<1x8x32xf32>,
    return
  }
  func.func @transform_0(%arg0: i32, %arg1: i32) -> (i32, i32, i32) {
    %c0_i32 = arith.constant 0 : i32
    %c0_i32_0 = arith.constant 0 : i32
    return %arg0, %arg1, %c0_i32 : i32, i32, i32
  }
  func.func @transform_1(%arg0: i32, %arg1: i32) -> (i32, i32, i32) {
    %c0_i32 = arith.constant 0 : i32
    %c0_i32_0 = arith.constant 0 : i32
    %c0_i32_1 = arith.constant 0 : i32
    return %arg0, %c0_i32, %c0_i32_0 : i32, i32, i32
  }
  func.func @transform_2(%arg0: i32, %arg1: i32) -> (i32, i32) {
    %c0_i32 = arith.constant 0 : i32
    %c0_i32_0 = arith.constant 0 : i32
    %c0_i32_1 = arith.constant 0 : i32
    return %c0_i32, %c0_i32_0 : i32, i32
  }
  func.func @transform_3(%arg0: i32, %arg1: i32) -> (i32, i32) {
    %c0_i32 = arith.constant 0 : i32
    %c0_i32_0 = arith.constant 0 : i32
    %c0_i32_1 = arith.constant 0 : i32
    return %c0_i32, %c0_i32_0 : i32, i32
  }
  func.func @transform_4(%arg0: i32, %arg1: i32) -> (i32, i32) {
    %c0_i32 = arith.constant 0 : i32
    %c0_i32_0 = arith.constant 0 : i32
    %c0_i32_1 = arith.constant 0 : i32
    return %c0_i32, %c0_i32_0 : i32, i32
  }
  func.func @transform_5(%arg0: i32, %arg1: i32) -> (i32, i32) {
    %c0_i32 = arith.constant 0 : i32
    %c0_i32_0 = arith.constant 0 : i32
    %c0_i32_1 = arith.constant 0 : i32
    return %c0_i32, %c0_i32_0 : i32, i32
  }
  func.func @transform_6(%arg0: i32, %arg1: i32) -> (i32, i32) {
    %c0_i32 = arith.constant 0 : i32
    %c0_i32_0 = arith.constant 0 : i32
    %c0_i32_1 = arith.constant 0 : i32
    return %c0_i32, %c0_i32_0 : i32, i32
  }
  func.func @transform_7(%arg0: i32, %arg1: i32) -> (i32, i32) {
    %c0_i32 = arith.constant 0 : i32
    %c0_i32_0 = arith.constant 0 : i32
    %c0_i32_1 = arith.constant 0 : i32
    return %c0_i32, %c0_i32_0 : i32, i32
  }
  func.func @transform_8(%arg0: i32, %arg1: i32) -> (i32, i32) {
    %c0_i32 = arith.constant 0 : i32
    %c0_i32_0 = arith.constant 0 : i32
    %c0_i32_1 = arith.constant 0 : i32
    return %c0_i32, %c0_i32_0 : i32, i32
  }
  func.func @transform_9(%arg0: i32, %arg1: i32) -> (i32, i32) {
    %c0_i32 = arith.constant 0 : i32
    %c0_i32_0 = arith.constant 0 : i32
    %c0_i32_1 = arith.constant 0 : i32
    return %c0_i32, %c0_i32_0 : i32, i32
  }
  func.func @transform_10(%arg0: i32, %arg1: i32) -> (i32, i32) {
    %c0_i32 = arith.constant 0 : i32
    %c0_i32_0 = arith.constant 0 : i32
    %c0_i32_1 = arith.constant 0 : i32
    return %c0_i32, %c0_i32_0 : i32, i32
  }
  func.func @transform_11(%arg0: i32, %arg1: i32) -> (i32, i32) {
    %c0_i32 = arith.constant 0 : i32
    %c0_i32_0 = arith.constant 0 : i32
    %c0_i32_1 = arith.constant 0 : i32
    return %c0_i32, %c0_i32_0 : i32, i32
  }
  func.func @transform_12(%arg0: i32, %arg1: i32) -> (i32, i32) {
    %c0_i32 = arith.constant 0 : i32
    %c0_i32_0 = arith.constant 0 : i32
    %c0_i32_1 = arith.constant 0 : i32
    return %c0_i32, %c0_i32_0 : i32, i32
  }
  func.func @transform_13(%arg0: i32, %arg1: i32) -> (i32, i32) {
    %c0_i32 = arith.constant 0 : i32
    %c0_i32_0 = arith.constant 0 : i32
    %c0_i32_1 = arith.constant 0 : i32
    return %c0_i32, %c0_i32_0 : i32, i32
  }
  func.func @transform_14(%arg0: i32, %arg1: i32) -> (i32, i32) {
    %c0_i32 = arith.constant 0 : i32
    %c0_i32_0 = arith.constant 0 : i32
    %c0_i32_1 = arith.constant 0 : i32
    return %c0_i32, %c0_i32_0 : i32, i32
  }
  func.func @transform_15(%arg0: i32, %arg1: i32) -> (i32, i32) {
    %c0_i32 = arith.constant 0 : i32
    %c0_i32_0 = arith.constant 0 : i32
    %c0_i32_1 = arith.constant 0 : i32
    return %c0_i32, %c0_i32_0 : i32, i32
  }
  func.func @transform_16(%arg0: i32, %arg1: i32) -> (i32, i32) {
    %c0_i32 = arith.constant 0 : i32
    %c0_i32_0 = arith.constant 0 : i32
    %c0_i32_1 = arith.constant 0 : i32
    return %c0_i32, %c0_i32_0 : i32, i32
  }
  func.func @transform_17(%arg0: i32, %arg1: i32) -> (i32, i32) {
    %c0_i32 = arith.constant 0 : i32
    %c0_i32_0 = arith.constant 0 : i32
    %c0_i32_1 = arith.constant 0 : i32
    return %c0_i32, %c0_i32_0 : i32, i32
  }
  func.func @transform_18(%arg0: i32, %arg1: i32) -> (i32, i32, i32) {
    %c0_i32 = arith.constant 0 : i32
    %c0_i32_0 = arith.constant 0 : i32
    return %arg0, %arg1, %c0_i32 : i32, i32, i32
  }
}

module attributes {stable_mosaic.version = 11 : i64} {
  func.func @encoder_block_kernel(%arg0: i32, %arg1: i32, %arg2: memref<1x8x32xf32, #tpu.memory_space<vmem>>, %arg3: memref<1x8x32xbf16, #tpu.memory_space<vmem>>, %arg4: memref<32x32xbf16, #tpu.memory_space<vmem>>, %arg5: memref<1x32xf32, #tpu.memory_space<vmem>>, %arg6: memref<32x32xbf16, #tpu.memory_space<vmem>>, %arg7: memref<1x32xf32, #tpu.memory_space<vmem>>, %arg8: memref<32x32xbf16, #tpu.memory_space<vmem>>, %arg9: memref<1x32xf32, #tpu.memory_space<vmem>>, %arg10: memref<32x32xbf16, #tpu.memory_space<vmem>>, %arg11: memref<1x32xf32, #tpu.memory_space<vmem>>, %arg12: memref<1x32xf32, #tpu.memory_space<vmem>>, %arg13: memref<1x32xf32, #tpu.memory_space<vmem>>, %arg14: memref<32x128xbf16, #tpu.memory_space<vmem>>, %arg15: memref<1x128xf32, #tpu.memory_space<vmem>>, %arg16: memref<128x32xbf16, #tpu.memory_space<vmem>>, %arg17: memref<1x32xf32, #tpu.memory_space<vmem>>, %arg18: memref<1x32xf32, #tpu.memory_space<vmem>>, %arg19: memref<1x32xf32, #tpu.memory_space<vmem>>, %arg20: memref<1x8x32xf32, #tpu.memory_space<vmem>>, %arg21: memref<8x32xbf16, #tpu.memory_space<vmem>>, %arg22: memref<8x32xbf16, #tpu.memory_space<vmem>>, %arg23: memref<8x32xbf16, #tpu.memory_space<vmem>>) attributes {dimension_semantics = [#tpu.dimension_semantics<parallel>, #tpu.dimension_semantics<arbitrary>], iteration_bounds = array<i64: 2, 1>, scalar_prefetch = 0 : i64, scratch_operands = 3 : i64, tpu.core_type = #tpu.core_type<tc>, window_params = [{transform_indices = @transform_0, window_bounds = array<i64: 1, 8, 32>}, {transform_indices = @transform_1, window_bounds = array<i64: 1, 8, 32>}, {pipeline_mode = #tpu.pipeline_mode<synchronous>, transform_indices = @transform_2, window_bounds = array<i64: 32, 32>}, {pipeline_mode = #tpu.pipeline_mode<synchronous>, transform_indices = @transform_3, window_bounds = array<i64: 1, 32>}, {pipeline_mode = #tpu.pipeline_mode<synchronous>, transform_indices = @transform_4, window_bounds = array<i64: 32, 32>}, {pipeline_mode = #tpu.pipeline_mode<synchronous>, transform_indices = @transform_5, window_bounds = array<i64: 1, 32>}, {pipeline_mode = #tpu.pipeline_mode<synchronous>, transform_indices = @transform_6, window_bounds = array<i64: 32, 32>}, {pipeline_mode = #tpu.pipeline_mode<synchronous>, transform_indices = @transform_7, window_bounds = array<i64: 1, 32>}, {pipeline_mode = #tpu.pipeline_mode<synchronous>, transform_indices = @transform_8, window_bounds = array<i64: 32, 32>}, {pipeline_mode = #tpu.pipeline_mode<synchronous>, transform_indices = @transform_9, window_bounds = array<i64: 1, 32>}, {pipeline_mode = #tpu.pipeline_mode<synchronous>, transform_indices = @transform_10, window_bounds = array<i64: 1, 32>}, {pipeline_mode = #tpu.pipeline_mode<synchronous>, transform_indices = @transform_11, window_bounds = array<i64: 1, 32>}, {pipeline_mode = #tpu.pipeline_mode<synchronous>, transform_indices = @transform_12, window_bounds = array<i64: 32, 128>}, {pipeline_mode = #tpu.pipeline_mode<synchronous>, transform_indices = @transform_13, window_bounds = array<i64: 1, 128>}, {pipeline_mode = #tpu.pipeline_mode<synchronous>, transform_indices = @transform_14, window_bounds = array<i64: 128, 32>}, {pipeline_mode = #tpu.pipeline_mode<synchronous>, transform_indices = @transform_15, window_bounds = array<i64: 1, 32>}, {pipeline_mode = #tpu.pipeline_mode<synchronous>, transform_indices = @transform_16, window_bounds = array<i64: 1, 32>}, {pipeline_mode = #tpu.pipeline_mode<synchronous>, transform_indices = @transform_17, window_bounds = array<i64: 1, 32>}, {transform_indices = @transform_18, window_bounds = array<i64: 1, 8, 32>}]} {
    %c0 = arith.constant 0 : index
    %c0_0 = arith.constant 0 : index
    %c0_1 = arith.constant 0 : index
    %0 = vector.load %arg2[%c0, %c0_0, %c0_1] : memref<1x8x32xf32, #tpu.memory_space<vmem>>, vector<1x8x32xf32>
    %1 = vector.shape_cast %0 : vector<1x8x32xf32> to vector<8x32xf32>
    %c0_i32 = arith.constant 0 : i32
    %2 = arith.cmpi eq, %arg1, %c0_i32 : i32
    %3 = arith.extui %2 : i1 to i32
    %c0_i32_2 = arith.constant 0 : i32
    %4 = arith.cmpi ne, %3, %c0_i32_2 : i32
    scf.if %4 {
      %c0_87 = arith.constant 0 : index
      %c0_88 = arith.constant 0 : index
      %c0_89 = arith.constant 0 : index
      %165 = vector.load %arg3[%c0_87, %c0_88, %c0_89] : memref<1x8x32xbf16, #tpu.memory_space<vmem>>, vector<1x8x32xbf16>
      %166 = vector.shape_cast %165 : vector<1x8x32xbf16> to vector<8x32xbf16>
      %c0_90 = arith.constant 0 : index
      %c0_91 = arith.constant 0 : index
      %167 = vector.load %arg6[%c0_90, %c0_91] : memref<32x32xbf16, #tpu.memory_space<vmem>>, vector<32x32xbf16>
      %cst_92 = arith.constant dense<0.000000e+00> : vector<8x32xf32>
      %168 = tpu.matmul %166, %167, %cst_92 {dimension_numbers = #tpu.dot_dimension_numbers<[1], [0], [0], [1], [0, 0, 1, 1], [], []>} : vector<8x32xbf16>, vector<32x32xbf16>, vector<8x32xf32> -> vector<8x32xf32>
      %c0_93 = arith.constant 0 : index
      %c0_94 = arith.constant 0 : index
      %169 = vector.load %arg7[%c0_93, %c0_94] : memref<1x32xf32, #tpu.memory_space<vmem>>, vector<1x32xf32>
      %170 = vector.broadcast %169 : vector<1x32xf32> to vector<8x32xf32>
      %171 = arith.addf %168, %170 : vector<8x32xf32>
      %c0_95 = arith.constant 0 : index
      %c0_96 = arith.constant 0 : index
      %172 = vector.load %arg8[%c0_95, %c0_96] : memref<32x32xbf16, #tpu.memory_space<vmem>>, vector<32x32xbf16>
      %cst_97 = arith.constant dense<0.000000e+00> : vector<8x32xf32>
      %173 = tpu.matmul %166, %172, %cst_97 {dimension_numbers = #tpu.dot_dimension_numbers<[1], [0], [0], [1], [0, 0, 1, 1], [], []>} : vector<8x32xbf16>, vector<32x32xbf16>, vector<8x32xf32> -> vector<8x32xf32>
      %c0_98 = arith.constant 0 : index
      %c0_99 = arith.constant 0 : index
      %174 = vector.load %arg9[%c0_98, %c0_99] : memref<1x32xf32, #tpu.memory_space<vmem>>, vector<1x32xf32>
      %175 = vector.broadcast %174 : vector<1x32xf32> to vector<8x32xf32>
      %176 = arith.addf %173, %175 : vector<8x32xf32>
      %177 = arith.truncf %171 : vector<8x32xf32> to vector<8x32xbf16>
      %c0_100 = arith.constant 0 : index
      %c0_101 = arith.constant 0 : index
      %178 = vector.load %arg21[%c0_100, %c0_101] : memref<8x32xbf16, #tpu.memory_space<vmem>>, vector<8x32xbf16>
      tpu.vector_store %arg21[%c0_100, %c0_101], %177 {strides = array<i32>} : memref<8x32xbf16, #tpu.memory_space<vmem>>, vector<8x32xbf16>,
      %179 = arith.truncf %176 : vector<8x32xf32> to vector<8x32xbf16>
      %c0_102 = arith.constant 0 : index
      %c0_103 = arith.constant 0 : index
      %180 = vector.load %arg22[%c0_102, %c0_103] : memref<8x32xbf16, #tpu.memory_space<vmem>>, vector<8x32xbf16>
      tpu.vector_store %arg22[%c0_102, %c0_103], %179 {strides = array<i32>} : memref<8x32xbf16, #tpu.memory_space<vmem>>, vector<8x32xbf16>,
    } else {
    }
    %5 = arith.truncf %1 : vector<8x32xf32> to vector<8x32xbf16>
    %c0_3 = arith.constant 0 : index
    %c0_4 = arith.constant 0 : index
    %6 = vector.load %arg4[%c0_3, %c0_4] : memref<32x32xbf16, #tpu.memory_space<vmem>>, vector<32x32xbf16>
    %cst = arith.constant dense<0.000000e+00> : vector<8x32xf32>
    %7 = tpu.matmul %5, %6, %cst {dimension_numbers = #tpu.dot_dimension_numbers<[1], [0], [0], [1], [0, 0, 1, 1], [], []>} : vector<8x32xbf16>, vector<32x32xbf16>, vector<8x32xf32> -> vector<8x32xf32>
    %c0_5 = arith.constant 0 : index
    %c0_6 = arith.constant 0 : index
    %8 = vector.load %arg5[%c0_5, %c0_6] : memref<1x32xf32, #tpu.memory_space<vmem>>, vector<1x32xf32>
    %9 = vector.broadcast %8 : vector<1x32xf32> to vector<8x32xf32>
    %10 = arith.addf %7, %9 : vector<8x32xf32>
    %cst_7 = arith.constant 0.353553385 : f32
    %11 = vector.broadcast %cst_7 : f32 to vector<8x32xf32>
    %12 = arith.mulf %10, %11 : vector<8x32xf32>
    %13 = arith.truncf %12 : vector<8x32xf32> to vector<8x32xbf16>
    %14 = vector.extract_strided_slice %13 {offsets = [0, 0], sizes = [8, 8], strides = [1, 1]} : vector<8x32xbf16> to vector<8x8xbf16>
    %c0_8 = arith.constant 0 : index
    %c0_9 = arith.constant 0 : index
    %15 = vector.load %arg21[%c0_8, %c0_9] : memref<8x32xbf16, #tpu.memory_space<vmem>>, vector<8x8xbf16>
    %c0_10 = arith.constant 0 : index
    %c0_11 = arith.constant 0 : index
    %16 = vector.load %arg22[%c0_10, %c0_11] : memref<8x32xbf16, #tpu.memory_space<vmem>>, vector<8x8xbf16>
    %cst_12 = arith.constant dense<0.000000e+00> : vector<8x8xf32>
    %17 = tpu.matmul %14, %15, %cst_12 {dimension_numbers = #tpu.dot_dimension_numbers<[1], [1], [0], [0], [0, 0, 1, 0], [], []>} : vector<8x8xbf16>, vector<8x8xbf16>, vector<8x8xf32> -> vector<8x8xf32>
    %cst_13 = arith.constant dense<0xFF800000> : vector<8xf32>
    %18 = vector.multi_reduction <maximumf>, %17, %cst_13 [1] : vector<8x8xf32> to vector<8xf32>
    %19 = vector.shape_cast %18 : vector<8xf32> to vector<8x1xf32>
    %20 = vector.broadcast %19 : vector<8x1xf32> to vector<8x8xf32>
    %21 = arith.subf %17, %20 : vector<8x8xf32>
    %22 = math.exp %21 : vector<8x8xf32>
    %cst_14 = arith.constant dense<0.000000e+00> : vector<8xf32>
    %23 = vector.multi_reduction <add>, %22, %cst_14 [1] : vector<8x8xf32> to vector<8xf32>
    %24 = vector.shape_cast %23 : vector<8xf32> to vector<8x1xf32>
    %25 = tpu.reciprocal %24 {approx = true} : vector<8x1xf32> -> vector<8x1xf32>
    %26 = vector.broadcast %25 : vector<8x1xf32> to vector<8x8xf32>
    %27 = arith.mulf %22, %26 : vector<8x8xf32>
    %28 = arith.truncf %27 : vector<8x8xf32> to vector<8x8xbf16>
    %cst_15 = arith.constant dense<0.000000e+00> : vector<8x8xf32>
    %29 = tpu.matmul %28, %16, %cst_15 {dimension_numbers = #tpu.dot_dimension_numbers<[1], [0], [0], [1], [0, 0, 1, 1], [], []>} : vector<8x8xbf16>, vector<8x8xbf16>, vector<8x8xf32> -> vector<8x8xf32>
    %30 = arith.truncf %29 : vector<8x8xf32> to vector<8x8xbf16>
    %c0_16 = arith.constant 0 : index
    %c0_17 = arith.constant 0 : index
    %31 = vector.load %arg23[%c0_16, %c0_17] : memref<8x32xbf16, #tpu.memory_space<vmem>>, vector<8x8xbf16>
    tpu.vector_store %arg23[%c0_16, %c0_17], %30 {strides = array<i32>} : memref<8x32xbf16, #tpu.memory_space<vmem>>, vector<8x8xbf16>,
    %32 = vector.extract_strided_slice %13 {offsets = [0, 8], sizes = [8, 8], strides = [1, 1]} : vector<8x32xbf16> to vector<8x8xbf16>
    %c0_18 = arith.constant 0 : index
    %c8 = arith.constant 8 : index
    %33 = vector.load %arg21[%c0_18, %c8] : memref<8x32xbf16, #tpu.memory_space<vmem>>, vector<8x8xbf16>
    %c0_19 = arith.constant 0 : index
    %c8_20 = arith.constant 8 : index
    %34 = vector.load %arg22[%c0_19, %c8_20] : memref<8x32xbf16, #tpu.memory_space<vmem>>, vector<8x8xbf16>
    %cst_21 = arith.constant dense<0.000000e+00> : vector<8x8xf32>
    %35 = tpu.matmul %32, %33, %cst_21 {dimension_numbers = #tpu.dot_dimension_numbers<[1], [1], [0], [0], [0, 0, 1, 0], [], []>} : vector<8x8xbf16>, vector<8x8xbf16>, vector<8x8xf32> -> vector<8x8xf32>
    %cst_22 = arith.constant dense<0xFF800000> : vector<8xf32>
    %36 = vector.multi_reduction <maximumf>, %35, %cst_22 [1] : vector<8x8xf32> to vector<8xf32>
    %37 = vector.shape_cast %36 : vector<8xf32> to vector<8x1xf32>
    %38 = vector.broadcast %37 : vector<8x1xf32> to vector<8x8xf32>
    %39 = arith.subf %35, %38 : vector<8x8xf32>
    %40 = math.exp %39 : vector<8x8xf32>
    %cst_23 = arith.constant dense<0.000000e+00> : vector<8xf32>
    %41 = vector.multi_reduction <add>, %40, %cst_23 [1] : vector<8x8xf32> to vector<8xf32>
    %42 = vector.shape_cast %41 : vector<8xf32> to vector<8x1xf32>
    %43 = tpu.reciprocal %42 {approx = true} : vector<8x1xf32> -> vector<8x1xf32>
    %44 = vector.broadcast %43 : vector<8x1xf32> to vector<8x8xf32>
    %45 = arith.mulf %40, %44 : vector<8x8xf32>
    %46 = arith.truncf %45 : vector<8x8xf32> to vector<8x8xbf16>
    %cst_24 = arith.constant dense<0.000000e+00> : vector<8x8xf32>
    %47 = tpu.matmul %46, %34, %cst_24 {dimension_numbers = #tpu.dot_dimension_numbers<[1], [0], [0], [1], [0, 0, 1, 1], [], []>} : vector<8x8xbf16>, vector<8x8xbf16>, vector<8x8xf32> -> vector<8x8xf32>
    %48 = arith.truncf %47 : vector<8x8xf32> to vector<8x8xbf16>
    %c0_25 = arith.constant 0 : index
    %c8_26 = arith.constant 8 : index
    %49 = vector.load %arg23[%c0_25, %c8_26] : memref<8x32xbf16, #tpu.memory_space<vmem>>, vector<8x8xbf16>
    tpu.vector_store %arg23[%c0_25, %c8_26], %48 {strides = array<i32>} : memref<8x32xbf16, #tpu.memory_space<vmem>>, vector<8x8xbf16>,
    %50 = vector.extract_strided_slice %13 {offsets = [0, 16], sizes = [8, 8], strides = [1, 1]} : vector<8x32xbf16> to vector<8x8xbf16>
    %c0_27 = arith.constant 0 : index
    %c16 = arith.constant 16 : index
    %51 = vector.load %arg21[%c0_27, %c16] : memref<8x32xbf16, #tpu.memory_space<vmem>>, vector<8x8xbf16>
    %c0_28 = arith.constant 0 : index
    %c16_29 = arith.constant 16 : index
    %52 = vector.load %arg22[%c0_28, %c16_29] : memref<8x32xbf16, #tpu.memory_space<vmem>>, vector<8x8xbf16>
    %cst_30 = arith.constant dense<0.000000e+00> : vector<8x8xf32>
    %53 = tpu.matmul %50, %51, %cst_30 {dimension_numbers = #tpu.dot_dimension_numbers<[1], [1], [0], [0], [0, 0, 1, 0], [], []>} : vector<8x8xbf16>, vector<8x8xbf16>, vector<8x8xf32> -> vector<8x8xf32>
    %cst_31 = arith.constant dense<0xFF800000> : vector<8xf32>
    %54 = vector.multi_reduction <maximumf>, %53, %cst_31 [1] : vector<8x8xf32> to vector<8xf32>
    %55 = vector.shape_cast %54 : vector<8xf32> to vector<8x1xf32>
    %56 = vector.broadcast %55 : vector<8x1xf32> to vector<8x8xf32>
    %57 = arith.subf %53, %56 : vector<8x8xf32>
    %58 = math.exp %57 : vector<8x8xf32>
    %cst_32 = arith.constant dense<0.000000e+00> : vector<8xf32>
    %59 = vector.multi_reduction <add>, %58, %cst_32 [1] : vector<8x8xf32> to vector<8xf32>
    %60 = vector.shape_cast %59 : vector<8xf32> to vector<8x1xf32>
    %61 = tpu.reciprocal %60 {approx = true} : vector<8x1xf32> -> vector<8x1xf32>
    %62 = vector.broadcast %61 : vector<8x1xf32> to vector<8x8xf32>
    %63 = arith.mulf %58, %62 : vector<8x8xf32>
    %64 = arith.truncf %63 : vector<8x8xf32> to vector<8x8xbf16>
    %cst_33 = arith.constant dense<0.000000e+00> : vector<8x8xf32>
    %65 = tpu.matmul %64, %52, %cst_33 {dimension_numbers = #tpu.dot_dimension_numbers<[1], [0], [0], [1], [0, 0, 1, 1], [], []>} : vector<8x8xbf16>, vector<8x8xbf16>, vector<8x8xf32> -> vector<8x8xf32>
    %66 = arith.truncf %65 : vector<8x8xf32> to vector<8x8xbf16>
    %c0_34 = arith.constant 0 : index
    %c16_35 = arith.constant 16 : index
    %67 = vector.load %arg23[%c0_34, %c16_35] : memref<8x32xbf16, #tpu.memory_space<vmem>>, vector<8x8xbf16>
    tpu.vector_store %arg23[%c0_34, %c16_35], %66 {strides = array<i32>} : memref<8x32xbf16, #tpu.memory_space<vmem>>, vector<8x8xbf16>,
    %68 = vector.extract_strided_slice %13 {offsets = [0, 24], sizes = [8, 8], strides = [1, 1]} : vector<8x32xbf16> to vector<8x8xbf16>
    %c0_36 = arith.constant 0 : index
    %c24 = arith.constant 24 : index
    %69 = vector.load %arg21[%c0_36, %c24] : memref<8x32xbf16, #tpu.memory_space<vmem>>, vector<8x8xbf16>
    %c0_37 = arith.constant 0 : index
    %c24_38 = arith.constant 24 : index
    %70 = vector.load %arg22[%c0_37, %c24_38] : memref<8x32xbf16, #tpu.memory_space<vmem>>, vector<8x8xbf16>
    %cst_39 = arith.constant dense<0.000000e+00> : vector<8x8xf32>
    %71 = tpu.matmul %68, %69, %cst_39 {dimension_numbers = #tpu.dot_dimension_numbers<[1], [1], [0], [0], [0, 0, 1, 0], [], []>} : vector<8x8xbf16>, vector<8x8xbf16>, vector<8x8xf32> -> vector<8x8xf32>
    %cst_40 = arith.constant dense<0xFF800000> : vector<8xf32>
    %72 = vector.multi_reduction <maximumf>, %71, %cst_40 [1] : vector<8x8xf32> to vector<8xf32>
    %73 = vector.shape_cast %72 : vector<8xf32> to vector<8x1xf32>
    %74 = vector.broadcast %73 : vector<8x1xf32> to vector<8x8xf32>
    %75 = arith.subf %71, %74 : vector<8x8xf32>
    %76 = math.exp %75 : vector<8x8xf32>
    %cst_41 = arith.constant dense<0.000000e+00> : vector<8xf32>
    %77 = vector.multi_reduction <add>, %76, %cst_41 [1] : vector<8x8xf32> to vector<8xf32>
    %78 = vector.shape_cast %77 : vector<8xf32> to vector<8x1xf32>
    %79 = tpu.reciprocal %78 {approx = true} : vector<8x1xf32> -> vector<8x1xf32>
    %80 = vector.broadcast %79 : vector<8x1xf32> to vector<8x8xf32>
    %81 = arith.mulf %76, %80 : vector<8x8xf32>
    %82 = arith.truncf %81 : vector<8x8xf32> to vector<8x8xbf16>
    %cst_42 = arith.constant dense<0.000000e+00> : vector<8x8xf32>
    %83 = tpu.matmul %82, %70, %cst_42 {dimension_numbers = #tpu.dot_dimension_numbers<[1], [0], [0], [1], [0, 0, 1, 1], [], []>} : vector<8x8xbf16>, vector<8x8xbf16>, vector<8x8xf32> -> vector<8x8xf32>
    %84 = arith.truncf %83 : vector<8x8xf32> to vector<8x8xbf16>
    %c0_43 = arith.constant 0 : index
    %c24_44 = arith.constant 24 : index
    %85 = vector.load %arg23[%c0_43, %c24_44] : memref<8x32xbf16, #tpu.memory_space<vmem>>, vector<8x8xbf16>
    tpu.vector_store %arg23[%c0_43, %c24_44], %84 {strides = array<i32>} : memref<8x32xbf16, #tpu.memory_space<vmem>>, vector<8x8xbf16>,
    %c0_45 = arith.constant 0 : index
    %c0_46 = arith.constant 0 : index
    %86 = vector.load %arg23[%c0_45, %c0_46] : memref<8x32xbf16, #tpu.memory_space<vmem>>, vector<8x32xbf16>
    %c0_47 = arith.constant 0 : index
    %c0_48 = arith.constant 0 : index
    %87 = vector.load %arg10[%c0_47, %c0_48] : memref<32x32xbf16, #tpu.memory_space<vmem>>, vector<32x32xbf16>
    %cst_49 = arith.constant dense<0.000000e+00> : vector<8x32xf32>
    %88 = tpu.matmul %86, %87, %cst_49 {dimension_numbers = #tpu.dot_dimension_numbers<[1], [0], [0], [1], [0, 0, 1, 1], [], []>} : vector<8x32xbf16>, vector<32x32xbf16>, vector<8x32xf32> -> vector<8x32xf32>
    %c0_50 = arith.constant 0 : index
    %c0_51 = arith.constant 0 : index
    %89 = vector.load %arg11[%c0_50, %c0_51] : memref<1x32xf32, #tpu.memory_space<vmem>>, vector<1x32xf32>
    %90 = vector.broadcast %89 : vector<1x32xf32> to vector<8x32xf32>
    %91 = arith.addf %88, %90 : vector<8x32xf32>
    %92 = arith.addf %91, %1 : vector<8x32xf32>
    %cst_52 = arith.constant dense<0.000000e+00> : vector<8xf32>
    %93 = vector.multi_reduction <add>, %92, %cst_52 [1] : vector<8x32xf32> to vector<8xf32>
    %94 = vector.shape_cast %93 : vector<8xf32> to vector<8x1xf32>
    %cst_53 = arith.constant 3.200000e+01 : f32
    %95 = vector.broadcast %cst_53 : f32 to vector<8x1xf32>
    %96 = arith.divf %94, %95 : vector<8x1xf32>
    %97 = arith.mulf %92, %92 : vector<8x32xf32>
    %cst_54 = arith.constant dense<0.000000e+00> : vector<8xf32>
    %98 = vector.multi_reduction <add>, %97, %cst_54 [1] : vector<8x32xf32> to vector<8xf32>
    %99 = vector.shape_cast %98 : vector<8xf32> to vector<8x1xf32>
    %cst_55 = arith.constant 3.200000e+01 : f32
    %100 = vector.broadcast %cst_55 : f32 to vector<8x1xf32>
    %101 = arith.divf %99, %100 : vector<8x1xf32>
    %102 = arith.mulf %96, %96 : vector<8x1xf32>
    %103 = arith.subf %101, %102 : vector<8x1xf32>
    %cst_56 = arith.constant 0.000000e+00 : f32
    %104 = vector.broadcast %cst_56 : f32 to vector<8x1xf32>
    %105 = arith.maximumf %103, %104 : vector<8x1xf32>
    %106 = vector.broadcast %96 : vector<8x1xf32> to vector<8x32xf32>
    %107 = arith.subf %92, %106 : vector<8x32xf32>
    %cst_57 = arith.constant 9.99999974E-6 : f32
    %108 = vector.broadcast %cst_57 : f32 to vector<8x1xf32>
    %109 = arith.addf %105, %108 : vector<8x1xf32>
    %110 = math.rsqrt %109 : vector<8x1xf32>
    %111 = vector.broadcast %110 : vector<8x1xf32> to vector<8x32xf32>
    %112 = arith.mulf %107, %111 : vector<8x32xf32>
    %c0_58 = arith.constant 0 : index
    %c0_59 = arith.constant 0 : index
    %113 = vector.load %arg12[%c0_58, %c0_59] : memref<1x32xf32, #tpu.memory_space<vmem>>, vector<1x32xf32>
    %114 = vector.broadcast %113 : vector<1x32xf32> to vector<8x32xf32>
    %115 = arith.mulf %112, %114 : vector<8x32xf32>
    %c0_60 = arith.constant 0 : index
    %c0_61 = arith.constant 0 : index
    %116 = vector.load %arg13[%c0_60, %c0_61] : memref<1x32xf32, #tpu.memory_space<vmem>>, vector<1x32xf32>
    %117 = vector.broadcast %116 : vector<1x32xf32> to vector<8x32xf32>
    %118 = arith.addf %115, %117 : vector<8x32xf32>
    %119 = arith.truncf %118 : vector<8x32xf32> to vector<8x32xbf16>
    %cst_62 = arith.constant 0.000000e+00 : f32
    %120 = vector.broadcast %cst_62 : f32 to vector<8x32xf32>
    %c0_63 = arith.constant 0 : index
    %c0_64 = arith.constant 0 : index
    %121 = vector.load %arg14[%c0_63, %c0_64] : memref<32x128xbf16, #tpu.memory_space<vmem>>, vector<32x128xbf16>
    %cst_65 = arith.constant dense<0.000000e+00> : vector<8x128xf32>
    %122 = tpu.matmul %119, %121, %cst_65 {dimension_numbers = #tpu.dot_dimension_numbers<[1], [0], [0], [1], [0, 0, 1, 1], [], []>} : vector<8x32xbf16>, vector<32x128xbf16>, vector<8x128xf32> -> vector<8x128xf32>
    %c0_66 = arith.constant 0 : index
    %c0_67 = arith.constant 0 : index
    %123 = vector.load %arg15[%c0_66, %c0_67] : memref<1x128xf32, #tpu.memory_space<vmem>>, vector<1x128xf32>
    %124 = vector.broadcast %123 : vector<1x128xf32> to vector<8x128xf32>
    %125 = arith.addf %122, %124 : vector<8x128xf32>
    %cst_68 = arith.constant 0.000000e+00 : f32
    %126 = vector.broadcast %cst_68 : f32 to vector<8x128xf32>
    %127 = arith.maximumf %125, %126 : vector<8x128xf32>
    %128 = arith.truncf %127 : vector<8x128xf32> to vector<8x128xbf16>
    %c0_69 = arith.constant 0 : index
    %c0_70 = arith.constant 0 : index
    %129 = vector.load %arg16[%c0_69, %c0_70] : memref<128x32xbf16, #tpu.memory_space<vmem>>, vector<128x32xbf16>
    %cst_71 = arith.constant dense<0.000000e+00> : vector<8x32xf32>
    %130 = tpu.matmul %128, %129, %cst_71 {dimension_numbers = #tpu.dot_dimension_numbers<[1], [0], [0], [1], [0, 0, 1, 1], [], []>} : vector<8x128xbf16>, vector<128x32xbf16>, vector<8x32xf32> -> vector<8x32xf32>
    %131 = arith.addf %120, %130 : vector<8x32xf32>
    %c0_72 = arith.constant 0 : index
    %c0_73 = arith.constant 0 : index
    %132 = vector.load %arg17[%c0_72, %c0_73] : memref<1x32xf32, #tpu.memory_space<vmem>>, vector<1x32xf32>
    %133 = vector.broadcast %132 : vector<1x32xf32> to vector<8x32xf32>
    %134 = arith.addf %131, %133 : vector<8x32xf32>
    %135 = arith.addf %134, %118 : vector<8x32xf32>
    %cst_74 = arith.constant dense<0.000000e+00> : vector<8xf32>
    %136 = vector.multi_reduction <add>, %135, %cst_74 [1] : vector<8x32xf32> to vector<8xf32>
    %137 = vector.shape_cast %136 : vector<8xf32> to vector<8x1xf32>
    %cst_75 = arith.constant 3.200000e+01 : f32
    %138 = vector.broadcast %cst_75 : f32 to vector<8x1xf32>
    %139 = arith.divf %137, %138 : vector<8x1xf32>
    %140 = arith.mulf %135, %135 : vector<8x32xf32>
    %cst_76 = arith.constant dense<0.000000e+00> : vector<8xf32>
    %141 = vector.multi_reduction <add>, %140, %cst_76 [1] : vector<8x32xf32> to vector<8xf32>
    %142 = vector.shape_cast %141 : vector<8xf32> to vector<8x1xf32>
    %cst_77 = arith.constant 3.200000e+01 : f32
    %143 = vector.broadcast %cst_77 : f32 to vector<8x1xf32>
    %144 = arith.divf %142, %143 : vector<8x1xf32>
    %145 = arith.mulf %139, %139 : vector<8x1xf32>
    %146 = arith.subf %144, %145 : vector<8x1xf32>
    %cst_78 = arith.constant 0.000000e+00 : f32
    %147 = vector.broadcast %cst_78 : f32 to vector<8x1xf32>
    %148 = arith.maximumf %146, %147 : vector<8x1xf32>
    %149 = vector.broadcast %139 : vector<8x1xf32> to vector<8x32xf32>
    %150 = arith.subf %135, %149 : vector<8x32xf32>
    %cst_79 = arith.constant 9.99999974E-6 : f32
    %151 = vector.broadcast %cst_79 : f32 to vector<8x1xf32>
    %152 = arith.addf %148, %151 : vector<8x1xf32>
    %153 = math.rsqrt %152 : vector<8x1xf32>
    %154 = vector.broadcast %153 : vector<8x1xf32> to vector<8x32xf32>
    %155 = arith.mulf %150, %154 : vector<8x32xf32>
    %c0_80 = arith.constant 0 : index
    %c0_81 = arith.constant 0 : index
    %156 = vector.load %arg18[%c0_80, %c0_81] : memref<1x32xf32, #tpu.memory_space<vmem>>, vector<1x32xf32>
    %157 = vector.broadcast %156 : vector<1x32xf32> to vector<8x32xf32>
    %158 = arith.mulf %155, %157 : vector<8x32xf32>
    %c0_82 = arith.constant 0 : index
    %c0_83 = arith.constant 0 : index
    %159 = vector.load %arg19[%c0_82, %c0_83] : memref<1x32xf32, #tpu.memory_space<vmem>>, vector<1x32xf32>
    %160 = vector.broadcast %159 : vector<1x32xf32> to vector<8x32xf32>
    %161 = arith.addf %158, %160 : vector<8x32xf32>
    %c0_84 = arith.constant 0 : index
    %c0_85 = arith.constant 0 : index
    %c0_86 = arith.constant 0 : index
    %162 = vector.load %arg20[%c0_84, %c0_85, %c0_86] : memref<1x8x32xf32, #tpu.memory_space<vmem>>, vector<1x8x32xf32>
    %163 = vector.shape_cast %162 : vector<1x8x32xf32> to vector<8x32xf32>
    %164 = vector.shape_cast %161 : vector<8x32xf32> to vector<1x8x32xf32>
    tpu.vector_store %arg20[%c0_84, %c0_85, %c0_86], %164 {strides = array<i32>} : memref<1x8x32xf32, #tpu.memory_space<vmem>>, vector<1x8x32xf32>,
    return
  }
  func.func @transform_0(%arg0: i32, %arg1: i32) -> (i32, i32, i32) {
    %c0_i32 = arith.constant 0 : i32
    %c0_i32_0 = arith.constant 0 : i32
    return %arg0, %arg1, %c0_i32 : i32, i32, i32
  }
  func.func @transform_1(%arg0: i32, %arg1: i32) -> (i32, i32, i32) {
    %c0_i32 = arith.constant 0 : i32
    %c0_i32_0 = arith.constant 0 : i32
    %c0_i32_1 = arith.constant 0 : i32
    return %arg0, %c0_i32, %c0_i32_0 : i32, i32, i32
  }
  func.func @transform_2(%arg0: i32, %arg1: i32) -> (i32, i32) {
    %c0_i32 = arith.constant 0 : i32
    %c0_i32_0 = arith.constant 0 : i32
    %c0_i32_1 = arith.constant 0 : i32
    return %c0_i32, %c0_i32_0 : i32, i32
  }
  func.func @transform_3(%arg0: i32, %arg1: i32) -> (i32, i32) {
    %c0_i32 = arith.constant 0 : i32
    %c0_i32_0 = arith.constant 0 : i32
    %c0_i32_1 = arith.constant 0 : i32
    return %c0_i32, %c0_i32_0 : i32, i32
  }
  func.func @transform_4(%arg0: i32, %arg1: i32) -> (i32, i32) {
    %c0_i32 = arith.constant 0 : i32
    %c0_i32_0 = arith.constant 0 : i32
    %c0_i32_1 = arith.constant 0 : i32
    return %c0_i32, %c0_i32_0 : i32, i32
  }
  func.func @transform_5(%arg0: i32, %arg1: i32) -> (i32, i32) {
    %c0_i32 = arith.constant 0 : i32
    %c0_i32_0 = arith.constant 0 : i32
    %c0_i32_1 = arith.constant 0 : i32
    return %c0_i32, %c0_i32_0 : i32, i32
  }
  func.func @transform_6(%arg0: i32, %arg1: i32) -> (i32, i32) {
    %c0_i32 = arith.constant 0 : i32
    %c0_i32_0 = arith.constant 0 : i32
    %c0_i32_1 = arith.constant 0 : i32
    return %c0_i32, %c0_i32_0 : i32, i32
  }
  func.func @transform_7(%arg0: i32, %arg1: i32) -> (i32, i32) {
    %c0_i32 = arith.constant 0 : i32
    %c0_i32_0 = arith.constant 0 : i32
    %c0_i32_1 = arith.constant 0 : i32
    return %c0_i32, %c0_i32_0 : i32, i32
  }
  func.func @transform_8(%arg0: i32, %arg1: i32) -> (i32, i32) {
    %c0_i32 = arith.constant 0 : i32
    %c0_i32_0 = arith.constant 0 : i32
    %c0_i32_1 = arith.constant 0 : i32
    return %c0_i32, %c0_i32_0 : i32, i32
  }
  func.func @transform_9(%arg0: i32, %arg1: i32) -> (i32, i32) {
    %c0_i32 = arith.constant 0 : i32
    %c0_i32_0 = arith.constant 0 : i32
    %c0_i32_1 = arith.constant 0 : i32
    return %c0_i32, %c0_i32_0 : i32, i32
  }
  func.func @transform_10(%arg0: i32, %arg1: i32) -> (i32, i32) {
    %c0_i32 = arith.constant 0 : i32
    %c0_i32_0 = arith.constant 0 : i32
    %c0_i32_1 = arith.constant 0 : i32
    return %c0_i32, %c0_i32_0 : i32, i32
  }
  func.func @transform_11(%arg0: i32, %arg1: i32) -> (i32, i32) {
    %c0_i32 = arith.constant 0 : i32
    %c0_i32_0 = arith.constant 0 : i32
    %c0_i32_1 = arith.constant 0 : i32
    return %c0_i32, %c0_i32_0 : i32, i32
  }
  func.func @transform_12(%arg0: i32, %arg1: i32) -> (i32, i32) {
    %c0_i32 = arith.constant 0 : i32
    %c0_i32_0 = arith.constant 0 : i32
    %c0_i32_1 = arith.constant 0 : i32
    return %c0_i32, %c0_i32_0 : i32, i32
  }
  func.func @transform_13(%arg0: i32, %arg1: i32) -> (i32, i32) {
    %c0_i32 = arith.constant 0 : i32
    %c0_i32_0 = arith.constant 0 : i32
    %c0_i32_1 = arith.constant 0 : i32
    return %c0_i32, %c0_i32_0 : i32, i32
  }
  func.func @transform_14(%arg0: i32, %arg1: i32) -> (i32, i32) {
    %c0_i32 = arith.constant 0 : i32
    %c0_i32_0 = arith.constant 0 : i32
    %c0_i32_1 = arith.constant 0 : i32
    return %c0_i32, %c0_i32_0 : i32, i32
  }
  func.func @transform_15(%arg0: i32, %arg1: i32) -> (i32, i32) {
    %c0_i32 = arith.constant 0 : i32
    %c0_i32_0 = arith.constant 0 : i32
    %c0_i32_1 = arith.constant 0 : i32
    return %c0_i32, %c0_i32_0 : i32, i32
  }
  func.func @transform_16(%arg0: i32, %arg1: i32) -> (i32, i32) {
    %c0_i32 = arith.constant 0 : i32
    %c0_i32_0 = arith.constant 0 : i32
    %c0_i32_1 = arith.constant 0 : i32
    return %c0_i32, %c0_i32_0 : i32, i32
  }
  func.func @transform_17(%arg0: i32, %arg1: i32) -> (i32, i32) {
    %c0_i32 = arith.constant 0 : i32
    %c0_i32_0 = arith.constant 0 : i32
    %c0_i32_1 = arith.constant 0 : i32
    return %c0_i32, %c0_i32_0 : i32, i32
  }
  func.func @transform_18(%arg0: i32, %arg1: i32) -> (i32, i32, i32) {
    %c0_i32 = arith.constant 0 : i32
    %c0_i32_0 = arith.constant 0 : i32
    return %arg0, %arg1, %c0_i32 : i32, i32, i32
  }
}

</mosaic_0001>

<llo_original>
// kernel: tpu_custom_call.1
$region0: #{tpu_custom_call.1}
  #allocation0 [shape = 'u32[]', space=smem, size = 0x4, offset = 0x4, fixed_abs, tag = 'smem constant byte address 0x4 - core index']
  #allocation1 [shape = 'u32[144,128]{1,0:T(1,128)}', space=vmem, size = 0x12000, scoped, tag = 'internal scratch']
  #allocation2 [shape = 'bf16[8,32]{1,0:T(8,128)(2,1)}', space=vmem, size = 0x800, scoped, tag = 'scratch operand']
  #allocation3 [shape = 'bf16[8,32]{1,0:T(8,128)(2,1)}', space=vmem, size = 0x800, scoped, tag = 'scratch operand']
  #allocation4 [shape = 'bf16[8,32]{1,0:T(8,128)(2,1)}', space=vmem, size = 0x800, scoped, tag = 'scratch operand']
  %s0 = inlined_call_operand.vmem [shape: f32[2,8,32], index: 0, kind: input, shape index: {}]
  %s1 = inlined_call_operand.hbm [shape: bf16[2,8,32], index: 1, kind: input, shape index: {}]
  %s2 = inlined_call_operand.vmem [shape: bf16[32,32], index: 2, kind: input, shape index: {}]
  %s3 = inlined_call_operand.vmem [shape: f32[1,32], index: 3, kind: input, shape index: {}]
  %s4 = inlined_call_operand.vmem [shape: bf16[32,32], index: 4, kind: input, shape index: {}]
  %s5 = inlined_call_operand.vmem [shape: f32[1,32], index: 5, kind: input, shape index: {}]
  %s6 = inlined_call_operand.vmem [shape: bf16[32,32], index: 6, kind: input, shape index: {}]
  %s7 = inlined_call_operand.hbm [shape: f32[1,32], index: 7, kind: input, shape index: {}]
  %s8 = inlined_call_operand.vmem [shape: bf16[32,32], index: 8, kind: input, shape index: {}]
  %s9 = inlined_call_operand.hbm [shape: f32[1,32], index: 9, kind: input, shape index: {}]
  %s10 = inlined_call_operand.vmem [shape: f32[1,32], index: 10, kind: input, shape index: {}]
  %s11 = inlined_call_operand.vmem [shape: f32[1,32], index: 11, kind: input, shape index: {}]
  %s12 = inlined_call_operand.vmem [shape: bf16[32,128], index: 12, kind: input, shape index: {}]
  %s13 = inlined_call_operand.vmem [shape: f32[1,128], index: 13, kind: input, shape index: {}]
  %s14 = inlined_call_operand.vmem [shape: bf16[128,32], index: 14, kind: input, shape index: {}]
  %s15 = inlined_call_operand.vmem [shape: f32[1,32], index: 15, kind: input, shape index: {}]
  %s16 = inlined_call_operand.vmem [shape: f32[1,32], index: 16, kind: input, shape index: {}]
  %s17 = inlined_call_operand.vmem [shape: f32[1,32], index: 17, kind: input, shape index: {}]
  %s18 = inlined_call_operand.hbm [shape: f32[2,8,32], index: 18, kind: output, shape index: {}]
  %s19 = sld [smem:[#allocation0]]
  $region121: #{tpu_custom_call.1} parent=0
    _
  %s21 = ssub.s32 1, %s19
  %s22 = scalar_select 0, %s21, %s19
  $region1: #{tpu_custom_call.1} parent=0
    #allocation5 [shape = 'u8[4096]{0}', space=vmem, size = 0x1000, scoped, tag = 'input window, operand 1']
    #allocation6 [shape = 's32[2]{0}', space=sflag, size = 0x8, scoped, tag = 'scoped memory for tpu_custom_call.1']
    #allocation7 [shape = 's32[2]{0}', space=sflag, size = 0x8, scoped, tag = 'scoped memory for tpu_custom_call.1']
    #allocation8 [shape = 'u8[512]{0}', space=vmem, size = 0x400, scoped, tag = 'input window, operand 7, single buffered']
    #allocation9 [shape = 's32[1]{0}', space=sflag, size = 0x4, scoped, tag = 'scoped memory for tpu_custom_call.1']
    #allocation10 [shape = 'u8[512]{0}', space=vmem, size = 0x400, scoped, tag = 'input window, operand 9, single buffered']
    #allocation11 [shape = 'u8[8192]{0}', space=vmem, size = 0x2000, scoped, tag = 'output window, operand 0']
    %23 = vsyncpa [#allocation6], 0
    %s24 = scalar_lea.sflag [#allocation6], 1
    %25 = vsyncpa %s24, 0
    %26 = vsyncpa [#allocation9], 0
    %27 = vsyncpa [#allocation7], 0
    %s28 = scalar_lea.sflag [#allocation7], 1
    %29 = vsyncpa %s28, 0
    loop: start=0, step=1, limit=4
    $region2: #{tpu_custom_call.1} parent=1 // loop_pre_header
      _
    $region3: #{tpu_custom_call.1} parent=1 // loop_header
      %s31 = sphi 0, %s35
      %p32 = scmp.ge.s32.totalorder %s31, 4
      %s38 = sphi 0, %s50
      %s39 = sphi 0, %s46
      %s40 = sphi 0, %s38
      %s41 = sphi 0, %s39
      %s42 = sphi 0, %s40
      %s43 = sphi 0, %s41
      %s55 = sphi 0, %s57
      %s58 = sphi 0, %s55
      %s59 = sphi 0, %s58
      %s75 = sphi 0, %s59
      %s81 = sphi 0, %s83
      %s84 = sphi 0, %s81
      %s85 = sphi 0, %s84
      %s101 = sphi 0, %s85
      %s105 = sphi 0, %s105
      %s107 = sphi 0, %s105
      %s108 = sphi 0, %s107
      %s122 = sphi 0, %s108
      %s126 = sphi 0, %s126
      %s128 = sphi 0, %s126
      %s129 = sphi 0, %s128
      %s143 = sphi 0, %s129
      %s147 = sphi 0, %s147
      %s149 = sphi 0, %s147
      %s150 = sphi 0, %s149
      %s164 = sphi 0, %s150
      %s168 = sphi 0, %s168
      %s170 = sphi 0, %s168
      %s171 = sphi 0, %s170
      %s185 = sphi 0, %s171
      %s189 = sphi 0, %s189
      %s191 = sphi 0, %s189
      %s192 = sphi 0, %s191
      %s206 = sphi 0, %s192
      %s210 = sphi 0, %s210
      %s212 = sphi 0, %s210
      %s213 = sphi 0, %s212
      %s227 = sphi 0, %s213
      %s231 = sphi 0, %s231
      %s233 = sphi 0, %s231
      %s234 = sphi 0, %s233
      %s248 = sphi 0, %s234
      %s252 = sphi 0, %s252
      %s254 = sphi 0, %s252
      %s255 = sphi 0, %s254
      %s269 = sphi 0, %s255
      %s273 = sphi 0, %s273
      %s275 = sphi 0, %s273
      %s276 = sphi 0, %s275
      %s290 = sphi 0, %s276
      %s294 = sphi 0, %s294
      %s296 = sphi 0, %s294
      %s297 = sphi 0, %s296
      %s311 = sphi 0, %s297
      %s315 = sphi 0, %s315
      %s317 = sphi 0, %s315
      %s318 = sphi 0, %s317
      %s332 = sphi 0, %s318
      %s336 = sphi 0, %s336
      %s338 = sphi 0, %s336
      %s339 = sphi 0, %s338
      %s353 = sphi 0, %s339
      %s357 = sphi 0, %s357
      %s359 = sphi 0, %s357
      %s360 = sphi 0, %s359
      %s374 = sphi 0, %s360
      %s378 = sphi 0, %s378
      %s380 = sphi 0, %s378
      %s381 = sphi 0, %s380
      %s395 = sphi 0, %s381
      %s399 = sphi 0, %s399
      %s401 = sphi 0, %s399
      %s402 = sphi 0, %s401
      %s416 = sphi 0, %s402
      %s420 = sphi 0, %s420
      %s422 = sphi 0, %s420
      %s423 = sphi 0, %s422
      %s437 = sphi 0, %s423
      %s445 = sphi 0, %s447
      %s448 = sphi 0, %s445
      %s449 = sphi 0, %s448
      %s465 = sphi 0, %s449
    $region4: #{tpu_custom_call.1} parent=1 // loop_header_branch
      %34 = sbr.rel (%p32) target = $region8
    $region5: #{tpu_custom_call.1} parent=1 // loop_body
      %s36 = ssub.s32 %s31, 1
      %s37 = ssub.s32 %s31, 2
      %s44 = sadd.s32 1, %s39
      %p45 = scmp.ge.s32.totalorder %s44, 1
      %s46 = scalar_select %p45, 0, %s44
      %s47 = sadd.s32 1, %s38
      %s48 = scalar_select %p45, %s47, %s38
      %p49 = scmp.ge.s32.totalorder %s48, 2
      %s50 = scalar_select %p49, 0, %s48
      %s51 = ssub.s32 %s38, %s50
      %s52 = ssub.s32 %s39, %s46
      %s53 = sor.u32 %s51, %s52
      %p54 = scmp.eq.s32.totalorder %s53, 0
      %s56 = sadd.s32 %s55, 1
      %s57 = scalar_select %p54, %s55, %s56
      %p60 = pneg %p54
      %p61 = scmp.eq.s32.totalorder %s31, 1
      %p62 = por %p60, %p61
      %p63 = scmp.ne.s32.totalorder %s55, %s58
      %p64 = scmp.eq.s32.totalorder %s31, 0
      %p65 = por %p63, %p64
      %p66 = scmp.ne.s32.totalorder %s55, %s58
      %p67 = scmp.eq.s32.totalorder %s36, 1
      %p68 = por %p66, %p67
      %p69 = scmp.ne.s32.totalorder %s58, %s59
      %p70 = scmp.eq.s32.totalorder %s36, 0
      %p71 = por %p69, %p70
      %p72 = scmp.ne.s32.totalorder %s58, %s59
      %p73 = scmp.eq.s32.totalorder %s37, 1
      %p74 = por %p72, %p73
      %p76 = scmp.ne.s32.totalorder %s59, %s75
      %p77 = scmp.eq.s32.totalorder %s37, 0
      %p78 = por %p76, %p77
      %s79 = ssub.s32 %s38, %s50
      %p80 = scmp.eq.s32.totalorder %s79, 0
      %s82 = sadd.s32 %s81, 1
      %s83 = scalar_select %p80, %s81, %s82
      %p86 = pneg %p80
      %p87 = scmp.eq.s32.totalorder %s31, 1
      %p88 = por %p86, %p87
      %p89 = scmp.ne.s32.totalorder %s81, %s84
      %p90 = scmp.eq.s32.totalorder %s31, 0
      %p91 = por %p89, %p90
      %p92 = scmp.ne.s32.totalorder %s81, %s84
      %p93 = scmp.eq.s32.totalorder %s36, 1
      %p94 = por %p92, %p93
      %p95 = scmp.ne.s32.totalorder %s84, %s85
      %p96 = scmp.eq.s32.totalorder %s36, 0
      %p97 = por %p95, %p96
      %p98 = scmp.ne.s32.totalorder %s84, %s85
      %p99 = scmp.eq.s32.totalorder %s37, 1
      %p100 = por %p98, %p99
      %p102 = scmp.ne.s32.totalorder %s85, %s101
      %p103 = scmp.eq.s32.totalorder %s37, 0
      %p104 = por %p102, %p103
      %s106 = sadd.s32 %s105, 1
      %p109 = scmp.eq.s32.totalorder %s31, 1
      %p110 = scmp.ne.s32.totalorder %s105, %s107
      %p111 = scmp.eq.s32.totalorder %s31, 0
      %p112 = por %p110, %p111
      %p113 = scmp.ne.s32.totalorder %s105, %s107
      %p114 = scmp.eq.s32.totalorder %s36, 1
      %p115 = por %p113, %p114
      %p116 = scmp.ne.s32.totalorder %s107, %s108
      %p117 = scmp.eq.s32.totalorder %s36, 0
      %p118 = por %p116, %p117
      %p119 = scmp.ne.s32.totalorder %s107, %s108
      %p120 = scmp.eq.s32.totalorder %s37, 1
      %p121 = por %p119, %p120
      %p123 = scmp.ne.s32.totalorder %s108, %s122
      %p124 = scmp.eq.s32.totalorder %s37, 0
      %p125 = por %p123, %p124
      %s127 = sadd.s32 %s126, 1
      %p130 = scmp.eq.s32.totalorder %s31, 1
      %p131 = scmp.ne.s32.totalorder %s126, %s128
      %p132 = scmp.eq.s32.totalorder %s31, 0
      %p133 = por %p131, %p132
      %p134 = scmp.ne.s32.totalorder %s126, %s128
      %p135 = scmp.eq.s32.totalorder %s36, 1
      %p136 = por %p134, %p135
      %p137 = scmp.ne.s32.totalorder %s128, %s129
      %p138 = scmp.eq.s32.totalorder %s36, 0
      %p139 = por %p137, %p138
      %p140 = scmp.ne.s32.totalorder %s128, %s129
      %p141 = scmp.eq.s32.totalorder %s37, 1
      %p142 = por %p140, %p141
      %p144 = scmp.ne.s32.totalorder %s129, %s143
      %p145 = scmp.eq.s32.totalorder %s37, 0
      %p146 = por %p144, %p145
      %s148 = sadd.s32 %s147, 1
      %p151 = scmp.eq.s32.totalorder %s31, 1
      %p152 = scmp.ne.s32.totalorder %s147, %s149
      %p153 = scmp.eq.s32.totalorder %s31, 0
      %p154 = por %p152, %p153
      %p155 = scmp.ne.s32.totalorder %s147, %s149
      %p156 = scmp.eq.s32.totalorder %s36, 1
      %p157 = por %p155, %p156
      %p158 = scmp.ne.s32.totalorder %s149, %s150
      %p159 = scmp.eq.s32.totalorder %s36, 0
      %p160 = por %p158, %p159
      %p161 = scmp.ne.s32.totalorder %s149, %s150
      %p162 = scmp.eq.s32.totalorder %s37, 1
      %p163 = por %p161, %p162
      %p165 = scmp.ne.s32.totalorder %s150, %s164
      %p166 = scmp.eq.s32.totalorder %s37, 0
      %p167 = por %p165, %p166
      %s169 = sadd.s32 %s168, 1
      %p172 = scmp.eq.s32.totalorder %s31, 1
      %p173 = scmp.ne.s32.totalorder %s168, %s170
      %p174 = scmp.eq.s32.totalorder %s31, 0
      %p175 = por %p173, %p174
      %p176 = scmp.ne.s32.totalorder %s168, %s170
      %p177 = scmp.eq.s32.totalorder %s36, 1
      %p178 = por %p176, %p177
      %p179 = scmp.ne.s32.totalorder %s170, %s171
      %p180 = scmp.eq.s32.totalorder %s36, 0
      %p181 = por %p179, %p180
      %p182 = scmp.ne.s32.totalorder %s170, %s171
      %p183 = scmp.eq.s32.totalorder %s37, 1
      %p184 = por %p182, %p183
      %p186 = scmp.ne.s32.totalorder %s171, %s185
      %p187 = scmp.eq.s32.totalorder %s37, 0
      %p188 = por %p186, %p187
      %s190 = sadd.s32 %s189, 1
      %p193 = scmp.eq.s32.totalorder %s31, 1
      %p194 = scmp.ne.s32.totalorder %s189, %s191
      %p195 = scmp.eq.s32.totalorder %s31, 0
      %p196 = por %p194, %p195
      %p197 = scmp.ne.s32.totalorder %s189, %s191
      %p198 = scmp.eq.s32.totalorder %s36, 1
      %p199 = por %p197, %p198
      %p200 = scmp.ne.s32.totalorder %s191, %s192
      %p201 = scmp.eq.s32.totalorder %s36, 0
      %p202 = por %p200, %p201
      %p203 = scmp.ne.s32.totalorder %s191, %s192
      %p204 = scmp.eq.s32.totalorder %s37, 1
      %p205 = por %p203, %p204
      %p207 = scmp.ne.s32.totalorder %s192, %s206
      %p208 = scmp.eq.s32.totalorder %s37, 0
      %p209 = por %p207, %p208
      %s211 = sadd.s32 %s210, 1
      %p214 = scmp.eq.s32.totalorder %s31, 1
      %p215 = scmp.ne.s32.totalorder %s210, %s212
      %p216 = scmp.eq.s32.totalorder %s31, 0
      %p217 = por %p215, %p216
      %p218 = scmp.ne.s32.totalorder %s210, %s212
      %p219 = scmp.eq.s32.totalorder %s36, 1
      %p220 = por %p218, %p219
      %p221 = scmp.ne.s32.totalorder %s212, %s213
      %p222 = scmp.eq.s32.totalorder %s36, 0
      %p223 = por %p221, %p222
      %p224 = scmp.ne.s32.totalorder %s212, %s213
      %p225 = scmp.eq.s32.totalorder %s37, 1
      %p226 = por %p224, %p225
      %p228 = scmp.ne.s32.totalorder %s213, %s227
      %p229 = scmp.eq.s32.totalorder %s37, 0
      %p230 = por %p228, %p229
      %s232 = sadd.s32 %s231, 1
      %p235 = scmp.eq.s32.totalorder %s31, 1
      %p236 = scmp.ne.s32.totalorder %s231, %s233
      %p237 = scmp.eq.s32.totalorder %s31, 0
      %p238 = por %p236, %p237
      %p239 = scmp.ne.s32.totalorder %s231, %s233
      %p240 = scmp.eq.s32.totalorder %s36, 1
      %p241 = por %p239, %p240
      %p242 = scmp.ne.s32.totalorder %s233, %s234
      %p243 = scmp.eq.s32.totalorder %s36, 0
      %p244 = por %p242, %p243
      %p245 = scmp.ne.s32.totalorder %s233, %s234
      %p246 = scmp.eq.s32.totalorder %s37, 1
      %p247 = por %p245, %p246
      %p249 = scmp.ne.s32.totalorder %s234, %s248
      %p250 = scmp.eq.s32.totalorder %s37, 0
      %p251 = por %p249, %p250
      %s253 = sadd.s32 %s252, 1
      %p256 = scmp.eq.s32.totalorder %s31, 1
      %p257 = scmp.ne.s32.totalorder %s252, %s254
      %p258 = scmp.eq.s32.totalorder %s31, 0
      %p259 = por %p257, %p258
      %p260 = scmp.ne.s32.totalorder %s252, %s254
      %p261 = scmp.eq.s32.totalorder %s36, 1
      %p262 = por %p260, %p261
      %p263 = scmp.ne.s32.totalorder %s254, %s255
      %p264 = scmp.eq.s32.totalorder %s36, 0
      %p265 = por %p263, %p264
      %p266 = scmp.ne.s32.totalorder %s254, %s255
      %p267 = scmp.eq.s32.totalorder %s37, 1
      %p268 = por %p266, %p267
      %p270 = scmp.ne.s32.totalorder %s255, %s269
      %p271 = scmp.eq.s32.totalorder %s37, 0
      %p272 = por %p270, %p271
      %s274 = sadd.s32 %s273, 1
      %p277 = scmp.eq.s32.totalorder %s31, 1
      %p278 = scmp.ne.s32.totalorder %s273, %s275
      %p279 = scmp.eq.s32.totalorder %s31, 0
      %p280 = por %p278, %p279
      %p281 = scmp.ne.s32.totalorder %s273, %s275
      %p282 = scmp.eq.s32.totalorder %s36, 1
      %p283 = por %p281, %p282
      %p284 = scmp.ne.s32.totalorder %s275, %s276
      %p285 = scmp.eq.s32.totalorder %s36, 0
      %p286 = por %p284, %p285
      %p287 = scmp.ne.s32.totalorder %s275, %s276
      %p288 = scmp.eq.s32.totalorder %s37, 1
      %p289 = por %p287, %p288
      %p291 = scmp.ne.s32.totalorder %s276, %s290
      %p292 = scmp.eq.s32.totalorder %s37, 0
      %p293 = por %p291, %p292
      %s295 = sadd.s32 %s294, 1
      %p298 = scmp.eq.s32.totalorder %s31, 1
      %p299 = scmp.ne.s32.totalorder %s294, %s296
      %p300 = scmp.eq.s32.totalorder %s31, 0
      %p301 = por %p299, %p300
      %p302 = scmp.ne.s32.totalorder %s294, %s296
      %p303 = scmp.eq.s32.totalorder %s36, 1
      %p304 = por %p302, %p303
      %p305 = scmp.ne.s32.totalorder %s296, %s297
      %p306 = scmp.eq.s32.totalorder %s36, 0
      %p307 = por %p305, %p306
      %p308 = scmp.ne.s32.totalorder %s296, %s297
      %p309 = scmp.eq.s32.totalorder %s37, 1
      %p310 = por %p308, %p309
      %p312 = scmp.ne.s32.totalorder %s297, %s311
      %p313 = scmp.eq.s32.totalorder %s37, 0
      %p314 = por %p312, %p313
      %s316 = sadd.s32 %s315, 1
      %p319 = scmp.eq.s32.totalorder %s31, 1
      %p320 = scmp.ne.s32.totalorder %s315, %s317
      %p321 = scmp.eq.s32.totalorder %s31, 0
      %p322 = por %p320, %p321
      %p323 = scmp.ne.s32.totalorder %s315, %s317
      %p324 = scmp.eq.s32.totalorder %s36, 1
      %p325 = por %p323, %p324
      %p326 = scmp.ne.s32.totalorder %s317, %s318
      %p327 = scmp.eq.s32.totalorder %s36, 0
      %p328 = por %p326, %p327
      %p329 = scmp.ne.s32.totalorder %s317, %s318
      %p330 = scmp.eq.s32.totalorder %s37, 1
      %p331 = por %p329, %p330
      %p333 = scmp.ne.s32.totalorder %s318, %s332
      %p334 = scmp.eq.s32.totalorder %s37, 0
      %p335 = por %p333, %p334
      %s337 = sadd.s32 %s336, 1
      %p340 = scmp.eq.s32.totalorder %s31, 1
      %p341 = scmp.ne.s32.totalorder %s336, %s338
      %p342 = scmp.eq.s32.totalorder %s31, 0
      %p343 = por %p341, %p342
      %p344 = scmp.ne.s32.totalorder %s336, %s338
      %p345 = scmp.eq.s32.totalorder %s36, 1
      %p346 = por %p344, %p345
      %p347 = scmp.ne.s32.totalorder %s338, %s339
      %p348 = scmp.eq.s32.totalorder %s36, 0
      %p349 = por %p347, %p348
      %p350 = scmp.ne.s32.totalorder %s338, %s339
      %p351 = scmp.eq.s32.totalorder %s37, 1
      %p352 = por %p350, %p351
      %p354 = scmp.ne.s32.totalorder %s339, %s353
      %p355 = scmp.eq.s32.totalorder %s37, 0
      %p356 = por %p354, %p355
      %s358 = sadd.s32 %s357, 1
      %p361 = scmp.eq.s32.totalorder %s31, 1
      %p362 = scmp.ne.s32.totalorder %s357, %s359
      %p363 = scmp.eq.s32.totalorder %s31, 0
      %p364 = por %p362, %p363
      %p365 = scmp.ne.s32.totalorder %s357, %s359
      %p366 = scmp.eq.s32.totalorder %s36, 1
      %p367 = por %p365, %p366
      %p368 = scmp.ne.s32.totalorder %s359, %s360
      %p369 = scmp.eq.s32.totalorder %s36, 0
      %p370 = por %p368, %p369
      %p371 = scmp.ne.s32.totalorder %s359, %s360
      %p372 = scmp.eq.s32.totalorder %s37, 1
      %p373 = por %p371, %p372
      %p375 = scmp.ne.s32.totalorder %s360, %s374
      %p376 = scmp.eq.s32.totalorder %s37, 0
      %p377 = por %p375, %p376
      %s379 = sadd.s32 %s378, 1
      %p382 = scmp.eq.s32.totalorder %s31, 1
      %p383 = scmp.ne.s32.totalorder %s378, %s380
      %p384 = scmp.eq.s32.totalorder %s31, 0
      %p385 = por %p383, %p384
      %p386 = scmp.ne.s32.totalorder %s378, %s380
      %p387 = scmp.eq.s32.totalorder %s36, 1
      %p388 = por %p386, %p387
      %p389 = scmp.ne.s32.totalorder %s380, %s381
      %p390 = scmp.eq.s32.totalorder %s36, 0
      %p391 = por %p389, %p390
      %p392 = scmp.ne.s32.totalorder %s380, %s381
      %p393 = scmp.eq.s32.totalorder %s37, 1
      %p394 = por %p392, %p393
      %p396 = scmp.ne.s32.totalorder %s381, %s395
      %p397 = scmp.eq.s32.totalorder %s37, 0
      %p398 = por %p396, %p397
      %s400 = sadd.s32 %s399, 1
      %p403 = scmp.eq.s32.totalorder %s31, 1
      %p404 = scmp.ne.s32.totalorder %s399, %s401
      %p405 = scmp.eq.s32.totalorder %s31, 0
      %p406 = por %p404, %p405
      %p407 = scmp.ne.s32.totalorder %s399, %s401
      %p408 = scmp.eq.s32.totalorder %s36, 1
      %p409 = por %p407, %p408
      %p410 = scmp.ne.s32.totalorder %s401, %s402
      %p411 = scmp.eq.s32.totalorder %s36, 0
      %p412 = por %p410, %p411
      %p413 = scmp.ne.s32.totalorder %s401, %s402
      %p414 = scmp.eq.s32.totalorder %s37, 1
      %p415 = por %p413, %p414
      %p417 = scmp.ne.s32.totalorder %s402, %s416
      %p418 = scmp.eq.s32.totalorder %s37, 0
      %p419 = por %p417, %p418
      %s421 = sadd.s32 %s420, 1
      %p424 = scmp.eq.s32.totalorder %s31, 1
      %p425 = scmp.ne.s32.totalorder %s420, %s422
      %p426 = scmp.eq.s32.totalorder %s31, 0
      %p427 = por %p425, %p426
      %p428 = scmp.ne.s32.totalorder %s420, %s422
      %p429 = scmp.eq.s32.totalorder %s36, 1
      %p430 = por %p428, %p429
      %p431 = scmp.ne.s32.totalorder %s422, %s423
      %p432 = scmp.eq.s32.totalorder %s36, 0
      %p433 = por %p431, %p432
      %p434 = scmp.ne.s32.totalorder %s422, %s423
      %p435 = scmp.eq.s32.totalorder %s37, 1
      %p436 = por %p434, %p435
      %p438 = scmp.ne.s32.totalorder %s423, %s437
      %p439 = scmp.eq.s32.totalorder %s37, 0
      %p440 = por %p438, %p439
      %s441 = ssub.s32 %s38, %s50
      %s442 = ssub.s32 %s39, %s46
      %s443 = sor.u32 %s441, %s442
      %p444 = scmp.eq.s32.totalorder %s443, 0
      %s446 = sadd.s32 %s445, 1
      %s447 = scalar_select %p444, %s445, %s446
      %p450 = pneg %p444
      %p451 = scmp.eq.s32.totalorder %s31, 1
      %p452 = por %p450, %p451
      %p453 = scmp.ne.s32.totalorder %s445, %s448
      %p454 = scmp.eq.s32.totalorder %s31, 0
      %p455 = por %p453, %p454
      %p456 = scmp.ne.s32.totalorder %s445, %s448
      %p457 = scmp.eq.s32.totalorder %s36, 1
      %p458 = por %p456, %p457
      %p459 = scmp.ne.s32.totalorder %s448, %s449
      %p460 = scmp.eq.s32.totalorder %s36, 0
      %p461 = por %p459, %p460
      %p462 = scmp.ne.s32.totalorder %s448, %s449
      %p463 = scmp.eq.s32.totalorder %s37, 1
      %p464 = por %p462, %p463
      %p466 = scmp.ne.s32.totalorder %s449, %s465
      %p467 = scmp.eq.s32.totalorder %s37, 0
      %p468 = por %p466, %p467
      %p469 = scmp.le.s32.totalorder 1, %s31
      %p470 = scmp.lt.s32.totalorder %s31, 3
      %p471 = pnand %p469, %p470
      %p472 = pneg %p471
      // Predicated region
      $region9: #{tpu_custom_call.1} parent=5 // pred_check
        _
      $region10: #{tpu_custom_call.1} parent=5 // pred_check_branch
        %474 = sbr.rel (%p471) target = $region12
      $region11: #{tpu_custom_call.1} parent=5 // pred_region
        %s475 = ssub.s32 %s31, 1
        // Predicated region
        $region13: #{tpu_custom_call.1} parent=11 // pred_check
          %p476 = pneg %p118
        $region14: #{tpu_custom_call.1} parent=11 // pred_check_branch
          %478 = sbr.rel (%p476) target = $region16
        $region15: #{tpu_custom_call.1} parent=11 // pred_region
          _
        $region16: #{tpu_custom_call.1} parent=11 // pred_fallthru
          _
        // Predicated region
        $region17: #{tpu_custom_call.1} parent=11 // pred_check
          %p479 = pneg %p139
        $region18: #{tpu_custom_call.1} parent=11 // pred_check_branch
          %481 = sbr.rel (%p479) target = $region20
        $region19: #{tpu_custom_call.1} parent=11 // pred_region
          _
        $region20: #{tpu_custom_call.1} parent=11 // pred_fallthru
          _
        // Predicated region
        $region21: #{tpu_custom_call.1} parent=11 // pred_check
          %p482 = pneg %p160
        $region22: #{tpu_custom_call.1} parent=11 // pred_check_branch
          %484 = sbr.rel (%p482) target = $region24
        $region23: #{tpu_custom_call.1} parent=11 // pred_region
          _
        $region24: #{tpu_custom_call.1} parent=11 // pred_fallthru
          _
        // Predicated region
        $region25: #{tpu_custom_call.1} parent=11 // pred_check
          %p485 = pneg %p181
        $region26: #{tpu_custom_call.1} parent=11 // pred_check_branch
          %487 = sbr.rel (%p485) target = $region28
        $region27: #{tpu_custom_call.1} parent=11 // pred_region
          _
        $region28: #{tpu_custom_call.1} parent=11 // pred_fallthru
          _
        // Predicated region
        $region29: #{tpu_custom_call.1} parent=11 // pred_check
          %p488 = pneg %p202
        $region30: #{tpu_custom_call.1} parent=11 // pred_check_branch
          %490 = sbr.rel (%p488) target = $region32
        $region31: #{tpu_custom_call.1} parent=11 // pred_region
          _
        $region32: #{tpu_custom_call.1} parent=11 // pred_fallthru
          _
        // Predicated region
        $region33: #{tpu_custom_call.1} parent=11 // pred_check
          %p491 = pneg %p223
        $region34: #{tpu_custom_call.1} parent=11 // pred_check_branch
          %493 = sbr.rel (%p491) target = $region36
        $region35: #{tpu_custom_call.1} parent=11 // pred_region
          %s495 = ssub.s32 16, 16
          %496 = vsyncadd [#allocation9], %s495
          %s498 = sshll.u32 [#allocation8], 4
          %s499 = int_to_ptr.vmem [resolvable:$true] %s498
          %501 = dma.hbm_to_vmem [thread:$0]  %s7, 16, %s499, [#allocation9]
        $region36: #{tpu_custom_call.1} parent=11 // pred_fallthru
          _
        // Predicated region
        $region37: #{tpu_custom_call.1} parent=11 // pred_check
          %p502 = pneg %p244
        $region38: #{tpu_custom_call.1} parent=11 // pred_check_branch
          %504 = sbr.rel (%p502) target = $region40
        $region39: #{tpu_custom_call.1} parent=11 // pred_region
          _
        $region40: #{tpu_custom_call.1} parent=11 // pred_fallthru
          _
        // Predicated region
        $region41: #{tpu_custom_call.1} parent=11 // pred_check
          %p505 = pneg %p265
        $region42: #{tpu_custom_call.1} parent=11 // pred_check_branch
          %507 = sbr.rel (%p505) target = $region44
        $region43: #{tpu_custom_call.1} parent=11 // pred_region
          %s509 = ssub.s32 16, 16
          %510 = vsyncadd [#allocation9], %s509
          %s512 = sshll.u32 [#allocation10], 4
          %s513 = int_to_ptr.vmem [resolvable:$true] %s512
          %515 = dma.hbm_to_vmem [thread:$0]  %s9, 16, %s513, [#allocation9]
        $region44: #{tpu_custom_call.1} parent=11 // pred_fallthru
          _
        // Predicated region
        $region45: #{tpu_custom_call.1} parent=11 // pred_check
          %p516 = pneg %p286
        $region46: #{tpu_custom_call.1} parent=11 // pred_check_branch
          %518 = sbr.rel (%p516) target = $region48
        $region47: #{tpu_custom_call.1} parent=11 // pred_region
          _
        $region48: #{tpu_custom_call.1} parent=11 // pred_fallthru
          _
        // Predicated region
        $region49: #{tpu_custom_call.1} parent=11 // pred_check
          %p519 = pneg %p307
        $region50: #{tpu_custom_call.1} parent=11 // pred_check_branch
          %521 = sbr.rel (%p519) target = $region52
        $region51: #{tpu_custom_call.1} parent=11 // pred_region
          _
        $region52: #{tpu_custom_call.1} parent=11 // pred_fallthru
          _
        // Predicated region
        $region53: #{tpu_custom_call.1} parent=11 // pred_check
          %p522 = pneg %p328
        $region54: #{tpu_custom_call.1} parent=11 // pred_check_branch
          %524 = sbr.rel (%p522) target = $region56
        $region55: #{tpu_custom_call.1} parent=11 // pred_region
          _
        $region56: #{tpu_custom_call.1} parent=11 // pred_fallthru
          _
        // Predicated region
        $region57: #{tpu_custom_call.1} parent=11 // pred_check
          %p525 = pneg %p349
        $region58: #{tpu_custom_call.1} parent=11 // pred_check_branch
          %527 = sbr.rel (%p525) target = $region60
        $region59: #{tpu_custom_call.1} parent=11 // pred_region
          _
        $region60: #{tpu_custom_call.1} parent=11 // pred_fallthru
          _
        // Predicated region
        $region61: #{tpu_custom_call.1} parent=11 // pred_check
          %p528 = pneg %p370
        $region62: #{tpu_custom_call.1} parent=11 // pred_check_branch
          %530 = sbr.rel (%p528) target = $region64
        $region63: #{tpu_custom_call.1} parent=11 // pred_region
          _
        $region64: #{tpu_custom_call.1} parent=11 // pred_fallthru
          _
        // Predicated region
        $region65: #{tpu_custom_call.1} parent=11 // pred_check
          %p531 = pneg %p391
        $region66: #{tpu_custom_call.1} parent=11 // pred_check_branch
          %533 = sbr.rel (%p531) target = $region68
        $region67: #{tpu_custom_call.1} parent=11 // pred_region
          _
        $region68: #{tpu_custom_call.1} parent=11 // pred_fallthru
          _
        // Predicated region
        $region69: #{tpu_custom_call.1} parent=11 // pred_check
          %p534 = pneg %p412
        $region70: #{tpu_custom_call.1} parent=11 // pred_check_branch
          %536 = sbr.rel (%p534) target = $region72
        $region71: #{tpu_custom_call.1} parent=11 // pred_region
          _
        $region72: #{tpu_custom_call.1} parent=11 // pred_fallthru
          _
        // Predicated region
        $region73: #{tpu_custom_call.1} parent=11 // pred_check
          %p537 = pneg %p433
        $region74: #{tpu_custom_call.1} parent=11 // pred_check_branch
          %539 = sbr.rel (%p537) target = $region76
        $region75: #{tpu_custom_call.1} parent=11 // pred_region
          _
        $region76: #{tpu_custom_call.1} parent=11 // pred_fallthru
          _
      $region12: #{tpu_custom_call.1} parent=5 // pred_fallthru
        _
      %p540 = scmp.lt.s32.totalorder %s31, 2
      // Predicated region
      $region77: #{tpu_custom_call.1} parent=5 // pred_check
        %p541 = pneg %p540
      $region78: #{tpu_custom_call.1} parent=5 // pred_check_branch
        %543 = sbr.rel (%p541) target = $region80
      $region79: #{tpu_custom_call.1} parent=5 // pred_region
        // Predicated region
        $region81: #{tpu_custom_call.1} parent=79 // pred_check
          %p544 = pneg %p65
        $region82: #{tpu_custom_call.1} parent=79 // pred_check_branch
          %546 = sbr.rel (%p544) target = $region84
        $region83: #{tpu_custom_call.1} parent=79 // pred_region
          %p547 = scmp.lt.s32.totalorder %s38, 1
          %s548 = scalar_select %p547, %s38, 1
          %p549 = scmp.lt.s32.totalorder %s39, 0
          %s550 = scalar_select %p549, %s39, 0
          %s551 = sadd.s32 %s550, %s548
          %s552 = smul.addr %s551, 8
          %s553 = scalar_lea.vmem %s0, %s552
        $region84: #{tpu_custom_call.1} parent=79 // pred_fallthru
          _
        // Predicated region
        $region85: #{tpu_custom_call.1} parent=79 // pred_check
          %p554 = pneg %p91
        $region86: #{tpu_custom_call.1} parent=79 // pred_check_branch
          %556 = sbr.rel (%p554) target = $region88
        $region87: #{tpu_custom_call.1} parent=79 // pred_region
          %s557 = sand.u32 %s81, 1
          %s558 = scalar_lea.sflag [#allocation6], %s557
          %s559 = sand.u32 %s81, 1
          %s560 = smul.addr %s559, 4
          %s561 = scalar_lea.vmem [#allocation5], %s560
          %s563 = ssub.s32 64, 64
          %564 = vsyncadd %s558, %s563
          %s565 = smul.addr %s38, 64
          %s566 = scalar_lea.hbm %s1, %s565
          %s568 = sshll.u32 %s561, 4
          %s569 = int_to_ptr.vmem [resolvable:$true] %s568
          %571 = dma.hbm_to_vmem [thread:$0]  %s566, 64, %s569, %s558
        $region88: #{tpu_custom_call.1} parent=79 // pred_fallthru
          _
      $region80: #{tpu_custom_call.1} parent=5 // pred_fallthru
        _
      %p572 = scmp.le.s32.totalorder 1, %s31
      %p573 = scmp.lt.s32.totalorder %s31, 3
      %p574 = pnand %p572, %p573
      %p575 = pneg %p574
      // Predicated region
      $region89: #{tpu_custom_call.1} parent=5 // pred_check
        _
      $region90: #{tpu_custom_call.1} parent=5 // pred_check_branch
        %577 = sbr.rel (%p574) target = $region92
      $region91: #{tpu_custom_call.1} parent=5 // pred_region
        %s578 = ssub.s32 %s31, 1
        %s579 = sand.u32 %s84, 1
        %s580 = scalar_lea.sflag [#allocation6], %s579
        %s581 = sand.u32 %s84, 1
        %s582 = smul.addr %s581, 4
        %s583 = scalar_lea.vmem [#allocation5], %s582
        // Predicated region
        $region93: #{tpu_custom_call.1} parent=91 // pred_check
          %p584 = pneg %p97
        $region94: #{tpu_custom_call.1} parent=91 // pred_check_branch
          %586 = sbr.rel (%p584) target = $region96
        $region95: #{tpu_custom_call.1} parent=91 // pred_region
          %587 = dma.done %s580, 64
        $region96: #{tpu_custom_call.1} parent=91 // pred_fallthru
          _
        // Predicated region
        $region97: #{tpu_custom_call.1} parent=91 // pred_check
          %p588 = pneg %p223
        $region98: #{tpu_custom_call.1} parent=91 // pred_check_branch
          %590 = sbr.rel (%p588) target = $region100
        $region99: #{tpu_custom_call.1} parent=91 // pred_region
          %591 = dma.done [#allocation9], 16
        $region100: #{tpu_custom_call.1} parent=91 // pred_fallthru
          _
        // Predicated region
        $region101: #{tpu_custom_call.1} parent=91 // pred_check
          %p592 = pneg %p265
        $region102: #{tpu_custom_call.1} parent=91 // pred_check_branch
          %594 = sbr.rel (%p592) target = $region104
        $region103: #{tpu_custom_call.1} parent=91 // pred_region
          %595 = dma.done [#allocation9], 16
        $region104: #{tpu_custom_call.1} parent=91 // pred_fallthru
          _
        %p596 = scmp.lt.s32.totalorder %s40, 1
        %s597 = scalar_select %p596, %s40, 1
        %p598 = scmp.lt.s32.totalorder %s41, 0
        %s599 = scalar_select %p598, %s41, 0
        %s600 = sadd.s32 %s599, %s597
        %s601 = smul.addr %s600, 8
        %s602 = scalar_lea.vmem %s0, %s601
        %p603 = pneg %p71
        %p604 = pneg %p68
        %s605 = sand.u32 %s84, 1
        %s606 = scalar_lea.sflag [#allocation6], %s605
        %s607 = sand.u32 %s84, 1
        %s608 = smul.addr %s607, 4
        %s609 = scalar_lea.vmem [#allocation5], %s608
        %p610 = pneg %p97
        %p611 = pneg %p94
        %p612 = pneg %p118
        %p613 = pneg %p115
        %p614 = pneg %p139
        %p615 = pneg %p136
        %p616 = pneg %p160
        %p617 = pneg %p157
        %p618 = pneg %p181
        %p619 = pneg %p178
        %p620 = pneg %p202
        %p621 = pneg %p199
        %p622 = pneg %p223
        %p623 = pneg %p220
        %p624 = pneg %p244
        %p625 = pneg %p241
        %p626 = pneg %p265
        %p627 = pneg %p262
        %p628 = pneg %p286
        %p629 = pneg %p283
        %p630 = pneg %p307
        %p631 = pneg %p304
        %p632 = pneg %p328
        %p633 = pneg %p325
        %p634 = pneg %p349
        %p635 = pneg %p346
        %p636 = pneg %p370
        %p637 = pneg %p367
        %p638 = pneg %p391
        %p639 = pneg %p388
        %p640 = pneg %p412
        %p641 = pneg %p409
        %p642 = pneg %p433
        %p643 = pneg %p430
        %p644 = pneg %p461
        %p645 = pneg %p458
        %s646 = sand.u32 %s448, 1
        %s647 = scalar_lea.sflag [#allocation7], %s646
        %s648 = sand.u32 %s448, 1
        %s649 = smul.addr %s648, 8
        %s650 = scalar_lea.vmem [#allocation11], %s649
        %p651 = scmp.lt.s32.totalorder %s40, 1
        %s652 = scalar_select %p651, %s40, 1
        %p653 = scmp.lt.s32.totalorder %s41, 0
        %s654 = scalar_select %p653, %s41, 0
        %s655 = sadd.s32 %s654, %s652
        %s656 = smul.addr %s655, 8
        %s657 = scalar_lea.vmem %s0, %s656
        %v659 = vld [vmem:[%s657] sm:$0xff]
        %p660 = scmp.eq.s32.totalorder %s41, 0
        // Predicated region
        $region105: #{tpu_custom_call.1} parent=91 // pred_check
          %p661 = pneg %p660
        $region106: #{tpu_custom_call.1} parent=91 // pred_check_branch
          %663 = sbr.rel (%p661) target = $region108
        $region107: #{tpu_custom_call.1} parent=91 // pred_region
          %v664 = vld [vmem:[%s583] sm:$0xf]
          %v665 = vld [vmem:[%s4] sm:$0xf]
          %v666 = vld [vmem:[%s4 + $0x4] sm:$0xf]
          %v667 = vld [vmem:[%s4 + $0x8] sm:$0xf]
          %v668 = vld [vmem:[%s4 + $0xc] sm:$0xf]
          %v669 = vld [vmem:[%s5] sm:$0x1]
          %v671 = vlaneseq
          %v672 = vshrl.u32 %v671, 7
          %v673 = vsub.s32 0, %v672
          %v674 = vrot.slane %v669, %v673
          %v680 = vunpack.c.l.b16 %v665
          %v681 = vunpack.c.l.b16 %v666
          %v682 = vunpack.c.l.b16 %v667
          %v683 = vunpack.c.l.b16 %v668
          %v684 = vpack.c.b16 %v681, %v680
          %v685 = vpack.c.b16 %v683, %v682
          %vm688 = vcmask 261120
          %v690 = vsel %vm688, %v664, 0
          %692 = vmatprep.subr.bf16.mxu0 0
          %693 = vmatpush1.bf16.msra.mxu0 %v684
          %694 = vmatprep.subr.bf16.mxu0 0
          %695 = vmatpush1.bf16.msra.mxu0 %v685
          %696 = vmatprep.subr.bf16.mxu0 0
          %697 = vmatpush1.bf16.msra.mxu0 0
          %698 = vmatprep.subr.bf16.mxu0 0
          %699 = vmatpush1.bf16.msra.mxu0 0
          %700 = vmatprep.subr.bf16.mxu0 0
          %701 = vmatpush1.bf16.msra.mxu0 0
          %702 = vmatprep.subr.bf16.mxu0 0
          %703 = vmatpush1.bf16.msra.mxu0 0
          %704 = vmatprep.subr.bf16.mxu0 0
          %705 = vmatpush1.bf16.msra.mxu0 0
          %706 = vmatprep.subr.bf16.mxu0 0
          %707 = vmatpush1.bf16.msra.mxu0 0
          %708 = vmatprep.subr.bf16.mxu0 0
          %709 = vmatpush1.bf16.msra.mxu0 0
          %710 = vmatprep.subr.bf16.mxu0 0
          %711 = vmatpush1.bf16.msra.mxu0 0
          %712 = vmatprep.subr.bf16.mxu0 0
          %713 = vmatpush1.bf16.msra.mxu0 0
          %714 = vmatprep.subr.bf16.mxu0 0
          %715 = vmatpush1.bf16.msra.mxu0 0
          %716 = vmatprep.subr.bf16.mxu0 0
          %717 = vmatpush1.bf16.msra.mxu0 0
          %718 = vmatprep.subr.bf16.mxu0 0
          %719 = vmatpush1.bf16.msra.mxu0 0
          %720 = vmatprep.subr.bf16.mxu0 0
          %721 = vmatpush1.bf16.msra.mxu0 0
          %722 = vmatprep.subr.bf16.mxu0 0
          %723 = vmatpush1.bf16.msra.mxu0 0
          %724 = vmatprep.mubr.bf16.mxu0 0
          %725 = vmatmul.mubr.bf16.gmra.mrb[0].mxu0 %v690
          %v726 = vpop.f32.mrb[0].mxu0
          %v727 = vadd.f32 %v674, %v726
          %v728 = vpop.f32.mrb[0].mxu0
          %v729 = vpop.f32.mrb[0].mxu0
          %v730 = vpop.f32.mrb[0].mxu0
          %731 = vdwg.mxu0
          %v732 = vld [vmem:[%s6] sm:$0xf]
          %v733 = vld [vmem:[%s6 + $0x4] sm:$0xf]
          %v734 = vld [vmem:[%s6 + $0x8] sm:$0xf]
          %v735 = vld [vmem:[%s6 + $0xc] sm:$0xf]
          %v736 = vld [vmem:[#allocation8] sm:$0x1]
          %v738 = vlaneseq
          %v739 = vshrl.u32 %v738, 7
          %v740 = vsub.s32 0, %v739
          %v741 = vrot.slane %v736, %v740
          %v747 = vunpack.c.l.b16 %v732
          %v748 = vunpack.c.l.b16 %v733
          %v749 = vunpack.c.l.b16 %v734
          %v750 = vunpack.c.l.b16 %v735
          %v751 = vpack.c.b16 %v748, %v747
          %v752 = vpack.c.b16 %v750, %v749
          %755 = vmatprep.subr.bf16.mxu0 0
          %756 = vmatpush1.bf16.msra.mxu0 %v751
          %757 = vmatprep.subr.bf16.mxu0 0
          %758 = vmatpush1.bf16.msra.mxu0 %v752
          %759 = vmatprep.subr.bf16.mxu0 0
          %760 = vmatpush1.bf16.msra.mxu0 0
          %761 = vmatprep.subr.bf16.mxu0 0
          %762 = vmatpush1.bf16.msra.mxu0 0
          %763 = vmatprep.subr.bf16.mxu0 0
          %764 = vmatpush1.bf16.msra.mxu0 0
          %765 = vmatprep.subr.bf16.mxu0 0
          %766 = vmatpush1.bf16.msra.mxu0 0
          %767 = vmatprep.subr.bf16.mxu0 0
          %768 = vmatpush1.bf16.msra.mxu0 0
          %769 = vmatprep.subr.bf16.mxu0 0
          %770 = vmatpush1.bf16.msra.mxu0 0
          %771 = vmatprep.subr.bf16.mxu0 0
          %772 = vmatpush1.bf16.msra.mxu0 0
          %773 = vmatprep.subr.bf16.mxu0 0
          %774 = vmatpush1.bf16.msra.mxu0 0
          %775 = vmatprep.subr.bf16.mxu0 0
          %776 = vmatpush1.bf16.msra.mxu0 0
          %777 = vmatprep.subr.bf16.mxu0 0
          %778 = vmatpush1.bf16.msra.mxu0 0
          %779 = vmatprep.subr.bf16.mxu0 0
          %780 = vmatpush1.bf16.msra.mxu0 0
          %781 = vmatprep.subr.bf16.mxu0 0
          %782 = vmatpush1.bf16.msra.mxu0 0
          %783 = vmatprep.subr.bf16.mxu0 0
          %784 = vmatpush1.bf16.msra.mxu0 0
          %785 = vmatprep.subr.bf16.mxu0 0
          %786 = vmatpush1.bf16.msra.mxu0 0
          %787 = vmatprep.mubr.bf16.mxu0 0
          %788 = vmatmul.mubr.bf16.gmra.mrb[0].mxu0 %v690
          %v789 = vpop.f32.mrb[0].mxu0
          %v790 = vadd.f32 %v741, %v789
          %v791 = vpop.f32.mrb[0].mxu0
          %v792 = vpop.f32.mrb[0].mxu0
          %v793 = vpop.f32.mrb[0].mxu0
          %794 = vdwg.mxu0
          %v795 = vpack.c.bf16 %v727, %v727
          %vm796 = vcmask 257024
          %797 = vst.msk [vmem:[#allocation2] sm:$0xf] %vm796, %v795
          %v798 = vpack.c.bf16 %v790, %v790
          %799 = vst.msk [vmem:[#allocation3] sm:$0xf] %vm796, %v798
        $region108: #{tpu_custom_call.1} parent=91 // pred_fallthru
          _
        %v800 = vpack.c.bf16 %v659, %v659
        %v801 = vld [vmem:[%s2] sm:$0xf]
        %v802 = vld [vmem:[%s2 + $0x4] sm:$0xf]
        %v803 = vld [vmem:[%s2 + $0x8] sm:$0xf]
        %v804 = vld [vmem:[%s2 + $0xc] sm:$0xf]
        %v805 = vld [vmem:[%s3] sm:$0x1]
        %v807 = vlaneseq
        %v808 = vshrl.u32 %v807, 7
        %v809 = vsub.s32 0, %v808
        %v810 = vrot.slane %v805, %v809
        %v816 = vunpack.c.l.b16 %v801
        %v817 = vunpack.c.l.b16 %v802
        %v818 = vunpack.c.l.b16 %v803
        %v819 = vunpack.c.l.b16 %v804
        %v820 = vpack.c.b16 %v817, %v816
        %v821 = vpack.c.b16 %v819, %v818
        %vm824 = vcmask 261120
        %v826 = vsel %vm824, %v800, 0
        %828 = vmatprep.subr.bf16.mxu0 0
        %829 = vmatpush1.bf16.msra.mxu0 %v820
        %830 = vmatprep.subr.bf16.mxu0 0
        %831 = vmatpush1.bf16.msra.mxu0 %v821
        %832 = vmatprep.subr.bf16.mxu0 0
        %833 = vmatpush1.bf16.msra.mxu0 0
        %834 = vmatprep.subr.bf16.mxu0 0
        %835 = vmatpush1.bf16.msra.mxu0 0
        %836 = vmatprep.subr.bf16.mxu0 0
        %837 = vmatpush1.bf16.msra.mxu0 0
        %838 = vmatprep.subr.bf16.mxu0 0
        %839 = vmatpush1.bf16.msra.mxu0 0
        %840 = vmatprep.subr.bf16.mxu0 0
        %841 = vmatpush1.bf16.msra.mxu0 0
        %842 = vmatprep.subr.bf16.mxu0 0
        %843 = vmatpush1.bf16.msra.mxu0 0
        %844 = vmatprep.subr.bf16.mxu0 0
        %845 = vmatpush1.bf16.msra.mxu0 0
        %846 = vmatprep.subr.bf16.mxu0 0
        %847 = vmatpush1.bf16.msra.mxu0 0
        %848 = vmatprep.subr.bf16.mxu0 0
        %849 = vmatpush1.bf16.msra.mxu0 0
        %850 = vmatprep.subr.bf16.mxu0 0
        %851 = vmatpush1.bf16.msra.mxu0 0
        %852 = vmatprep.subr.bf16.mxu0 0
        %853 = vmatpush1.bf16.msra.mxu0 0
        %854 = vmatprep.subr.bf16.mxu0 0
        %855 = vmatpush1.bf16.msra.mxu0 0
        %856 = vmatprep.subr.bf16.mxu0 0
        %857 = vmatpush1.bf16.msra.mxu0 0
        %858 = vmatprep.subr.bf16.mxu0 0
        %859 = vmatpush1.bf16.msra.mxu0 0
        %860 = vmatprep.mubr.bf16.mxu0 0
        %861 = vmatmul.mubr.bf16.gmra.mrb[0].mxu0 %v826
        %v862 = vpop.f32.mrb[0].mxu0
        %v863 = vadd.f32 %v810, %v862
        %v864 = vpop.f32.mrb[0].mxu0
        %v865 = vpop.f32.mrb[0].mxu0
        %v866 = vpop.f32.mrb[0].mxu0
        %867 = vdwg.mxu0
        %v868 = vmul.f32 %v863, 0.35355338
        %v869 = vpack.c.bf16 %v868, %v868
        %v870 = vld [vmem:[#allocation2] sm:$0xf]
        %v871 = vld [vmem:[#allocation3] sm:$0xf]
        %vm872 = vcmask 64512
        %v874 = vsel %vm872, %v869, 0
        %v877 = vsel %vm872, %v870, 0
        %879 = vmatprep.subr.bf16.mxu0 0
        %880 = vmatpush1.bf16.xpose.msra.mxu0 %v877
        %881 = vmatprep.subr.bf16.mxu0 0
        %882 = vmatpush1.bf16.xpose.msra.mxu0 0
        %883 = vmatprep.subr.bf16.mxu0 0
        %884 = vmatpush1.bf16.xpose.msra.mxu0 0
        %885 = vmatprep.subr.bf16.mxu0 0
        %886 = vmatpush1.bf16.xpose.msra.mxu0 0
        %887 = vmatprep.subr.bf16.mxu0 0
        %888 = vmatpush1.bf16.xpose.msra.mxu0 0
        %889 = vmatprep.subr.bf16.mxu0 0
        %890 = vmatpush1.bf16.xpose.msra.mxu0 0
        %891 = vmatprep.subr.bf16.mxu0 0
        %892 = vmatpush1.bf16.xpose.msra.mxu0 0
        %893 = vmatprep.subr.bf16.mxu0 0
        %894 = vmatpush1.bf16.xpose.msra.mxu0 0
        %895 = vmatprep.subr.bf16.mxu0 0
        %896 = vmatpush1.bf16.xpose.msra.mxu0 0
        %897 = vmatprep.subr.bf16.mxu0 0
        %898 = vmatpush1.bf16.xpose.msra.mxu0 0
        %899 = vmatprep.subr.bf16.mxu0 0
        %900 = vmatpush1.bf16.xpose.msra.mxu0 0
        %901 = vmatprep.subr.bf16.mxu0 0
        %902 = vmatpush1.bf16.xpose.msra.mxu0 0
        %903 = vmatprep.subr.bf16.mxu0 0
        %904 = vmatpush1.bf16.xpose.msra.mxu0 0
        %905 = vmatprep.subr.bf16.mxu0 0
        %906 = vmatpush1.bf16.xpose.msra.mxu0 0
        %907 = vmatprep.subr.bf16.mxu0 0
        %908 = vmatpush1.bf16.xpose.msra.mxu0 0
        %909 = vmatprep.subr.bf16.mxu0 0
        %910 = vmatpush1.bf16.xpose.msra.mxu0 0
        %911 = vmatprep.mubr.bf16.mxu0 0
        %912 = vmatmul.mubr.bf16.gmra.mrb[0].mxu0 %v874
        %v913 = vpop.f32.mrb[0].mxu0
        %v914 = vadd.f32 0.0, %v913
        %v915 = vpop.f32.mrb[0].mxu0
        %v916 = vpop.f32.mrb[0].mxu0
        %v917 = vpop.f32.mrb[0].mxu0
        %918 = vdwg.mxu0
        %v919 = vsel %vm872, %v914, -inf
        %920 = vmax.xlane.f32.xlu0 %v919
        %v921 = vpop.xlane.xlu0 %920
        %v922 = vsub.f32 %v914, %v921
        %v923 = vmul.f32 %v922, 1.442695
        %v924 = vpow.pop %v923
        %v925 = vsel %vm872, %v924, 0.0
        %926 = vadd.xlane.f32.xlu0 %v925
        %v927 = vpop.xlane.xlu0 %926
        %v928 = vrcp.pop %v927
        %v929 = vmul.f32 %v924, %v928
        %v930 = vpack.c.bf16 %v929, %v929
        %v932 = vsel %vm872, %v930, 0
        %vm934 = vcmask 1043456
        %v936 = vsel %vm934, %v871, 0
        %938 = vmatprep.subr.bf16.mxu0 0
        %939 = vmatpush1.bf16.msra.mxu0 %v936
        %940 = vmatprep.subr.bf16.mxu0 0
        %941 = vmatpush1.bf16.msra.mxu0 0
        %942 = vmatprep.subr.bf16.mxu0 0
        %943 = vmatpush1.bf16.msra.mxu0 0
        %944 = vmatprep.subr.bf16.mxu0 0
        %945 = vmatpush1.bf16.msra.mxu0 0
        %946 = vmatprep.subr.bf16.mxu0 0
        %947 = vmatpush1.bf16.msra.mxu0 0
        %948 = vmatprep.subr.bf16.mxu0 0
        %949 = vmatpush1.bf16.msra.mxu0 0
        %950 = vmatprep.subr.bf16.mxu0 0
        %951 = vmatpush1.bf16.msra.mxu0 0
        %952 = vmatprep.subr.bf16.mxu0 0
        %953 = vmatpush1.bf16.msra.mxu0 0
        %954 = vmatprep.subr.bf16.mxu0 0
        %955 = vmatpush1.bf16.msra.mxu0 0
        %956 = vmatprep.subr.bf16.mxu0 0
        %957 = vmatpush1.bf16.msra.mxu0 0
        %958 = vmatprep.subr.bf16.mxu0 0
        %959 = vmatpush1.bf16.msra.mxu0 0
        %960 = vmatprep.subr.bf16.mxu0 0
        %961 = vmatpush1.bf16.msra.mxu0 0
        %962 = vmatprep.subr.bf16.mxu0 0
        %963 = vmatpush1.bf16.msra.mxu0 0
        %964 = vmatprep.subr.bf16.mxu0 0
        %965 = vmatpush1.bf16.msra.mxu0 0
        %966 = vmatprep.subr.bf16.mxu0 0
        %967 = vmatpush1.bf16.msra.mxu0 0
        %968 = vmatprep.subr.bf16.mxu0 0
        %969 = vmatpush1.bf16.msra.mxu0 0
        %970 = vmatprep.mubr.bf16.mxu0 0
        %971 = vmatmul.mubr.bf16.gmra.mrb[0].mxu0 %v932
        %v972 = vpop.f32.mrb[0].mxu0
        %v973 = vadd.f32 0.0, %v972
        %v974 = vpop.f32.mrb[0].mxu0
        %v975 = vpop.f32.mrb[0].mxu0
        %v976 = vpop.f32.mrb[0].mxu0
        %977 = vdwg.mxu0
        %v978 = vpack.c.bf16 %v973, %v973
        %vm979 = vcmask 60416
        %980 = vst.msk [vmem:[#allocation4] sm:$0xf] %vm979, %v978
        %v981 = vld [vmem:[#allocation2] sm:$0xf]
        %v982 = vld [vmem:[#allocation3] sm:$0xf]
        %984 = vrot.lane.b32.xlu0 %v869, 120
        %v985 = vpop.permute.xlu0 %984
        %v987 = vunpack.c.l.b16 %v981
        %v988 = vpack.c.b16 %v987, %v987
        %989 = vrot.lane.b32.xlu0 %v988, 120
        %v990 = vpop.permute.xlu0 %989
        %v992 = vsel %vm872, %v985, 0
        %v995 = vsel %vm872, %v990, 0
        %997 = vmatprep.subr.bf16.mxu0 0
        %998 = vmatpush1.bf16.xpose.msra.mxu0 %v995
        %999 = vmatprep.subr.bf16.mxu0 0
        %1000 = vmatpush1.bf16.xpose.msra.mxu0 0
        %1001 = vmatprep.subr.bf16.mxu0 0
        %1002 = vmatpush1.bf16.xpose.msra.mxu0 0
        %1003 = vmatprep.subr.bf16.mxu0 0
        %1004 = vmatpush1.bf16.xpose.msra.mxu0 0
        %1005 = vmatprep.subr.bf16.mxu0 0
        %1006 = vmatpush1.bf16.xpose.msra.mxu0 0
        %1007 = vmatprep.subr.bf16.mxu0 0
        %1008 = vmatpush1.bf16.xpose.msra.mxu0 0
        %1009 = vmatprep.subr.bf16.mxu0 0
        %1010 = vmatpush1.bf16.xpose.msra.mxu0 0
        %1011 = vmatprep.subr.bf16.mxu0 0
        %1012 = vmatpush1.bf16.xpose.msra.mxu0 0
        %1013 = vmatprep.subr.bf16.mxu0 0
        %1014 = vmatpush1.bf16.xpose.msra.mxu0 0
        %1015 = vmatprep.subr.bf16.mxu0 0
        %1016 = vmatpush1.bf16.xpose.msra.mxu0 0
        %1017 = vmatprep.subr.bf16.mxu0 0
        %1018 = vmatpush1.bf16.xpose.msra.mxu0 0
        %1019 = vmatprep.subr.bf16.mxu0 0
        %1020 = vmatpush1.bf16.xpose.msra.mxu0 0
        %1021 = vmatprep.subr.bf16.mxu0 0
        %1022 = vmatpush1.bf16.xpose.msra.mxu0 0
        %1023 = vmatprep.subr.bf16.mxu0 0
        %1024 = vmatpush1.bf16.xpose.msra.mxu0 0
        %1025 = vmatprep.subr.bf16.mxu0 0
        %1026 = vmatpush1.bf16.xpose.msra.mxu0 0
        %1027 = vmatprep.subr.bf16.mxu0 0
        %1028 = vmatpush1.bf16.xpose.msra.mxu0 0
        %1029 = vmatprep.mubr.bf16.mxu0 0
        %1030 = vmatmul.mubr.bf16.gmra.mrb[0].mxu0 %v992
        %v1031 = vpop.f32.mrb[0].mxu0
        %v1032 = vadd.f32 0.0, %v1031
        %v1033 = vpop.f32.mrb[0].mxu0
        %v1034 = vpop.f32.mrb[0].mxu0
        %v1035 = vpop.f32.mrb[0].mxu0
        %1036 = vdwg.mxu0
        %v1037 = vsel %vm872, %v1032, -inf
        %1038 = vmax.xlane.f32.xlu0 %v1037
        %v1039 = vpop.xlane.xlu0 %1038
        %v1040 = vsub.f32 %v1032, %v1039
        %v1041 = vmul.f32 %v1040, 1.442695
        %v1042 = vpow.pop %v1041
        %v1043 = vsel %vm872, %v1042, 0.0
        %1044 = vadd.xlane.f32.xlu0 %v1043
        %v1045 = vpop.xlane.xlu0 %1044
        %v1046 = vrcp.pop %v1045
        %v1047 = vmul.f32 %v1042, %v1046
        %v1048 = vpack.c.bf16 %v1047, %v1047
        %v1050 = vunpack.c.l.b16 %v982
        %v1051 = vpack.c.b16 %v1050, %v1050
        %1052 = vrot.lane.b32.xlu0 %v1051, 120
        %v1053 = vpop.permute.xlu0 %1052
        %v1055 = vsel %vm872, %v1048, 0
        %v1058 = vsel %vm934, %v1053, 0
        %1060 = vmatprep.subr.bf16.mxu0 0
        %1061 = vmatpush1.bf16.msra.mxu0 %v1058
        %1062 = vmatprep.subr.bf16.mxu0 0
        %1063 = vmatpush1.bf16.msra.mxu0 0
        %1064 = vmatprep.subr.bf16.mxu0 0
        %1065 = vmatpush1.bf16.msra.mxu0 0
        %1066 = vmatprep.subr.bf16.mxu0 0
        %1067 = vmatpush1.bf16.msra.mxu0 0
        %1068 = vmatprep.subr.bf16.mxu0 0
        %1069 = vmatpush1.bf16.msra.mxu0 0
        %1070 = vmatprep.subr.bf16.mxu0 0
        %1071 = vmatpush1.bf16.msra.mxu0 0
        %1072 = vmatprep.subr.bf16.mxu0 0
        %1073 = vmatpush1.bf16.msra.mxu0 0
        %1074 = vmatprep.subr.bf16.mxu0 0
        %1075 = vmatpush1.bf16.msra.mxu0 0
        %1076 = vmatprep.subr.bf16.mxu0 0
        %1077 = vmatpush1.bf16.msra.mxu0 0
        %1078 = vmatprep.subr.bf16.mxu0 0
        %1079 = vmatpush1.bf16.msra.mxu0 0
        %1080 = vmatprep.subr.bf16.mxu0 0
        %1081 = vmatpush1.bf16.msra.mxu0 0
        %1082 = vmatprep.subr.bf16.mxu0 0
        %1083 = vmatpush1.bf16.msra.mxu0 0
        %1084 = vmatprep.subr.bf16.mxu0 0
        %1085 = vmatpush1.bf16.msra.mxu0 0
        %1086 = vmatprep.subr.bf16.mxu0 0
        %1087 = vmatpush1.bf16.msra.mxu0 0
        %1088 = vmatprep.subr.bf16.mxu0 0
        %1089 = vmatpush1.bf16.msra.mxu0 0
        %1090 = vmatprep.subr.bf16.mxu0 0
        %1091 = vmatpush1.bf16.msra.mxu0 0
        %1092 = vmatprep.mubr.bf16.mxu0 0
        %1093 = vmatmul.mubr.bf16.gmra.mrb[0].mxu0 %v1055
        %v1094 = vpop.f32.mrb[0].mxu0
        %v1095 = vadd.f32 0.0, %v1094
        %v1096 = vpop.f32.mrb[0].mxu0
        %v1097 = vpop.f32.mrb[0].mxu0
        %v1098 = vpop.f32.mrb[0].mxu0
        %1099 = vdwg.mxu0
        %v1100 = vpack.c.bf16 %v1095, %v1095
        %v1102 = vunpack.c.l.b16 %v1100
        %v1103 = vpack.c.b16 %v1102, %v1102
        %1104 = vrot.lane.b32.xlu0 %v1103, 8
        %v1105 = vpop.permute.xlu0 %1104
        %vm1107 = vcmask 126016
        %1108 = vst.msk [vmem:[#allocation4] sm:$0xf] %vm1107, %v1105
        %v1109 = vld [vmem:[#allocation2] sm:$0xf]
        %v1110 = vld [vmem:[#allocation3] sm:$0xf]
        %1111 = vrot.lane.b32.xlu0 %v869, 112
        %v1112 = vpop.permute.xlu0 %1111
        %v1114 = vunpack.c.l.b16 %v1109
        %v1115 = vpack.c.b16 %v1114, %v1114
        %1116 = vrot.lane.b32.xlu0 %v1115, 112
        %v1117 = vpop.permute.xlu0 %1116
        %v1119 = vsel %vm872, %v1112, 0
        %v1122 = vsel %vm872, %v1117, 0
        %1124 = vmatprep.subr.bf16.mxu0 0
        %1125 = vmatpush1.bf16.xpose.msra.mxu0 %v1122
        %1126 = vmatprep.subr.bf16.mxu0 0
        %1127 = vmatpush1.bf16.xpose.msra.mxu0 0
        %1128 = vmatprep.subr.bf16.mxu0 0
        %1129 = vmatpush1.bf16.xpose.msra.mxu0 0
        %1130 = vmatprep.subr.bf16.mxu0 0
        %1131 = vmatpush1.bf16.xpose.msra.mxu0 0
        %1132 = vmatprep.subr.bf16.mxu0 0
        %1133 = vmatpush1.bf16.xpose.msra.mxu0 0
        %1134 = vmatprep.subr.bf16.mxu0 0
        %1135 = vmatpush1.bf16.xpose.msra.mxu0 0
        %1136 = vmatprep.subr.bf16.mxu0 0
        %1137 = vmatpush1.bf16.xpose.msra.mxu0 0
        %1138 = vmatprep.subr.bf16.mxu0 0
        %1139 = vmatpush1.bf16.xpose.msra.mxu0 0
        %1140 = vmatprep.subr.bf16.mxu0 0
        %1141 = vmatpush1.bf16.xpose.msra.mxu0 0
        %1142 = vmatprep.subr.bf16.mxu0 0
        %1143 = vmatpush1.bf16.xpose.msra.mxu0 0
        %1144 = vmatprep.subr.bf16.mxu0 0
        %1145 = vmatpush1.bf16.xpose.msra.mxu0 0
        %1146 = vmatprep.subr.bf16.mxu0 0
        %1147 = vmatpush1.bf16.xpose.msra.mxu0 0
        %1148 = vmatprep.subr.bf16.mxu0 0
        %1149 = vmatpush1.bf16.xpose.msra.mxu0 0
        %1150 = vmatprep.subr.bf16.mxu0 0
        %1151 = vmatpush1.bf16.xpose.msra.mxu0 0
        %1152 = vmatprep.subr.bf16.mxu0 0
        %1153 = vmatpush1.bf16.xpose.msra.mxu0 0
        %1154 = vmatprep.subr.bf16.mxu0 0
        %1155 = vmatpush1.bf16.xpose.msra.mxu0 0
        %1156 = vmatprep.mubr.bf16.mxu0 0
        %1157 = vmatmul.mubr.bf16.gmra.mrb[0].mxu0 %v1119
        %v1158 = vpop.f32.mrb[0].mxu0
        %v1159 = vadd.f32 0.0, %v1158
        %v1160 = vpop.f32.mrb[0].mxu0
        %v1161 = vpop.f32.mrb[0].mxu0
        %v1162 = vpop.f32.mrb[0].mxu0
        %1163 = vdwg.mxu0
        %v1164 = vsel %vm872, %v1159, -inf
        %1165 = vmax.xlane.f32.xlu0 %v1164
        %v1166 = vpop.xlane.xlu0 %1165
        %v1167 = vsub.f32 %v1159, %v1166
        %v1168 = vmul.f32 %v1167, 1.442695
        %v1169 = vpow.pop %v1168
        %v1170 = vsel %vm872, %v1169, 0.0
        %1171 = vadd.xlane.f32.xlu0 %v1170
        %v1172 = vpop.xlane.xlu0 %1171
        %v1173 = vrcp.pop %v1172
        %v1174 = vmul.f32 %v1169, %v1173
        %v1175 = vpack.c.bf16 %v1174, %v1174
        %v1177 = vunpack.c.l.b16 %v1110
        %v1178 = vpack.c.b16 %v1177, %v1177
        %1179 = vrot.lane.b32.xlu0 %v1178, 112
        %v1180 = vpop.permute.xlu0 %1179
        %v1182 = vsel %vm872, %v1175, 0
        %v1185 = vsel %vm934, %v1180, 0
        %1187 = vmatprep.subr.bf16.mxu0 0
        %1188 = vmatpush1.bf16.msra.mxu0 %v1185
        %1189 = vmatprep.subr.bf16.mxu0 0
        %1190 = vmatpush1.bf16.msra.mxu0 0
        %1191 = vmatprep.subr.bf16.mxu0 0
        %1192 = vmatpush1.bf16.msra.mxu0 0
        %1193 = vmatprep.subr.bf16.mxu0 0
        %1194 = vmatpush1.bf16.msra.mxu0 0
        %1195 = vmatprep.subr.bf16.mxu0 0
        %1196 = vmatpush1.bf16.msra.mxu0 0
        %1197 = vmatprep.subr.bf16.mxu0 0
        %1198 = vmatpush1.bf16.msra.mxu0 0
        %1199 = vmatprep.subr.bf16.mxu0 0
        %1200 = vmatpush1.bf16.msra.mxu0 0
        %1201 = vmatprep.subr.bf16.mxu0 0
        %1202 = vmatpush1.bf16.msra.mxu0 0
        %1203 = vmatprep.subr.bf16.mxu0 0
        %1204 = vmatpush1.bf16.msra.mxu0 0
        %1205 = vmatprep.subr.bf16.mxu0 0
        %1206 = vmatpush1.bf16.msra.mxu0 0
        %1207 = vmatprep.subr.bf16.mxu0 0
        %1208 = vmatpush1.bf16.msra.mxu0 0
        %1209 = vmatprep.subr.bf16.mxu0 0
        %1210 = vmatpush1.bf16.msra.mxu0 0
        %1211 = vmatprep.subr.bf16.mxu0 0
        %1212 = vmatpush1.bf16.msra.mxu0 0
        %1213 = vmatprep.subr.bf16.mxu0 0
        %1214 = vmatpush1.bf16.msra.mxu0 0
        %1215 = vmatprep.subr.bf16.mxu0 0
        %1216 = vmatpush1.bf16.msra.mxu0 0
        %1217 = vmatprep.subr.bf16.mxu0 0
        %1218 = vmatpush1.bf16.msra.mxu0 0
        %1219 = vmatprep.mubr.bf16.mxu0 0
        %1220 = vmatmul.mubr.bf16.gmra.mrb[0].mxu0 %v1182
        %v1221 = vpop.f32.mrb[0].mxu0
        %v1222 = vadd.f32 0.0, %v1221
        %v1223 = vpop.f32.mrb[0].mxu0
        %v1224 = vpop.f32.mrb[0].mxu0
        %v1225 = vpop.f32.mrb[0].mxu0
        %1226 = vdwg.mxu0
        %v1227 = vpack.c.bf16 %v1222, %v1222
        %v1229 = vunpack.c.l.b16 %v1227
        %v1230 = vpack.c.b16 %v1229, %v1229
        %1231 = vrot.lane.b32.xlu0 %v1230, 16
        %v1232 = vpop.permute.xlu0 %1231
        %vm1234 = vcmask 191616
        %1235 = vst.msk [vmem:[#allocation4] sm:$0xf] %vm1234, %v1232
        %v1236 = vld [vmem:[#allocation2] sm:$0xf]
        %v1237 = vld [vmem:[#allocation3] sm:$0xf]
        %1238 = vrot.lane.b32.xlu0 %v869, 104
        %v1239 = vpop.permute.xlu0 %1238
        %v1241 = vunpack.c.l.b16 %v1236
        %v1242 = vpack.c.b16 %v1241, %v1241
        %1243 = vrot.lane.b32.xlu0 %v1242, 104
        %v1244 = vpop.permute.xlu0 %1243
        %v1246 = vsel %vm872, %v1239, 0
        %v1249 = vsel %vm872, %v1244, 0
        %1251 = vmatprep.subr.bf16.mxu0 0
        %1252 = vmatpush1.bf16.xpose.msra.mxu0 %v1249
        %1253 = vmatprep.subr.bf16.mxu0 0
        %1254 = vmatpush1.bf16.xpose.msra.mxu0 0
        %1255 = vmatprep.subr.bf16.mxu0 0
        %1256 = vmatpush1.bf16.xpose.msra.mxu0 0
        %1257 = vmatprep.subr.bf16.mxu0 0
        %1258 = vmatpush1.bf16.xpose.msra.mxu0 0
        %1259 = vmatprep.subr.bf16.mxu0 0
        %1260 = vmatpush1.bf16.xpose.msra.mxu0 0
        %1261 = vmatprep.subr.bf16.mxu0 0
        %1262 = vmatpush1.bf16.xpose.msra.mxu0 0
        %1263 = vmatprep.subr.bf16.mxu0 0
        %1264 = vmatpush1.bf16.xpose.msra.mxu0 0
        %1265 = vmatprep.subr.bf16.mxu0 0
        %1266 = vmatpush1.bf16.xpose.msra.mxu0 0
        %1267 = vmatprep.subr.bf16.mxu0 0
        %1268 = vmatpush1.bf16.xpose.msra.mxu0 0
        %1269 = vmatprep.subr.bf16.mxu0 0
        %1270 = vmatpush1.bf16.xpose.msra.mxu0 0
        %1271 = vmatprep.subr.bf16.mxu0 0
        %1272 = vmatpush1.bf16.xpose.msra.mxu0 0
        %1273 = vmatprep.subr.bf16.mxu0 0
        %1274 = vmatpush1.bf16.xpose.msra.mxu0 0
        %1275 = vmatprep.subr.bf16.mxu0 0
        %1276 = vmatpush1.bf16.xpose.msra.mxu0 0
        %1277 = vmatprep.subr.bf16.mxu0 0
        %1278 = vmatpush1.bf16.xpose.msra.mxu0 0
        %1279 = vmatprep.subr.bf16.mxu0 0
        %1280 = vmatpush1.bf16.xpose.msra.mxu0 0
        %1281 = vmatprep.subr.bf16.mxu0 0
        %1282 = vmatpush1.bf16.xpose.msra.mxu0 0
        %1283 = vmatprep.mubr.bf16.mxu0 0
        %1284 = vmatmul.mubr.bf16.gmra.mrb[0].mxu0 %v1246
        %v1285 = vpop.f32.mrb[0].mxu0
        %v1286 = vadd.f32 0.0, %v1285
        %v1287 = vpop.f32.mrb[0].mxu0
        %v1288 = vpop.f32.mrb[0].mxu0
        %v1289 = vpop.f32.mrb[0].mxu0
        %1290 = vdwg.mxu0
        %v1291 = vsel %vm872, %v1286, -inf
        %1292 = vmax.xlane.f32.xlu0 %v1291
        %v1293 = vpop.xlane.xlu0 %1292
        %v1294 = vsub.f32 %v1286, %v1293
        %v1295 = vmul.f32 %v1294, 1.442695
        %v1296 = vpow.pop %v1295
        %v1297 = vsel %vm872, %v1296, 0.0
        %1298 = vadd.xlane.f32.xlu0 %v1297
        %v1299 = vpop.xlane.xlu0 %1298
        %v1300 = vrcp.pop %v1299
        %v1301 = vmul.f32 %v1296, %v1300
        %v1302 = vpack.c.bf16 %v1301, %v1301
        %v1304 = vunpack.c.l.b16 %v1237
        %v1305 = vpack.c.b16 %v1304, %v1304
        %1306 = vrot.lane.b32.xlu0 %v1305, 104
        %v1307 = vpop.permute.xlu0 %1306
        %v1309 = vsel %vm872, %v1302, 0
        %v1312 = vsel %vm934, %v1307, 0
        %1314 = vmatprep.subr.bf16.mxu0 0
        %1315 = vmatpush1.bf16.msra.mxu0 %v1312
        %1316 = vmatprep.subr.bf16.mxu0 0
        %1317 = vmatpush1.bf16.msra.mxu0 0
        %1318 = vmatprep.subr.bf16.mxu0 0
        %1319 = vmatpush1.bf16.msra.mxu0 0
        %1320 = vmatprep.subr.bf16.mxu0 0
        %1321 = vmatpush1.bf16.msra.mxu0 0
        %1322 = vmatprep.subr.bf16.mxu0 0
        %1323 = vmatpush1.bf16.msra.mxu0 0
        %1324 = vmatprep.subr.bf16.mxu0 0
        %1325 = vmatpush1.bf16.msra.mxu0 0
        %1326 = vmatprep.subr.bf16.mxu0 0
        %1327 = vmatpush1.bf16.msra.mxu0 0
        %1328 = vmatprep.subr.bf16.mxu0 0
        %1329 = vmatpush1.bf16.msra.mxu0 0
        %1330 = vmatprep.subr.bf16.mxu0 0
        %1331 = vmatpush1.bf16.msra.mxu0 0
        %1332 = vmatprep.subr.bf16.mxu0 0
        %1333 = vmatpush1.bf16.msra.mxu0 0
        %1334 = vmatprep.subr.bf16.mxu0 0
        %1335 = vmatpush1.bf16.msra.mxu0 0
        %1336 = vmatprep.subr.bf16.mxu0 0
        %1337 = vmatpush1.bf16.msra.mxu0 0
        %1338 = vmatprep.subr.bf16.mxu0 0
        %1339 = vmatpush1.bf16.msra.mxu0 0
        %1340 = vmatprep.subr.bf16.mxu0 0
        %1341 = vmatpush1.bf16.msra.mxu0 0
        %1342 = vmatprep.subr.bf16.mxu0 0
        %1343 = vmatpush1.bf16.msra.mxu0 0
        %1344 = vmatprep.subr.bf16.mxu0 0
        %1345 = vmatpush1.bf16.msra.mxu0 0
        %1346 = vmatprep.mubr.bf16.mxu0 0
        %1347 = vmatmul.mubr.bf16.gmra.mrb[0].mxu0 %v1309
        %v1348 = vpop.f32.mrb[0].mxu0
        %v1349 = vadd.f32 0.0, %v1348
        %v1350 = vpop.f32.mrb[0].mxu0
        %v1351 = vpop.f32.mrb[0].mxu0
        %v1352 = vpop.f32.mrb[0].mxu0
        %1353 = vdwg.mxu0
        %v1354 = vpack.c.bf16 %v1349, %v1349
        %v1356 = vunpack.c.l.b16 %v1354
        %v1357 = vpack.c.b16 %v1356, %v1356
        %1358 = vrot.lane.b32.xlu0 %v1357, 24
        %v1359 = vpop.permute.xlu0 %1358
        %vm1361 = vcmask 257216
        %1362 = vst.msk [vmem:[#allocation4] sm:$0xf] %vm1361, %v1359
        %v1363 = vld [vmem:[#allocation4] sm:$0xf]
        %v1364 = vld [vmem:[%s8] sm:$0xf]
        %v1365 = vld [vmem:[%s8 + $0x4] sm:$0xf]
        %v1366 = vld [vmem:[%s8 + $0x8] sm:$0xf]
        %v1367 = vld [vmem:[%s8 + $0xc] sm:$0xf]
        %v1368 = vld [vmem:[#allocation10] sm:$0x1]
        %v1370 = vlaneseq
        %v1371 = vshrl.u32 %v1370, 7
        %v1372 = vsub.s32 0, %v1371
        %v1373 = vrot.slane %v1368, %v1372
        %v1379 = vunpack.c.l.b16 %v1364
        %v1380 = vunpack.c.l.b16 %v1365
        %v1381 = vunpack.c.l.b16 %v1366
        %v1382 = vunpack.c.l.b16 %v1367
        %v1383 = vpack.c.b16 %v1380, %v1379
        %v1384 = vpack.c.b16 %v1382, %v1381
        %v1388 = vsel %vm824, %v1363, 0
        %1390 = vmatprep.subr.bf16.mxu0 0
        %1391 = vmatpush1.bf16.msra.mxu0 %v1383
        %1392 = vmatprep.subr.bf16.mxu0 0
        %1393 = vmatpush1.bf16.msra.mxu0 %v1384
        %1394 = vmatprep.subr.bf16.mxu0 0
        %1395 = vmatpush1.bf16.msra.mxu0 0
        %1396 = vmatprep.subr.bf16.mxu0 0
        %1397 = vmatpush1.bf16.msra.mxu0 0
        %1398 = vmatprep.subr.bf16.mxu0 0
        %1399 = vmatpush1.bf16.msra.mxu0 0
        %1400 = vmatprep.subr.bf16.mxu0 0
        %1401 = vmatpush1.bf16.msra.mxu0 0
        %1402 = vmatprep.subr.bf16.mxu0 0
        %1403 = vmatpush1.bf16.msra.mxu0 0
        %1404 = vmatprep.subr.bf16.mxu0 0
        %1405 = vmatpush1.bf16.msra.mxu0 0
        %1406 = vmatprep.subr.bf16.mxu0 0
        %1407 = vmatpush1.bf16.msra.mxu0 0
        %1408 = vmatprep.subr.bf16.mxu0 0
        %1409 = vmatpush1.bf16.msra.mxu0 0
        %1410 = vmatprep.subr.bf16.mxu0 0
        %1411 = vmatpush1.bf16.msra.mxu0 0
        %1412 = vmatprep.subr.bf16.mxu0 0
        %1413 = vmatpush1.bf16.msra.mxu0 0
        %1414 = vmatprep.subr.bf16.mxu0 0
        %1415 = vmatpush1.bf16.msra.mxu0 0
        %1416 = vmatprep.subr.bf16.mxu0 0
        %1417 = vmatpush1.bf16.msra.mxu0 0
        %1418 = vmatprep.subr.bf16.mxu0 0
        %1419 = vmatpush1.bf16.msra.mxu0 0
        %1420 = vmatprep.subr.bf16.mxu0 0
        %1421 = vmatpush1.bf16.msra.mxu0 0
        %1422 = vmatprep.mubr.bf16.mxu0 0
        %1423 = vmatmul.mubr.bf16.gmra.mrb[0].mxu0 %v1388
        %v1424 = vpop.f32.mrb[0].mxu0
        %v1425 = vadd.f32 %v1373, %v1424
        %v1426 = vpop.f32.mrb[0].mxu0
        %v1427 = vpop.f32.mrb[0].mxu0
        %v1428 = vpop.f32.mrb[0].mxu0
        %1429 = vdwg.mxu0
        %v1430 = vadd.f32 %v1425, %v659
        %v1431 = vsel %vm824, %v1430, 0.0
        %1432 = vadd.xlane.f32.xlu0 %v1431
        %v1433 = vpop.xlane.xlu0 %1432
        %v1434 = vrcp.pop 32.0
        %v1435 = vmul.f32 %v1433, %v1434
        %v1436 = vmul.f32 %v1430, %v1430
        %v1437 = vsel %vm824, %v1436, 0.0
        %1438 = vadd.xlane.f32.xlu0 %v1437
        %v1439 = vpop.xlane.xlu0 %1438
        %v1440 = vmul.f32 %v1439, %v1434
        %v1441 = vmul.f32 %v1435, %v1435
        %v1442 = vsub.f32 %v1440, %v1441
        %v1443 = vmax.f32 %v1442, 0.0
        %v1444 = vsub.f32 %v1430, %v1435
        %v1445 = vadd.f32 %v1443, 1e-05
        %v1446 = vrsqrt.pop %v1445
        %v1447 = vmul.f32 %v1444, %v1446
        %v1448 = vld [vmem:[%s10] sm:$0x1]
        %v1450 = vlaneseq
        %v1451 = vshrl.u32 %v1450, 7
        %v1452 = vsub.s32 0, %v1451
        %v1453 = vrot.slane %v1448, %v1452
        %v1455 = vmul.f32 %v1447, %v1453
        %v1456 = vld [vmem:[%s11] sm:$0x1]
        %v1458 = vlaneseq
        %v1459 = vshrl.u32 %v1458, 7
        %v1460 = vsub.s32 0, %v1459
        %v1461 = vrot.slane %v1456, %v1460
        %v1463 = vadd.f32 %v1455, %v1461
        %v1464 = vpack.c.bf16 %v1463, %v1463
        %v1465 = vld [vmem:[%s12] sm:$0xf]
        %v1466 = vld [vmem:[%s12 + $0x4] sm:$0xf]
        %v1467 = vld [vmem:[%s12 + $0x8] sm:$0xf]
        %v1468 = vld [vmem:[%s12 + $0xc] sm:$0xf]
        %v1469 = vld [vmem:[%s13] sm:$0x1]
        %v1471 = vlaneseq
        %v1472 = vshrl.u32 %v1471, 7
        %v1473 = vsub.s32 0, %v1472
        %v1474 = vrot.slane %v1469, %v1473
        %v1480 = vunpack.c.l.b16 %v1465
        %v1481 = vunpack.c.l.b16 %v1466
        %v1482 = vunpack.c.l.b16 %v1467
        %v1483 = vunpack.c.l.b16 %v1468
        %v1484 = vpack.c.b16 %v1481, %v1480
        %v1485 = vpack.c.b16 %v1483, %v1482
        %v1489 = vsel %vm824, %v1464, 0
        %1491 = vmatprep.subr.bf16.mxu0 0
        %1492 = vmatpush1.bf16.msra.mxu0 %v1484
        %1493 = vmatprep.subr.bf16.mxu0 0
        %1494 = vmatpush1.bf16.msra.mxu0 %v1485
        %1495 = vmatprep.subr.bf16.mxu0 0
        %1496 = vmatpush1.bf16.msra.mxu0 0
        %1497 = vmatprep.subr.bf16.mxu0 0
        %1498 = vmatpush1.bf16.msra.mxu0 0
        %1499 = vmatprep.subr.bf16.mxu0 0
        %1500 = vmatpush1.bf16.msra.mxu0 0
        %1501 = vmatprep.subr.bf16.mxu0 0
        %1502 = vmatpush1.bf16.msra.mxu0 0
        %1503 = vmatprep.subr.bf16.mxu0 0
        %1504 = vmatpush1.bf16.msra.mxu0 0
        %1505 = vmatprep.subr.bf16.mxu0 0
        %1506 = vmatpush1.bf16.msra.mxu0 0
        %1507 = vmatprep.subr.bf16.mxu0 0
        %1508 = vmatpush1.bf16.msra.mxu0 0
        %1509 = vmatprep.subr.bf16.mxu0 0
        %1510 = vmatpush1.bf16.msra.mxu0 0
        %1511 = vmatprep.subr.bf16.mxu0 0
        %1512 = vmatpush1.bf16.msra.mxu0 0
        %1513 = vmatprep.subr.bf16.mxu0 0
        %1514 = vmatpush1.bf16.msra.mxu0 0
        %1515 = vmatprep.subr.bf16.mxu0 0
        %1516 = vmatpush1.bf16.msra.mxu0 0
        %1517 = vmatprep.subr.bf16.mxu0 0
        %1518 = vmatpush1.bf16.msra.mxu0 0
        %1519 = vmatprep.subr.bf16.mxu0 0
        %1520 = vmatpush1.bf16.msra.mxu0 0
        %1521 = vmatprep.subr.bf16.mxu0 0
        %1522 = vmatpush1.bf16.msra.mxu0 0
        %1523 = vmatprep.mubr.bf16.mxu0 0
        %1524 = vmatmul.mubr.bf16.gmra.mrb[0].mxu0 %v1489
        %v1525 = vpop.f32.mrb[0].mxu0
        %v1526 = vadd.f32 %v1474, %v1525
        %v1527 = vpop.f32.mrb[0].mxu0
        %v1528 = vpop.f32.mrb[0].mxu0
        %v1529 = vpop.f32.mrb[0].mxu0
        %1530 = vdwg.mxu0
        %v1531 = vmax.f32 %v1526, 0.0
        %v1532 = vpack.c.bf16 %v1531, %v1531
        %v1533 = vld [vmem:[%s14] sm:$0xf]
        %v1534 = vld [vmem:[%s14 + $0x4] sm:$0xf]
        %v1535 = vld [vmem:[%s14 + $0x8] sm:$0xf]
        %v1536 = vld [vmem:[%s14 + $0xc] sm:$0xf]
        %v1537 = vld [vmem:[%s14 + $0x10] sm:$0xf]
        %v1538 = vld [vmem:[%s14 + $0x14] sm:$0xf]
        %v1539 = vld [vmem:[%s14 + $0x18] sm:$0xf]
        %v1540 = vld [vmem:[%s14 + $0x1c] sm:$0xf]
        %v1541 = vld [vmem:[%s14 + $0x20] sm:$0xf]
        %v1542 = vld [vmem:[%s14 + $0x24] sm:$0xf]
        %v1543 = vld [vmem:[%s14 + $0x28] sm:$0xf]
        %v1544 = vld [vmem:[%s14 + $0x2c] sm:$0xf]
        %v1545 = vld [vmem:[%s14 + $0x30] sm:$0xf]
        %v1546 = vld [vmem:[%s14 + $0x34] sm:$0xf]
        %v1547 = vld [vmem:[%s14 + $0x38] sm:$0xf]
        %v1548 = vld [vmem:[%s14 + $0x3c] sm:$0xf]
        %v1549 = vld [vmem:[%s15] sm:$0x1]
        %v1551 = vlaneseq
        %v1552 = vshrl.u32 %v1551, 7
        %v1553 = vsub.s32 0, %v1552
        %v1554 = vrot.slane %v1549, %v1553
        %v1572 = vunpack.c.l.b16 %v1533
        %v1573 = vunpack.c.l.b16 %v1534
        %v1574 = vunpack.c.l.b16 %v1535
        %v1575 = vunpack.c.l.b16 %v1536
        %v1576 = vunpack.c.l.b16 %v1537
        %v1577 = vunpack.c.l.b16 %v1538
        %v1578 = vunpack.c.l.b16 %v1539
        %v1579 = vunpack.c.l.b16 %v1540
        %v1580 = vunpack.c.l.b16 %v1541
        %v1581 = vunpack.c.l.b16 %v1542
        %v1582 = vunpack.c.l.b16 %v1543
        %v1583 = vunpack.c.l.b16 %v1544
        %v1584 = vunpack.c.l.b16 %v1545
        %v1585 = vunpack.c.l.b16 %v1546
        %v1586 = vunpack.c.l.b16 %v1547
        %v1587 = vunpack.c.l.b16 %v1548
        %v1588 = vpack.c.b16 %v1573, %v1572
        %v1589 = vpack.c.b16 %v1575, %v1574
        %v1590 = vpack.c.b16 %v1577, %v1576
        %v1591 = vpack.c.b16 %v1579, %v1578
        %v1592 = vpack.c.b16 %v1581, %v1580
        %v1593 = vpack.c.b16 %v1583, %v1582
        %v1594 = vpack.c.b16 %v1585, %v1584
        %v1595 = vpack.c.b16 %v1587, %v1586
        %1604 = vmatprep.subr.bf16.mxu0 0
        %1605 = vmatpush1.bf16.msra.mxu0 %v1588
        %1606 = vmatprep.subr.bf16.mxu0 0
        %1607 = vmatpush1.bf16.msra.mxu0 %v1589
        %1608 = vmatprep.subr.bf16.mxu0 0
        %1609 = vmatpush1.bf16.msra.mxu0 %v1590
        %1610 = vmatprep.subr.bf16.mxu0 0
        %1611 = vmatpush1.bf16.msra.mxu0 %v1591
        %1612 = vmatprep.subr.bf16.mxu0 0
        %1613 = vmatpush1.bf16.msra.mxu0 %v1592
        %1614 = vmatprep.subr.bf16.mxu0 0
        %1615 = vmatpush1.bf16.msra.mxu0 %v1593
        %1616 = vmatprep.subr.bf16.mxu0 0
        %1617 = vmatpush1.bf16.msra.mxu0 %v1594
        %1618 = vmatprep.subr.bf16.mxu0 0
        %1619 = vmatpush1.bf16.msra.mxu0 %v1595
        %1620 = vmatprep.subr.bf16.mxu0 0
        %1621 = vmatpush1.bf16.msra.mxu0 0
        %1622 = vmatprep.subr.bf16.mxu0 0
        %1623 = vmatpush1.bf16.msra.mxu0 0
        %1624 = vmatprep.subr.bf16.mxu0 0
        %1625 = vmatpush1.bf16.msra.mxu0 0
        %1626 = vmatprep.subr.bf16.mxu0 0
        %1627 = vmatpush1.bf16.msra.mxu0 0
        %1628 = vmatprep.subr.bf16.mxu0 0
        %1629 = vmatpush1.bf16.msra.mxu0 0
        %1630 = vmatprep.subr.bf16.mxu0 0
        %1631 = vmatpush1.bf16.msra.mxu0 0
        %1632 = vmatprep.subr.bf16.mxu0 0
        %1633 = vmatpush1.bf16.msra.mxu0 0
        %1634 = vmatprep.subr.bf16.mxu0 0
        %1635 = vmatpush1.bf16.msra.mxu0 0
        %1636 = vmatprep.mubr.bf16.mxu0 0
        %1637 = vmatmul.mubr.bf16.gmra.mrb[0].mxu0 %v1532
        %v1638 = vpop.f32.mrb[0].mxu0
        %v1639 = vadd.f32 %v1554, %v1638
        %v1640 = vpop.f32.mrb[0].mxu0
        %v1641 = vpop.f32.mrb[0].mxu0
        %v1642 = vpop.f32.mrb[0].mxu0
        %1643 = vdwg.mxu0
        %v1644 = vadd.f32 %v1639, %v1463
        %v1645 = vsel %vm824, %v1644, 0.0
        %1646 = vadd.xlane.f32.xlu0 %v1645
        %v1647 = vpop.xlane.xlu0 %1646
        %v1648 = vmul.f32 %v1647, %v1434
        %v1649 = vmul.f32 %v1644, %v1644
        %v1650 = vsel %vm824, %v1649, 0.0
        %1651 = vadd.xlane.f32.xlu0 %v1650
        %v1652 = vpop.xlane.xlu0 %1651
        %v1653 = vmul.f32 %v1652, %v1434
        %v1654 = vmul.f32 %v1648, %v1648
        %v1655 = vsub.f32 %v1653, %v1654
        %v1656 = vmax.f32 %v1655, 0.0
        %v1657 = vsub.f32 %v1644, %v1648
        %v1658 = vadd.f32 %v1656, 1e-05
        %v1659 = vrsqrt.pop %v1658
        %v1660 = vmul.f32 %v1657, %v1659
        %v1661 = vld [vmem:[%s16] sm:$0x1]
        %v1663 = vlaneseq
        %v1664 = vshrl.u32 %v1663, 7
        %v1665 = vsub.s32 0, %v1664
        %v1666 = vrot.slane %v1661, %v1665
        %v1668 = vmul.f32 %v1660, %v1666
        %v1669 = vld [vmem:[%s17] sm:$0x1]
        %v1671 = vlaneseq
        %v1672 = vshrl.u32 %v1671, 7
        %v1673 = vsub.s32 0, %v1672
        %v1674 = vrot.slane %v1669, %v1673
        %v1676 = vadd.f32 %v1668, %v1674
        %1677 = vst.msk [vmem:[%s650] sm:$0xff] %vm824, %v1676
        %s1678 = sand.u32 %s448, 1
        %s1679 = scalar_lea.sflag [#allocation7], %s1678
        %s1680 = sand.u32 %s448, 1
        %s1681 = smul.addr %s1680, 8
        %s1682 = scalar_lea.vmem [#allocation11], %s1681
        // Predicated region
        $region109: #{tpu_custom_call.1} parent=91 // pred_check
          %p1683 = pneg %p458
        $region110: #{tpu_custom_call.1} parent=91 // pred_check_branch
          %1685 = sbr.rel (%p1683) target = $region112
        $region111: #{tpu_custom_call.1} parent=91 // pred_region
          %s1687 = ssub.s32 128, 128
          %1688 = vsyncadd %s1679, %s1687
          %s1689 = sadd.s32 %s41, %s40
          %s1690 = smul.addr %s1689, 128
          %s1691 = scalar_lea.hbm %s18, %s1690
          %s1693 = sshll.u32 %s1682, 4
          %s1694 = int_to_ptr.vmem [resolvable:$true] %s1693
          %1696 = dma.vmem_to_hbm [thread:$0]  %s1694, 128, %s1691, %s1679
        $region112: #{tpu_custom_call.1} parent=91 // pred_fallthru
          _
      $region92: #{tpu_custom_call.1} parent=5 // pred_fallthru
        _
      %p1697 = scmp.le.s32.totalorder 2, %s31
      // Predicated region
      $region113: #{tpu_custom_call.1} parent=5 // pred_check
        %p1698 = pneg %p1697
      $region114: #{tpu_custom_call.1} parent=5 // pred_check_branch
        %1700 = sbr.rel (%p1698) target = $region116
      $region115: #{tpu_custom_call.1} parent=5 // pred_region
        %s1701 = ssub.s32 %s31, 2
        // Predicated region
        $region117: #{tpu_custom_call.1} parent=115 // pred_check
          %p1702 = pneg %p464
        $region118: #{tpu_custom_call.1} parent=115 // pred_check_branch
          %1704 = sbr.rel (%p1702) target = $region120
        $region119: #{tpu_custom_call.1} parent=115 // pred_region
          %s1705 = sand.u32 %s449, 1
          %s1706 = scalar_lea.sflag [#allocation7], %s1705
          %s1707 = sand.u32 %s449, 1
          %s1708 = smul.addr %s1707, 8
          %s1709 = scalar_lea.vmem [#allocation11], %s1708
          %1710 = dma.done %s1706, 128
        $region120: #{tpu_custom_call.1} parent=115 // pred_fallthru
          _
      $region116: #{tpu_custom_call.1} parent=5 // pred_fallthru
        _
    $region6: #{tpu_custom_call.1} parent=1 // loop_footer
      %s35 = sadd.s32 1, %s31
    $region7: #{tpu_custom_call.1} parent=1 // loop_footer_branch
      %30 = sbr.rel target = $region3
    $region8: #{tpu_custom_call.1} parent=1 // loop_exit
      _
    %1711 = vsyncpa [#allocation6], 1
    %s1712 = scalar_lea.sflag [#allocation6], 1
    %1713 = vsyncpa %s1712, 1
    %1714 = vsyncpa [#allocation9], 1
    %1715 = vsyncpa [#allocation7], 1
    %s1716 = scalar_lea.sflag [#allocation7], 1
    %1717 = vsyncpa %s1716, 1

// kernel: tpu_custom_call.1
$region0: #{tpu_custom_call.1}
  #allocation0 [shape = 'u32[]', space=smem, size = 0x4, offset = 0x4, fixed_abs, tag = 'smem constant byte address 0x4 - core index']
  #allocation1 [shape = 'u32[144,128]{1,0:T(1,128)}', space=vmem, size = 0x12000, scoped, tag = 'internal scratch']
  #allocation2 [shape = 'bf16[8,32]{1,0:T(8,128)(2,1)}', space=vmem, size = 0x800, scoped, tag = 'scratch operand']
  #allocation3 [shape = 'bf16[8,32]{1,0:T(8,128)(2,1)}', space=vmem, size = 0x800, scoped, tag = 'scratch operand']
  #allocation4 [shape = 'bf16[8,32]{1,0:T(8,128)(2,1)}', space=vmem, size = 0x800, scoped, tag = 'scratch operand']
  %s0 = inlined_call_operand.vmem [shape: f32[2,8,32], index: 0, kind: input, shape index: {}]
  %s1 = inlined_call_operand.hbm [shape: bf16[2,8,32], index: 1, kind: input, shape index: {}]
  %s2 = inlined_call_operand.vmem [shape: bf16[32,32], index: 2, kind: input, shape index: {}]
  %s3 = inlined_call_operand.vmem [shape: f32[1,32], index: 3, kind: input, shape index: {}]
  %s4 = inlined_call_operand.vmem [shape: bf16[32,32], index: 4, kind: input, shape index: {}]
  %s5 = inlined_call_operand.vmem [shape: f32[1,32], index: 5, kind: input, shape index: {}]
  %s6 = inlined_call_operand.vmem [shape: bf16[32,32], index: 6, kind: input, shape index: {}]
  %s7 = inlined_call_operand.hbm [shape: f32[1,32], index: 7, kind: input, shape index: {}]
  %s8 = inlined_call_operand.vmem [shape: bf16[32,32], index: 8, kind: input, shape index: {}]
  %s9 = inlined_call_operand.hbm [shape: f32[1,32], index: 9, kind: input, shape index: {}]
  %s10 = inlined_call_operand.vmem [shape: f32[1,32], index: 10, kind: input, shape index: {}]
  %s11 = inlined_call_operand.vmem [shape: f32[1,32], index: 11, kind: input, shape index: {}]
  %s12 = inlined_call_operand.vmem [shape: bf16[32,128], index: 12, kind: input, shape index: {}]
  %s13 = inlined_call_operand.vmem [shape: f32[1,128], index: 13, kind: input, shape index: {}]
  %s14 = inlined_call_operand.vmem [shape: bf16[128,32], index: 14, kind: input, shape index: {}]
  %s15 = inlined_call_operand.vmem [shape: f32[1,32], index: 15, kind: input, shape index: {}]
  %s16 = inlined_call_operand.vmem [shape: f32[1,32], index: 16, kind: input, shape index: {}]
  %s17 = inlined_call_operand.vmem [shape: f32[1,32], index: 17, kind: input, shape index: {}]
  %s18 = inlined_call_operand.hbm [shape: f32[2,8,32], index: 18, kind: output, shape index: {}]
  %s19 = sld [smem:[#allocation0]]
  $region121: #{tpu_custom_call.1} parent=0
    _
  %s21 = ssub.s32 1, %s19
  %s22 = scalar_select 0, %s21, %s19
  $region1: #{tpu_custom_call.1} parent=0
    #allocation5 [shape = 'u8[4096]{0}', space=vmem, size = 0x1000, scoped, tag = 'input window, operand 1']
    #allocation6 [shape = 's32[2]{0}', space=sflag, size = 0x8, scoped, tag = 'scoped memory for tpu_custom_call.1']
    #allocation7 [shape = 's32[2]{0}', space=sflag, size = 0x8, scoped, tag = 'scoped memory for tpu_custom_call.1']
    #allocation8 [shape = 'u8[512]{0}', space=vmem, size = 0x400, scoped, tag = 'input window, operand 7, single buffered']
    #allocation9 [shape = 's32[1]{0}', space=sflag, size = 0x4, scoped, tag = 'scoped memory for tpu_custom_call.1']
    #allocation10 [shape = 'u8[512]{0}', space=vmem, size = 0x400, scoped, tag = 'input window, operand 9, single buffered']
    #allocation11 [shape = 'u8[8192]{0}', space=vmem, size = 0x2000, scoped, tag = 'output window, operand 0']
    %23 = vsyncpa [#allocation6], 0
    %s24 = scalar_lea.sflag [#allocation6], 1
    %25 = vsyncpa %s24, 0
    %26 = vsyncpa [#allocation9], 0
    %27 = vsyncpa [#allocation7], 0
    %s28 = scalar_lea.sflag [#allocation7], 1
    %29 = vsyncpa %s28, 0
    loop: start=0, step=1, limit=4
    $region2: #{tpu_custom_call.1} parent=1 // loop_pre_header
      _
    $region3: #{tpu_custom_call.1} parent=1 // loop_header
      %s31 = sphi 0, %s35
      %p32 = scmp.ge.s32.totalorder %s31, 4
      %s38 = sphi 0, %s50
      %s39 = sphi 0, %s46
      %s40 = sphi 0, %s38
      %s41 = sphi 0, %s39
      %s42 = sphi 0, %s40
      %s43 = sphi 0, %s41
      %s55 = sphi 0, %s57
      %s58 = sphi 0, %s55
      %s59 = sphi 0, %s58
      %s75 = sphi 0, %s59
      %s81 = sphi 0, %s83
      %s84 = sphi 0, %s81
      %s85 = sphi 0, %s84
      %s101 = sphi 0, %s85
      %s105 = sphi 0, %s105
      %s107 = sphi 0, %s105
      %s108 = sphi 0, %s107
      %s122 = sphi 0, %s108
      %s126 = sphi 0, %s126
      %s128 = sphi 0, %s126
      %s129 = sphi 0, %s128
      %s143 = sphi 0, %s129
      %s147 = sphi 0, %s147
      %s149 = sphi 0, %s147
      %s150 = sphi 0, %s149
      %s164 = sphi 0, %s150
      %s168 = sphi 0, %s168
      %s170 = sphi 0, %s168
      %s171 = sphi 0, %s170
      %s185 = sphi 0, %s171
      %s189 = sphi 0, %s189
      %s191 = sphi 0, %s189
      %s192 = sphi 0, %s191
      %s206 = sphi 0, %s192
      %s210 = sphi 0, %s210
      %s212 = sphi 0, %s210
      %s213 = sphi 0, %s212
      %s227 = sphi 0, %s213
      %s231 = sphi 0, %s231
      %s233 = sphi 0, %s231
      %s234 = sphi 0, %s233
      %s248 = sphi 0, %s234
      %s252 = sphi 0, %s252
      %s254 = sphi 0, %s252
      %s255 = sphi 0, %s254
      %s269 = sphi 0, %s255
      %s273 = sphi 0, %s273
      %s275 = sphi 0, %s273
      %s276 = sphi 0, %s275
      %s290 = sphi 0, %s276
      %s294 = sphi 0, %s294
      %s296 = sphi 0, %s294
      %s297 = sphi 0, %s296
      %s311 = sphi 0, %s297
      %s315 = sphi 0, %s315
      %s317 = sphi 0, %s315
      %s318 = sphi 0, %s317
      %s332 = sphi 0, %s318
      %s336 = sphi 0, %s336
      %s338 = sphi 0, %s336
      %s339 = sphi 0, %s338
      %s353 = sphi 0, %s339
      %s357 = sphi 0, %s357
      %s359 = sphi 0, %s357
      %s360 = sphi 0, %s359
      %s374 = sphi 0, %s360
      %s378 = sphi 0, %s378
      %s380 = sphi 0, %s378
      %s381 = sphi 0, %s380
      %s395 = sphi 0, %s381
      %s399 = sphi 0, %s399
      %s401 = sphi 0, %s399
      %s402 = sphi 0, %s401
      %s416 = sphi 0, %s402
      %s420 = sphi 0, %s420
      %s422 = sphi 0, %s420
      %s423 = sphi 0, %s422
      %s437 = sphi 0, %s423
      %s445 = sphi 0, %s447
      %s448 = sphi 0, %s445
      %s449 = sphi 0, %s448
      %s465 = sphi 0, %s449
    $region4: #{tpu_custom_call.1} parent=1 // loop_header_branch
      %34 = sbr.rel (%p32) target = $region8
    $region5: #{tpu_custom_call.1} parent=1 // loop_body
      %s36 = ssub.s32 %s31, 1
      %s37 = ssub.s32 %s31, 2
      %s44 = sadd.s32 1, %s39
      %p45 = scmp.ge.s32.totalorder %s44, 1
      %s46 = scalar_select %p45, 0, %s44
      %s47 = sadd.s32 1, %s38
      %s48 = scalar_select %p45, %s47, %s38
      %p49 = scmp.ge.s32.totalorder %s48, 2
      %s50 = scalar_select %p49, 0, %s48
      %s51 = ssub.s32 %s38, %s50
      %s52 = ssub.s32 %s39, %s46
      %s53 = sor.u32 %s51, %s52
      %p54 = scmp.eq.s32.totalorder %s53, 0
      %s56 = sadd.s32 %s55, 1
      %s57 = scalar_select %p54, %s55, %s56
      %p60 = pneg %p54
      %p61 = scmp.eq.s32.totalorder %s31, 1
      %p62 = por %p60, %p61
      %p63 = scmp.ne.s32.totalorder %s55, %s58
      %p64 = scmp.eq.s32.totalorder %s31, 0
      %p65 = por %p63, %p64
      %p66 = scmp.ne.s32.totalorder %s55, %s58
      %p67 = scmp.eq.s32.totalorder %s36, 1
      %p68 = por %p66, %p67
      %p69 = scmp.ne.s32.totalorder %s58, %s59
      %p70 = scmp.eq.s32.totalorder %s36, 0
      %p71 = por %p69, %p70
      %p72 = scmp.ne.s32.totalorder %s58, %s59
      %p73 = scmp.eq.s32.totalorder %s37, 1
      %p74 = por %p72, %p73
      %p76 = scmp.ne.s32.totalorder %s59, %s75
      %p77 = scmp.eq.s32.totalorder %s37, 0
      %p78 = por %p76, %p77
      %s79 = ssub.s32 %s38, %s50
      %p80 = scmp.eq.s32.totalorder %s79, 0
      %s82 = sadd.s32 %s81, 1
      %s83 = scalar_select %p80, %s81, %s82
      %p86 = pneg %p80
      %p87 = scmp.eq.s32.totalorder %s31, 1
      %p88 = por %p86, %p87
      %p89 = scmp.ne.s32.totalorder %s81, %s84
      %p90 = scmp.eq.s32.totalorder %s31, 0
      %p91 = por %p89, %p90
      %p92 = scmp.ne.s32.totalorder %s81, %s84
      %p93 = scmp.eq.s32.totalorder %s36, 1
      %p94 = por %p92, %p93
      %p95 = scmp.ne.s32.totalorder %s84, %s85
      %p96 = scmp.eq.s32.totalorder %s36, 0
      %p97 = por %p95, %p96
      %p98 = scmp.ne.s32.totalorder %s84, %s85
      %p99 = scmp.eq.s32.totalorder %s37, 1
      %p100 = por %p98, %p99
      %p102 = scmp.ne.s32.totalorder %s85, %s101
      %p103 = scmp.eq.s32.totalorder %s37, 0
      %p104 = por %p102, %p103
      %s106 = sadd.s32 %s105, 1
      %p109 = scmp.eq.s32.totalorder %s31, 1
      %p110 = scmp.ne.s32.totalorder %s105, %s107
      %p111 = scmp.eq.s32.totalorder %s31, 0
      %p112 = por %p110, %p111
      %p113 = scmp.ne.s32.totalorder %s105, %s107
      %p114 = scmp.eq.s32.totalorder %s36, 1
      %p115 = por %p113, %p114
      %p116 = scmp.ne.s32.totalorder %s107, %s108
      %p117 = scmp.eq.s32.totalorder %s36, 0
      %p118 = por %p116, %p117
      %p119 = scmp.ne.s32.totalorder %s107, %s108
      %p120 = scmp.eq.s32.totalorder %s37, 1
      %p121 = por %p119, %p120
      %p123 = scmp.ne.s32.totalorder %s108, %s122
      %p124 = scmp.eq.s32.totalorder %s37, 0
      %p125 = por %p123, %p124
      %s127 = sadd.s32 %s126, 1
      %p130 = scmp.eq.s32.totalorder %s31, 1
      %p131 = scmp.ne.s32.totalorder %s126, %s128
      %p132 = scmp.eq.s32.totalorder %s31, 0
      %p133 = por %p131, %p132
      %p134 = scmp.ne.s32.totalorder %s126, %s128
      %p135 = scmp.eq.s32.totalorder %s36, 1
      %p136 = por %p134, %p135
      %p137 = scmp.ne.s32.totalorder %s128, %s129
      %p138 = scmp.eq.s32.totalorder %s36, 0
      %p139 = por %p137, %p138
      %p140 = scmp.ne.s32.totalorder %s128, %s129
      %p141 = scmp.eq.s32.totalorder %s37, 1
      %p142 = por %p140, %p141
      %p144 = scmp.ne.s32.totalorder %s129, %s143
      %p145 = scmp.eq.s32.totalorder %s37, 0
      %p146 = por %p144, %p145
      %s148 = sadd.s32 %s147, 1
      %p151 = scmp.eq.s32.totalorder %s31, 1
      %p152 = scmp.ne.s32.totalorder %s147, %s149
      %p153 = scmp.eq.s32.totalorder %s31, 0
      %p154 = por %p152, %p153
      %p155 = scmp.ne.s32.totalorder %s147, %s149
      %p156 = scmp.eq.s32.totalorder %s36, 1
      %p157 = por %p155, %p156
      %p158 = scmp.ne.s32.totalorder %s149, %s150
      %p159 = scmp.eq.s32.totalorder %s36, 0
      %p160 = por %p158, %p159
      %p161 = scmp.ne.s32.totalorder %s149, %s150
      %p162 = scmp.eq.s32.totalorder %s37, 1
      %p163 = por %p161, %p162
      %p165 = scmp.ne.s32.totalorder %s150, %s164
      %p166 = scmp.eq.s32.totalorder %s37, 0
      %p167 = por %p165, %p166
      %s169 = sadd.s32 %s168, 1
      %p172 = scmp.eq.s32.totalorder %s31, 1
      %p173 = scmp.ne.s32.totalorder %s168, %s170
      %p174 = scmp.eq.s32.totalorder %s31, 0
      %p175 = por %p173, %p174
      %p176 = scmp.ne.s32.totalorder %s168, %s170
      %p177 = scmp.eq.s32.totalorder %s36, 1
      %p178 = por %p176, %p177
      %p179 = scmp.ne.s32.totalorder %s170, %s171
      %p180 = scmp.eq.s32.totalorder %s36, 0
      %p181 = por %p179, %p180
      %p182 = scmp.ne.s32.totalorder %s170, %s171
      %p183 = scmp.eq.s32.totalorder %s37, 1
      %p184 = por %p182, %p183
      %p186 = scmp.ne.s32.totalorder %s171, %s185
      %p187 = scmp.eq.s32.totalorder %s37, 0
      %p188 = por %p186, %p187
      %s190 = sadd.s32 %s189, 1
      %p193 = scmp.eq.s32.totalorder %s31, 1
      %p194 = scmp.ne.s32.totalorder %s189, %s191
      %p195 = scmp.eq.s32.totalorder %s31, 0
      %p196 = por %p194, %p195
      %p197 = scmp.ne.s32.totalorder %s189, %s191
      %p198 = scmp.eq.s32.totalorder %s36, 1
      %p199 = por %p197, %p198
      %p200 = scmp.ne.s32.totalorder %s191, %s192
      %p201 = scmp.eq.s32.totalorder %s36, 0
      %p202 = por %p200, %p201
      %p203 = scmp.ne.s32.totalorder %s191, %s192
      %p204 = scmp.eq.s32.totalorder %s37, 1
      %p205 = por %p203, %p204
      %p207 = scmp.ne.s32.totalorder %s192, %s206
      %p208 = scmp.eq.s32.totalorder %s37, 0
      %p209 = por %p207, %p208
      %s211 = sadd.s32 %s210, 1
      %p214 = scmp.eq.s32.totalorder %s31, 1
      %p215 = scmp.ne.s32.totalorder %s210, %s212
      %p216 = scmp.eq.s32.totalorder %s31, 0
      %p217 = por %p215, %p216
      %p218 = scmp.ne.s32.totalorder %s210, %s212
      %p219 = scmp.eq.s32.totalorder %s36, 1
      %p220 = por %p218, %p219
      %p221 = scmp.ne.s32.totalorder %s212, %s213
      %p222 = scmp.eq.s32.totalorder %s36, 0
      %p223 = por %p221, %p222
      %p224 = scmp.ne.s32.totalorder %s212, %s213
      %p225 = scmp.eq.s32.totalorder %s37, 1
      %p226 = por %p224, %p225
      %p228 = scmp.ne.s32.totalorder %s213, %s227
      %p229 = scmp.eq.s32.totalorder %s37, 0
      %p230 = por %p228, %p229
      %s232 = sadd.s32 %s231, 1
      %p235 = scmp.eq.s32.totalorder %s31, 1
      %p236 = scmp.ne.s32.totalorder %s231, %s233
      %p237 = scmp.eq.s32.totalorder %s31, 0
      %p238 = por %p236, %p237
      %p239 = scmp.ne.s32.totalorder %s231, %s233
      %p240 = scmp.eq.s32.totalorder %s36, 1
      %p241 = por %p239, %p240
      %p242 = scmp.ne.s32.totalorder %s233, %s234
      %p243 = scmp.eq.s32.totalorder %s36, 0
      %p244 = por %p242, %p243
      %p245 = scmp.ne.s32.totalorder %s233, %s234
      %p246 = scmp.eq.s32.totalorder %s37, 1
      %p247 = por %p245, %p246
      %p249 = scmp.ne.s32.totalorder %s234, %s248
      %p250 = scmp.eq.s32.totalorder %s37, 0
      %p251 = por %p249, %p250
      %s253 = sadd.s32 %s252, 1
      %p256 = scmp.eq.s32.totalorder %s31, 1
      %p257 = scmp.ne.s32.totalorder %s252, %s254
      %p258 = scmp.eq.s32.totalorder %s31, 0
      %p259 = por %p257, %p258
      %p260 = scmp.ne.s32.totalorder %s252, %s254
      %p261 = scmp.eq.s32.totalorder %s36, 1
      %p262 = por %p260, %p261
      %p263 = scmp.ne.s32.totalorder %s254, %s255
      %p264 = scmp.eq.s32.totalorder %s36, 0
      %p265 = por %p263, %p264
      %p266 = scmp.ne.s32.totalorder %s254, %s255
      %p267 = scmp.eq.s32.totalorder %s37, 1
      %p268 = por %p266, %p267
      %p270 = scmp.ne.s32.totalorder %s255, %s269
      %p271 = scmp.eq.s32.totalorder %s37, 0
      %p272 = por %p270, %p271
      %s274 = sadd.s32 %s273, 1
      %p277 = scmp.eq.s32.totalorder %s31, 1
      %p278 = scmp.ne.s32.totalorder %s273, %s275
      %p279 = scmp.eq.s32.totalorder %s31, 0
      %p280 = por %p278, %p279
      %p281 = scmp.ne.s32.totalorder %s273, %s275
      %p282 = scmp.eq.s32.totalorder %s36, 1
      %p283 = por %p281, %p282
      %p284 = scmp.ne.s32.totalorder %s275, %s276
      %p285 = scmp.eq.s32.totalorder %s36, 0
      %p286 = por %p284, %p285
      %p287 = scmp.ne.s32.totalorder %s275, %s276
      %p288 = scmp.eq.s32.totalorder %s37, 1
      %p289 = por %p287, %p288
      %p291 = scmp.ne.s32.totalorder %s276, %s290
      %p292 = scmp.eq.s32.totalorder %s37, 0
      %p293 = por %p291, %p292
      %s295 = sadd.s32 %s294, 1
      %p298 = scmp.eq.s32.totalorder %s31, 1
      %p299 = scmp.ne.s32.totalorder %s294, %s296
      %p300 = scmp.eq.s32.totalorder %s31, 0
      %p301 = por %p299, %p300
      %p302 = scmp.ne.s32.totalorder %s294, %s296
      %p303 = scmp.eq.s32.totalorder %s36, 1
      %p304 = por %p302, %p303
      %p305 = scmp.ne.s32.totalorder %s296, %s297
      %p306 = scmp.eq.s32.totalorder %s36, 0
      %p307 = por %p305, %p306
      %p308 = scmp.ne.s32.totalorder %s296, %s297
      %p309 = scmp.eq.s32.totalorder %s37, 1
      %p310 = por %p308, %p309
      %p312 = scmp.ne.s32.totalorder %s297, %s311
      %p313 = scmp.eq.s32.totalorder %s37, 0
      %p314 = por %p312, %p313
      %s316 = sadd.s32 %s315, 1
      %p319 = scmp.eq.s32.totalorder %s31, 1
      %p320 = scmp.ne.s32.totalorder %s315, %s317
      %p321 = scmp.eq.s32.totalorder %s31, 0
      %p322 = por %p320, %p321
      %p323 = scmp.ne.s32.totalorder %s315, %s317
      %p324 = scmp.eq.s32.totalorder %s36, 1
      %p325 = por %p323, %p324
      %p326 = scmp.ne.s32.totalorder %s317, %s318
      %p327 = scmp.eq.s32.totalorder %s36, 0
      %p328 = por %p326, %p327
      %p329 = scmp.ne.s32.totalorder %s317, %s318
      %p330 = scmp.eq.s32.totalorder %s37, 1
      %p331 = por %p329, %p330
      %p333 = scmp.ne.s32.totalorder %s318, %s332
      %p334 = scmp.eq.s32.totalorder %s37, 0
      %p335 = por %p333, %p334
      %s337 = sadd.s32 %s336, 1
      %p340 = scmp.eq.s32.totalorder %s31, 1
      %p341 = scmp.ne.s32.totalorder %s336, %s338
      %p342 = scmp.eq.s32.totalorder %s31, 0
      %p343 = por %p341, %p342
      %p344 = scmp.ne.s32.totalorder %s336, %s338
      %p345 = scmp.eq.s32.totalorder %s36, 1
      %p346 = por %p344, %p345
      %p347 = scmp.ne.s32.totalorder %s338, %s339
      %p348 = scmp.eq.s32.totalorder %s36, 0
      %p349 = por %p347, %p348
      %p350 = scmp.ne.s32.totalorder %s338, %s339
      %p351 = scmp.eq.s32.totalorder %s37, 1
      %p352 = por %p350, %p351
      %p354 = scmp.ne.s32.totalorder %s339, %s353
      %p355 = scmp.eq.s32.totalorder %s37, 0
      %p356 = por %p354, %p355
      %s358 = sadd.s32 %s357, 1
      %p361 = scmp.eq.s32.totalorder %s31, 1
      %p362 = scmp.ne.s32.totalorder %s357, %s359
      %p363 = scmp.eq.s32.totalorder %s31, 0
      %p364 = por %p362, %p363
      %p365 = scmp.ne.s32.totalorder %s357, %s359
      %p366 = scmp.eq.s32.totalorder %s36, 1
      %p367 = por %p365, %p366
      %p368 = scmp.ne.s32.totalorder %s359, %s360
      %p369 = scmp.eq.s32.totalorder %s36, 0
      %p370 = por %p368, %p369
      %p371 = scmp.ne.s32.totalorder %s359, %s360
      %p372 = scmp.eq.s32.totalorder %s37, 1
      %p373 = por %p371, %p372
      %p375 = scmp.ne.s32.totalorder %s360, %s374
      %p376 = scmp.eq.s32.totalorder %s37, 0
      %p377 = por %p375, %p376
      %s379 = sadd.s32 %s378, 1
      %p382 = scmp.eq.s32.totalorder %s31, 1
      %p383 = scmp.ne.s32.totalorder %s378, %s380
      %p384 = scmp.eq.s32.totalorder %s31, 0
      %p385 = por %p383, %p384
      %p386 = scmp.ne.s32.totalorder %s378, %s380
      %p387 = scmp.eq.s32.totalorder %s36, 1
      %p388 = por %p386, %p387
      %p389 = scmp.ne.s32.totalorder %s380, %s381
      %p390 = scmp.eq.s32.totalorder %s36, 0
      %p391 = por %p389, %p390
      %p392 = scmp.ne.s32.totalorder %s380, %s381
      %p393 = scmp.eq.s32.totalorder %s37, 1
      %p394 = por %p392, %p393
      %p396 = scmp.ne.s32.totalorder %s381, %s395
      %p397 = scmp.eq.s32.totalorder %s37, 0
      %p398 = por %p396, %p397
      %s400 = sadd.s32 %s399, 1
      %p403 = scmp.eq.s32.totalorder %s31, 1
      %p404 = scmp.ne.s32.totalorder %s399, %s401
      %p405 = scmp.eq.s32.totalorder %s31, 0
      %p406 = por %p404, %p405
      %p407 = scmp.ne.s32.totalorder %s399, %s401
      %p408 = scmp.eq.s32.totalorder %s36, 1
      %p409 = por %p407, %p408
      %p410 = scmp.ne.s32.totalorder %s401, %s402
      %p411 = scmp.eq.s32.totalorder %s36, 0
      %p412 = por %p410, %p411
      %p413 = scmp.ne.s32.totalorder %s401, %s402
      %p414 = scmp.eq.s32.totalorder %s37, 1
      %p415 = por %p413, %p414
      %p417 = scmp.ne.s32.totalorder %s402, %s416
      %p418 = scmp.eq.s32.totalorder %s37, 0
      %p419 = por %p417, %p418
      %s421 = sadd.s32 %s420, 1
      %p424 = scmp.eq.s32.totalorder %s31, 1
      %p425 = scmp.ne.s32.totalorder %s420, %s422
      %p426 = scmp.eq.s32.totalorder %s31, 0
      %p427 = por %p425, %p426
      %p428 = scmp.ne.s32.totalorder %s420, %s422
      %p429 = scmp.eq.s32.totalorder %s36, 1
      %p430 = por %p428, %p429
      %p431 = scmp.ne.s32.totalorder %s422, %s423
      %p432 = scmp.eq.s32.totalorder %s36, 0
      %p433 = por %p431, %p432
      %p434 = scmp.ne.s32.totalorder %s422, %s423
      %p435 = scmp.eq.s32.totalorder %s37, 1
      %p436 = por %p434, %p435
      %p438 = scmp.ne.s32.totalorder %s423, %s437
      %p439 = scmp.eq.s32.totalorder %s37, 0
      %p440 = por %p438, %p439
      %s441 = ssub.s32 %s38, %s50
      %s442 = ssub.s32 %s39, %s46
      %s443 = sor.u32 %s441, %s442
      %p444 = scmp.eq.s32.totalorder %s443, 0
      %s446 = sadd.s32 %s445, 1
      %s447 = scalar_select %p444, %s445, %s446
      %p450 = pneg %p444
      %p451 = scmp.eq.s32.totalorder %s31, 1
      %p452 = por %p450, %p451
      %p453 = scmp.ne.s32.totalorder %s445, %s448
      %p454 = scmp.eq.s32.totalorder %s31, 0
      %p455 = por %p453, %p454
      %p456 = scmp.ne.s32.totalorder %s445, %s448
      %p457 = scmp.eq.s32.totalorder %s36, 1
      %p458 = por %p456, %p457
      %p459 = scmp.ne.s32.totalorder %s448, %s449
      %p460 = scmp.eq.s32.totalorder %s36, 0
      %p461 = por %p459, %p460
      %p462 = scmp.ne.s32.totalorder %s448, %s449
      %p463 = scmp.eq.s32.totalorder %s37, 1
      %p464 = por %p462, %p463
      %p466 = scmp.ne.s32.totalorder %s449, %s465
      %p467 = scmp.eq.s32.totalorder %s37, 0
      %p468 = por %p466, %p467
      %p469 = scmp.le.s32.totalorder 1, %s31
      %p470 = scmp.lt.s32.totalorder %s31, 3
      %p471 = pnand %p469, %p470
      %p472 = pneg %p471
      // Predicated region
      $region9: #{tpu_custom_call.1} parent=5 // pred_check
        _
      $region10: #{tpu_custom_call.1} parent=5 // pred_check_branch
        %474 = sbr.rel (%p471) target = $region12
      $region11: #{tpu_custom_call.1} parent=5 // pred_region
        %s475 = ssub.s32 %s31, 1
        // Predicated region
        $region13: #{tpu_custom_call.1} parent=11 // pred_check
          %p476 = pneg %p118
        $region14: #{tpu_custom_call.1} parent=11 // pred_check_branch
          %478 = sbr.rel (%p476) target = $region16
        $region15: #{tpu_custom_call.1} parent=11 // pred_region
          _
        $region16: #{tpu_custom_call.1} parent=11 // pred_fallthru
          _
        // Predicated region
        $region17: #{tpu_custom_call.1} parent=11 // pred_check
          %p479 = pneg %p139
        $region18: #{tpu_custom_call.1} parent=11 // pred_check_branch
          %481 = sbr.rel (%p479) target = $region20
        $region19: #{tpu_custom_call.1} parent=11 // pred_region
          _
        $region20: #{tpu_custom_call.1} parent=11 // pred_fallthru
          _
        // Predicated region
        $region21: #{tpu_custom_call.1} parent=11 // pred_check
          %p482 = pneg %p160
        $region22: #{tpu_custom_call.1} parent=11 // pred_check_branch
          %484 = sbr.rel (%p482) target = $region24
        $region23: #{tpu_custom_call.1} parent=11 // pred_region
          _
        $region24: #{tpu_custom_call.1} parent=11 // pred_fallthru
          _
        // Predicated region
        $region25: #{tpu_custom_call.1} parent=11 // pred_check
          %p485 = pneg %p181
        $region26: #{tpu_custom_call.1} parent=11 // pred_check_branch
          %487 = sbr.rel (%p485) target = $region28
        $region27: #{tpu_custom_call.1} parent=11 // pred_region
          _
        $region28: #{tpu_custom_call.1} parent=11 // pred_fallthru
          _
        // Predicated region
        $region29: #{tpu_custom_call.1} parent=11 // pred_check
          %p488 = pneg %p202
        $region30: #{tpu_custom_call.1} parent=11 // pred_check_branch
          %490 = sbr.rel (%p488) target = $region32
        $region31: #{tpu_custom_call.1} parent=11 // pred_region
          _
        $region32: #{tpu_custom_call.1} parent=11 // pred_fallthru
          _
        // Predicated region
        $region33: #{tpu_custom_call.1} parent=11 // pred_check
          %p491 = pneg %p223
        $region34: #{tpu_custom_call.1} parent=11 // pred_check_branch
          %493 = sbr.rel (%p491) target = $region36
        $region35: #{tpu_custom_call.1} parent=11 // pred_region
          %s495 = ssub.s32 16, 16
          %496 = vsyncadd [#allocation9], %s495
          %s498 = sshll.u32 [#allocation8], 4
          %s499 = int_to_ptr.vmem [resolvable:$true] %s498
          %501 = dma.hbm_to_vmem [thread:$0]  %s7, 16, %s499, [#allocation9]
        $region36: #{tpu_custom_call.1} parent=11 // pred_fallthru
          _
        // Predicated region
        $region37: #{tpu_custom_call.1} parent=11 // pred_check
          %p502 = pneg %p244
        $region38: #{tpu_custom_call.1} parent=11 // pred_check_branch
          %504 = sbr.rel (%p502) target = $region40
        $region39: #{tpu_custom_call.1} parent=11 // pred_region
          _
        $region40: #{tpu_custom_call.1} parent=11 // pred_fallthru
          _
        // Predicated region
        $region41: #{tpu_custom_call.1} parent=11 // pred_check
          %p505 = pneg %p265
        $region42: #{tpu_custom_call.1} parent=11 // pred_check_branch
          %507 = sbr.rel (%p505) target = $region44
        $region43: #{tpu_custom_call.1} parent=11 // pred_region
          %s509 = ssub.s32 16, 16
          %510 = vsyncadd [#allocation9], %s509
          %s512 = sshll.u32 [#allocation10], 4
          %s513 = int_to_ptr.vmem [resolvable:$true] %s512
          %515 = dma.hbm_to_vmem [thread:$0]  %s9, 16, %s513, [#allocation9]
        $region44: #{tpu_custom_call.1} parent=11 // pred_fallthru
          _
        // Predicated region
        $region45: #{tpu_custom_call.1} parent=11 // pred_check
          %p516 = pneg %p286
        $region46: #{tpu_custom_call.1} parent=11 // pred_check_branch
          %518 = sbr.rel (%p516) target = $region48
        $region47: #{tpu_custom_call.1} parent=11 // pred_region
          _
        $region48: #{tpu_custom_call.1} parent=11 // pred_fallthru
          _
        // Predicated region
        $region49: #{tpu_custom_call.1} parent=11 // pred_check
          %p519 = pneg %p307
        $region50: #{tpu_custom_call.1} parent=11 // pred_check_branch
          %521 = sbr.rel (%p519) target = $region52
        $region51: #{tpu_custom_call.1} parent=11 // pred_region
          _
        $region52: #{tpu_custom_call.1} parent=11 // pred_fallthru
          _
        // Predicated region
        $region53: #{tpu_custom_call.1} parent=11 // pred_check
          %p522 = pneg %p328
        $region54: #{tpu_custom_call.1} parent=11 // pred_check_branch
          %524 = sbr.rel (%p522) target = $region56
        $region55: #{tpu_custom_call.1} parent=11 // pred_region
          _
        $region56: #{tpu_custom_call.1} parent=11 // pred_fallthru
          _
        // Predicated region
        $region57: #{tpu_custom_call.1} parent=11 // pred_check
          %p525 = pneg %p349
        $region58: #{tpu_custom_call.1} parent=11 // pred_check_branch
          %527 = sbr.rel (%p525) target = $region60
        $region59: #{tpu_custom_call.1} parent=11 // pred_region
          _
        $region60: #{tpu_custom_call.1} parent=11 // pred_fallthru
          _
        // Predicated region
        $region61: #{tpu_custom_call.1} parent=11 // pred_check
          %p528 = pneg %p370
        $region62: #{tpu_custom_call.1} parent=11 // pred_check_branch
          %530 = sbr.rel (%p528) target = $region64
        $region63: #{tpu_custom_call.1} parent=11 // pred_region
          _
        $region64: #{tpu_custom_call.1} parent=11 // pred_fallthru
          _
        // Predicated region
        $region65: #{tpu_custom_call.1} parent=11 // pred_check
          %p531 = pneg %p391
        $region66: #{tpu_custom_call.1} parent=11 // pred_check_branch
          %533 = sbr.rel (%p531) target = $region68
        $region67: #{tpu_custom_call.1} parent=11 // pred_region
          _
        $region68: #{tpu_custom_call.1} parent=11 // pred_fallthru
          _
        // Predicated region
        $region69: #{tpu_custom_call.1} parent=11 // pred_check
          %p534 = pneg %p412
        $region70: #{tpu_custom_call.1} parent=11 // pred_check_branch
          %536 = sbr.rel (%p534) target = $region72
        $region71: #{tpu_custom_call.1} parent=11 // pred_region
          _
        $region72: #{tpu_custom_call.1} parent=11 // pred_fallthru
          _
        // Predicated region
        $region73: #{tpu_custom_call.1} parent=11 // pred_check
          %p537 = pneg %p433
        $region74: #{tpu_custom_call.1} parent=11 // pred_check_branch
          %539 = sbr.rel (%p537) target = $region76
        $region75: #{tpu_custom_call.1} parent=11 // pred_region
          _
        $region76: #{tpu_custom_call.1} parent=11 // pred_fallthru
          _
      $region12: #{tpu_custom_call.1} parent=5 // pred_fallthru
        _
      %p540 = scmp.lt.s32.totalorder %s31, 2
      // Predicated region
      $region77: #{tpu_custom_call.1} parent=5 // pred_check
        %p541 = pneg %p540
      $region78: #{tpu_custom_call.1} parent=5 // pred_check_branch
        %543 = sbr.rel (%p541) target = $region80
      $region79: #{tpu_custom_call.1} parent=5 // pred_region
        // Predicated region
        $region81: #{tpu_custom_call.1} parent=79 // pred_check
          %p544 = pneg %p65
        $region82: #{tpu_custom_call.1} parent=79 // pred_check_branch
          %546 = sbr.rel (%p544) target = $region84
        $region83: #{tpu_custom_call.1} parent=79 // pred_region
          %p547 = scmp.lt.s32.totalorder %s38, 1
          %s548 = scalar_select %p547, %s38, 1
          %p549 = scmp.lt.s32.totalorder %s39, 0
          %s550 = scalar_select %p549, %s39, 0
          %s551 = sadd.s32 %s550, %s548
          %s552 = smul.addr %s551, 8
          %s553 = scalar_lea.vmem %s0, %s552
        $region84: #{tpu_custom_call.1} parent=79 // pred_fallthru
          _
        // Predicated region
        $region85: #{tpu_custom_call.1} parent=79 // pred_check
          %p554 = pneg %p91
        $region86: #{tpu_custom_call.1} parent=79 // pred_check_branch
          %556 = sbr.rel (%p554) target = $region88
        $region87: #{tpu_custom_call.1} parent=79 // pred_region
          %s557 = sand.u32 %s81, 1
          %s558 = scalar_lea.sflag [#allocation6], %s557
          %s559 = sand.u32 %s81, 1
          %s560 = smul.addr %s559, 4
          %s561 = scalar_lea.vmem [#allocation5], %s560
          %s563 = ssub.s32 64, 64
          %564 = vsyncadd %s558, %s563
          %s565 = smul.addr %s38, 64
          %s566 = scalar_lea.hbm %s1, %s565
          %s568 = sshll.u32 %s561, 4
          %s569 = int_to_ptr.vmem [resolvable:$true] %s568
          %571 = dma.hbm_to_vmem [thread:$0]  %s566, 64, %s569, %s558
        $region88: #{tpu_custom_call.1} parent=79 // pred_fallthru
          _
      $region80: #{tpu_custom_call.1} parent=5 // pred_fallthru
        _
      %p572 = scmp.le.s32.totalorder 1, %s31
      %p573 = scmp.lt.s32.totalorder %s31, 3
      %p574 = pnand %p572, %p573
      %p575 = pneg %p574
      // Predicated region
      $region89: #{tpu_custom_call.1} parent=5 // pred_check
        _
      $region90: #{tpu_custom_call.1} parent=5 // pred_check_branch
        %577 = sbr.rel (%p574) target = $region92
      $region91: #{tpu_custom_call.1} parent=5 // pred_region
        %s578 = ssub.s32 %s31, 1
        %s579 = sand.u32 %s84, 1
        %s580 = scalar_lea.sflag [#allocation6], %s579
        %s581 = sand.u32 %s84, 1
        %s582 = smul.addr %s581, 4
        %s583 = scalar_lea.vmem [#allocation5], %s582
        // Predicated region
        $region93: #{tpu_custom_call.1} parent=91 // pred_check
          %p584 = pneg %p97
        $region94: #{tpu_custom_call.1} parent=91 // pred_check_branch
          %586 = sbr.rel (%p584) target = $region96
        $region95: #{tpu_custom_call.1} parent=91 // pred_region
          %587 = dma.done %s580, 64
        $region96: #{tpu_custom_call.1} parent=91 // pred_fallthru
          _
        // Predicated region
        $region97: #{tpu_custom_call.1} parent=91 // pred_check
          %p588 = pneg %p223
        $region98: #{tpu_custom_call.1} parent=91 // pred_check_branch
          %590 = sbr.rel (%p588) target = $region100
        $region99: #{tpu_custom_call.1} parent=91 // pred_region
          %591 = dma.done [#allocation9], 16
        $region100: #{tpu_custom_call.1} parent=91 // pred_fallthru
          _
        // Predicated region
        $region101: #{tpu_custom_call.1} parent=91 // pred_check
          %p592 = pneg %p265
        $region102: #{tpu_custom_call.1} parent=91 // pred_check_branch
          %594 = sbr.rel (%p592) target = $region104
        $region103: #{tpu_custom_call.1} parent=91 // pred_region
          %595 = dma.done [#allocation9], 16
        $region104: #{tpu_custom_call.1} parent=91 // pred_fallthru
          _
        %p596 = scmp.lt.s32.totalorder %s40, 1
        %s597 = scalar_select %p596, %s40, 1
        %p598 = scmp.lt.s32.totalorder %s41, 0
        %s599 = scalar_select %p598, %s41, 0
        %s600 = sadd.s32 %s599, %s597
        %s601 = smul.addr %s600, 8
        %s602 = scalar_lea.vmem %s0, %s601
        %p603 = pneg %p71
        %p604 = pneg %p68
        %s605 = sand.u32 %s84, 1
        %s606 = scalar_lea.sflag [#allocation6], %s605
        %s607 = sand.u32 %s84, 1
        %s608 = smul.addr %s607, 4
        %s609 = scalar_lea.vmem [#allocation5], %s608
        %p610 = pneg %p97
        %p611 = pneg %p94
        %p612 = pneg %p118
        %p613 = pneg %p115
        %p614 = pneg %p139
        %p615 = pneg %p136
        %p616 = pneg %p160
        %p617 = pneg %p157
        %p618 = pneg %p181
        %p619 = pneg %p178
        %p620 = pneg %p202
        %p621 = pneg %p199
        %p622 = pneg %p223
        %p623 = pneg %p220
        %p624 = pneg %p244
        %p625 = pneg %p241
        %p626 = pneg %p265
        %p627 = pneg %p262
        %p628 = pneg %p286
        %p629 = pneg %p283
        %p630 = pneg %p307
        %p631 = pneg %p304
        %p632 = pneg %p328
        %p633 = pneg %p325
        %p634 = pneg %p349
        %p635 = pneg %p346
        %p636 = pneg %p370
        %p637 = pneg %p367
        %p638 = pneg %p391
        %p639 = pneg %p388
        %p640 = pneg %p412
        %p641 = pneg %p409
        %p642 = pneg %p433
        %p643 = pneg %p430
        %p644 = pneg %p461
        %p645 = pneg %p458
        %s646 = sand.u32 %s448, 1
        %s647 = scalar_lea.sflag [#allocation7], %s646
        %s648 = sand.u32 %s448, 1
        %s649 = smul.addr %s648, 8
        %s650 = scalar_lea.vmem [#allocation11], %s649
        %p651 = scmp.lt.s32.totalorder %s40, 1
        %s652 = scalar_select %p651, %s40, 1
        %p653 = scmp.lt.s32.totalorder %s41, 0
        %s654 = scalar_select %p653, %s41, 0
        %s655 = sadd.s32 %s654, %s652
        %s656 = smul.addr %s655, 8
        %s657 = scalar_lea.vmem %s0, %s656
        %v659 = vld [vmem:[%s657] sm:$0xff]
        %p660 = scmp.eq.s32.totalorder %s41, 0
        // Predicated region
        $region105: #{tpu_custom_call.1} parent=91 // pred_check
          %p661 = pneg %p660
        $region106: #{tpu_custom_call.1} parent=91 // pred_check_branch
          %663 = sbr.rel (%p661) target = $region108
        $region107: #{tpu_custom_call.1} parent=91 // pred_region
          %v664 = vld [vmem:[%s583] sm:$0xf]
          %v665 = vld [vmem:[%s4] sm:$0xf]
          %v666 = vld [vmem:[%s4 + $0x4] sm:$0xf]
          %v667 = vld [vmem:[%s4 + $0x8] sm:$0xf]
          %v668 = vld [vmem:[%s4 + $0xc] sm:$0xf]
          %v669 = vld [vmem:[%s5] sm:$0x1]
          %v671 = vlaneseq
          %v672 = vshrl.u32 %v671, 7
          %v673 = vsub.s32 0, %v672
          %v674 = vrot.slane %v669, %v673
          %v680 = vunpack.c.l.b16 %v665
          %v681 = vunpack.c.l.b16 %v666
          %v682 = vunpack.c.l.b16 %v667
          %v683 = vunpack.c.l.b16 %v668
          %v684 = vpack.c.b16 %v681, %v680
          %v685 = vpack.c.b16 %v683, %v682
          %vm688 = vcmask 261120
          %v690 = vsel %vm688, %v664, 0
          %692 = vmatprep.subr.bf16.mxu0 0
          %693 = vmatpush1.bf16.msra.mxu0 %v684
          %694 = vmatprep.subr.bf16.mxu0 0
          %695 = vmatpush1.bf16.msra.mxu0 %v685
          %696 = vmatprep.subr.bf16.mxu0 0
          %697 = vmatpush1.bf16.msra.mxu0 0
          %698 = vmatprep.subr.bf16.mxu0 0
          %699 = vmatpush1.bf16.msra.mxu0 0
          %700 = vmatprep.subr.bf16.mxu0 0
          %701 = vmatpush1.bf16.msra.mxu0 0
          %702 = vmatprep.subr.bf16.mxu0 0
          %703 = vmatpush1.bf16.msra.mxu0 0
          %704 = vmatprep.subr.bf16.mxu0 0
          %705 = vmatpush1.bf16.msra.mxu0 0
          %706 = vmatprep.subr.bf16.mxu0 0
          %707 = vmatpush1.bf16.msra.mxu0 0
          %708 = vmatprep.subr.bf16.mxu0 0
          %709 = vmatpush1.bf16.msra.mxu0 0
          %710 = vmatprep.subr.bf16.mxu0 0
          %711 = vmatpush1.bf16.msra.mxu0 0
          %712 = vmatprep.subr.bf16.mxu0 0
          %713 = vmatpush1.bf16.msra.mxu0 0
          %714 = vmatprep.subr.bf16.mxu0 0
          %715 = vmatpush1.bf16.msra.mxu0 0
          %716 = vmatprep.subr.bf16.mxu0 0
          %717 = vmatpush1.bf16.msra.mxu0 0
          %718 = vmatprep.subr.bf16.mxu0 0
          %719 = vmatpush1.bf16.msra.mxu0 0
          %720 = vmatprep.subr.bf16.mxu0 0
          %721 = vmatpush1.bf16.msra.mxu0 0
          %722 = vmatprep.subr.bf16.mxu0 0
          %723 = vmatpush1.bf16.msra.mxu0 0
          %724 = vmatprep.mubr.bf16.mxu0 0
          %725 = vmatmul.mubr.bf16.gmra.mrb[0].mxu0 %v690
          %v726 = vpop.f32.mrb[0].mxu0
          %v727 = vadd.f32 %v674, %v726
          %v728 = vpop.f32.mrb[0].mxu0
          %v729 = vpop.f32.mrb[0].mxu0
          %v730 = vpop.f32.mrb[0].mxu0
          %731 = vdwg.mxu0
          %v732 = vld [vmem:[%s6] sm:$0xf]
          %v733 = vld [vmem:[%s6 + $0x4] sm:$0xf]
          %v734 = vld [vmem:[%s6 + $0x8] sm:$0xf]
          %v735 = vld [vmem:[%s6 + $0xc] sm:$0xf]
          %v736 = vld [vmem:[#allocation8] sm:$0x1]
          %v738 = vlaneseq
          %v739 = vshrl.u32 %v738, 7
          %v740 = vsub.s32 0, %v739
          %v741 = vrot.slane %v736, %v740
          %v747 = vunpack.c.l.b16 %v732
          %v748 = vunpack.c.l.b16 %v733
          %v749 = vunpack.c.l.b16 %v734
          %v750 = vunpack.c.l.b16 %v735
          %v751 = vpack.c.b16 %v748, %v747
          %v752 = vpack.c.b16 %v750, %v749
          %755 = vmatprep.subr.bf16.mxu0 0
          %756 = vmatpush1.bf16.msra.mxu0 %v751
          %757 = vmatprep.subr.bf16.mxu0 0
          %758 = vmatpush1.bf16.msra.mxu0 %v752
          %759 = vmatprep.subr.bf16.mxu0 0
          %760 = vmatpush1.bf16.msra.mxu0 0
          %761 = vmatprep.subr.bf16.mxu0 0
          %762 = vmatpush1.bf16.msra.mxu0 0
          %763 = vmatprep.subr.bf16.mxu0 0
          %764 = vmatpush1.bf16.msra.mxu0 0
          %765 = vmatprep.subr.bf16.mxu0 0
          %766 = vmatpush1.bf16.msra.mxu0 0
          %767 = vmatprep.subr.bf16.mxu0 0
          %768 = vmatpush1.bf16.msra.mxu0 0
          %769 = vmatprep.subr.bf16.mxu0 0
          %770 = vmatpush1.bf16.msra.mxu0 0
          %771 = vmatprep.subr.bf16.mxu0 0
          %772 = vmatpush1.bf16.msra.mxu0 0
          %773 = vmatprep.subr.bf16.mxu0 0
          %774 = vmatpush1.bf16.msra.mxu0 0
          %775 = vmatprep.subr.bf16.mxu0 0
          %776 = vmatpush1.bf16.msra.mxu0 0
          %777 = vmatprep.subr.bf16.mxu0 0
          %778 = vmatpush1.bf16.msra.mxu0 0
          %779 = vmatprep.subr.bf16.mxu0 0
          %780 = vmatpush1.bf16.msra.mxu0 0
          %781 = vmatprep.subr.bf16.mxu0 0
          %782 = vmatpush1.bf16.msra.mxu0 0
          %783 = vmatprep.subr.bf16.mxu0 0
          %784 = vmatpush1.bf16.msra.mxu0 0
          %785 = vmatprep.subr.bf16.mxu0 0
          %786 = vmatpush1.bf16.msra.mxu0 0
          %787 = vmatprep.mubr.bf16.mxu0 0
          %788 = vmatmul.mubr.bf16.gmra.mrb[0].mxu0 %v690
          %v789 = vpop.f32.mrb[0].mxu0
          %v790 = vadd.f32 %v741, %v789
          %v791 = vpop.f32.mrb[0].mxu0
          %v792 = vpop.f32.mrb[0].mxu0
          %v793 = vpop.f32.mrb[0].mxu0
          %794 = vdwg.mxu0
          %v795 = vpack.c.bf16 %v727, %v727
          %vm796 = vcmask 257024
          %797 = vst.msk [vmem:[#allocation2] sm:$0xf] %vm796, %v795
          %v798 = vpack.c.bf16 %v790, %v790
          %799 = vst.msk [vmem:[#allocation3] sm:$0xf] %vm796, %v798
        $region108: #{tpu_custom_call.1} parent=91 // pred_fallthru
          _
        %v800 = vpack.c.bf16 %v659, %v659
        %v801 = vld [vmem:[%s2] sm:$0xf]
        %v802 = vld [vmem:[%s2 + $0x4] sm:$0xf]
        %v803 = vld [vmem:[%s2 + $0x8] sm:$0xf]
        %v804 = vld [vmem:[%s2 + $0xc] sm:$0xf]
        %v805 = vld [vmem:[%s3] sm:$0x1]
        %v807 = vlaneseq
        %v808 = vshrl.u32 %v807, 7
        %v809 = vsub.s32 0, %v808
        %v810 = vrot.slane %v805, %v809
        %v816 = vunpack.c.l.b16 %v801
        %v817 = vunpack.c.l.b16 %v802
        %v818 = vunpack.c.l.b16 %v803
        %v819 = vunpack.c.l.b16 %v804
        %v820 = vpack.c.b16 %v817, %v816
        %v821 = vpack.c.b16 %v819, %v818
        %vm824 = vcmask 261120
        %v826 = vsel %vm824, %v800, 0
        %828 = vmatprep.subr.bf16.mxu0 0
        %829 = vmatpush1.bf16.msra.mxu0 %v820
        %830 = vmatprep.subr.bf16.mxu0 0
        %831 = vmatpush1.bf16.msra.mxu0 %v821
        %832 = vmatprep.subr.bf16.mxu0 0
        %833 = vmatpush1.bf16.msra.mxu0 0
        %834 = vmatprep.subr.bf16.mxu0 0
        %835 = vmatpush1.bf16.msra.mxu0 0
        %836 = vmatprep.subr.bf16.mxu0 0
        %837 = vmatpush1.bf16.msra.mxu0 0
        %838 = vmatprep.subr.bf16.mxu0 0
        %839 = vmatpush1.bf16.msra.mxu0 0
        %840 = vmatprep.subr.bf16.mxu0 0
        %841 = vmatpush1.bf16.msra.mxu0 0
        %842 = vmatprep.subr.bf16.mxu0 0
        %843 = vmatpush1.bf16.msra.mxu0 0
        %844 = vmatprep.subr.bf16.mxu0 0
        %845 = vmatpush1.bf16.msra.mxu0 0
        %846 = vmatprep.subr.bf16.mxu0 0
        %847 = vmatpush1.bf16.msra.mxu0 0
        %848 = vmatprep.subr.bf16.mxu0 0
        %849 = vmatpush1.bf16.msra.mxu0 0
        %850 = vmatprep.subr.bf16.mxu0 0
        %851 = vmatpush1.bf16.msra.mxu0 0
        %852 = vmatprep.subr.bf16.mxu0 0
        %853 = vmatpush1.bf16.msra.mxu0 0
        %854 = vmatprep.subr.bf16.mxu0 0
        %855 = vmatpush1.bf16.msra.mxu0 0
        %856 = vmatprep.subr.bf16.mxu0 0
        %857 = vmatpush1.bf16.msra.mxu0 0
        %858 = vmatprep.subr.bf16.mxu0 0
        %859 = vmatpush1.bf16.msra.mxu0 0
        %860 = vmatprep.mubr.bf16.mxu0 0
        %861 = vmatmul.mubr.bf16.gmra.mrb[0].mxu0 %v826
        %v862 = vpop.f32.mrb[0].mxu0
        %v863 = vadd.f32 %v810, %v862
        %v864 = vpop.f32.mrb[0].mxu0
        %v865 = vpop.f32.mrb[0].mxu0
        %v866 = vpop.f32.mrb[0].mxu0
        %867 = vdwg.mxu0
        %v868 = vmul.f32 %v863, 0.35355338
        %v869 = vpack.c.bf16 %v868, %v868
        %v870 = vld [vmem:[#allocation2] sm:$0xf]
        %v871 = vld [vmem:[#allocation3] sm:$0xf]
        %vm872 = vcmask 64512
        %v874 = vsel %vm872, %v869, 0
        %v877 = vsel %vm872, %v870, 0
        %879 = vmatprep.subr.bf16.mxu0 0
        %880 = vmatpush1.bf16.xpose.msra.mxu0 %v877
        %881 = vmatprep.subr.bf16.mxu0 0
        %882 = vmatpush1.bf16.xpose.msra.mxu0 0
        %883 = vmatprep.subr.bf16.mxu0 0
        %884 = vmatpush1.bf16.xpose.msra.mxu0 0
        %885 = vmatprep.subr.bf16.mxu0 0
        %886 = vmatpush1.bf16.xpose.msra.mxu0 0
        %887 = vmatprep.subr.bf16.mxu0 0
        %888 = vmatpush1.bf16.xpose.msra.mxu0 0
        %889 = vmatprep.subr.bf16.mxu0 0
        %890 = vmatpush1.bf16.xpose.msra.mxu0 0
        %891 = vmatprep.subr.bf16.mxu0 0
        %892 = vmatpush1.bf16.xpose.msra.mxu0 0
        %893 = vmatprep.subr.bf16.mxu0 0
        %894 = vmatpush1.bf16.xpose.msra.mxu0 0
        %895 = vmatprep.subr.bf16.mxu0 0
        %896 = vmatpush1.bf16.xpose.msra.mxu0 0
        %897 = vmatprep.subr.bf16.mxu0 0
        %898 = vmatpush1.bf16.xpose.msra.mxu0 0
        %899 = vmatprep.subr.bf16.mxu0 0
        %900 = vmatpush1.bf16.xpose.msra.mxu0 0
        %901 = vmatprep.subr.bf16.mxu0 0
        %902 = vmatpush1.bf16.xpose.msra.mxu0 0
        %903 = vmatprep.subr.bf16.mxu0 0
        %904 = vmatpush1.bf16.xpose.msra.mxu0 0
        %905 = vmatprep.subr.bf16.mxu0 0
        %906 = vmatpush1.bf16.xpose.msra.mxu0 0
        %907 = vmatprep.subr.bf16.mxu0 0
        %908 = vmatpush1.bf16.xpose.msra.mxu0 0
        %909 = vmatprep.subr.bf16.mxu0 0
        %910 = vmatpush1.bf16.xpose.msra.mxu0 0
        %911 = vmatprep.mubr.bf16.mxu0 0
        %912 = vmatmul.mubr.bf16.gmra.mrb[0].mxu0 %v874
        %v913 = vpop.f32.mrb[0].mxu0
        %v914 = vadd.f32 0.0, %v913
        %v915 = vpop.f32.mrb[0].mxu0
        %v916 = vpop.f32.mrb[0].mxu0
        %v917 = vpop.f32.mrb[0].mxu0
        %918 = vdwg.mxu0
        %v919 = vsel %vm872, %v914, -inf
        %920 = vmax.xlane.f32.xlu0 %v919
        %v921 = vpop.xlane.xlu0 %920
        %v922 = vsub.f32 %v914, %v921
        %v923 = vmul.f32 %v922, 1.442695
        %v924 = vpow.pop %v923
        %v925 = vsel %vm872, %v924, 0.0
        %926 = vadd.xlane.f32.xlu0 %v925
        %v927 = vpop.xlane.xlu0 %926
        %v928 = vrcp.pop %v927
        %v929 = vmul.f32 %v924, %v928
        %v930 = vpack.c.bf16 %v929, %v929
        %v932 = vsel %vm872, %v930, 0
        %vm934 = vcmask 1043456
        %v936 = vsel %vm934, %v871, 0
        %938 = vmatprep.subr.bf16.mxu0 0
        %939 = vmatpush1.bf16.msra.mxu0 %v936
        %940 = vmatprep.subr.bf16.mxu0 0
        %941 = vmatpush1.bf16.msra.mxu0 0
        %942 = vmatprep.subr.bf16.mxu0 0
        %943 = vmatpush1.bf16.msra.mxu0 0
        %944 = vmatprep.subr.bf16.mxu0 0
        %945 = vmatpush1.bf16.msra.mxu0 0
        %946 = vmatprep.subr.bf16.mxu0 0
        %947 = vmatpush1.bf16.msra.mxu0 0
        %948 = vmatprep.subr.bf16.mxu0 0
        %949 = vmatpush1.bf16.msra.mxu0 0
        %950 = vmatprep.subr.bf16.mxu0 0
        %951 = vmatpush1.bf16.msra.mxu0 0
        %952 = vmatprep.subr.bf16.mxu0 0
        %953 = vmatpush1.bf16.msra.mxu0 0
        %954 = vmatprep.subr.bf16.mxu0 0
        %955 = vmatpush1.bf16.msra.mxu0 0
        %956 = vmatprep.subr.bf16.mxu0 0
        %957 = vmatpush1.bf16.msra.mxu0 0
        %958 = vmatprep.subr.bf16.mxu0 0
        %959 = vmatpush1.bf16.msra.mxu0 0
        %960 = vmatprep.subr.bf16.mxu0 0
        %961 = vmatpush1.bf16.msra.mxu0 0
        %962 = vmatprep.subr.bf16.mxu0 0
        %963 = vmatpush1.bf16.msra.mxu0 0
        %964 = vmatprep.subr.bf16.mxu0 0
        %965 = vmatpush1.bf16.msra.mxu0 0
        %966 = vmatprep.subr.bf16.mxu0 0
        %967 = vmatpush1.bf16.msra.mxu0 0
        %968 = vmatprep.subr.bf16.mxu0 0
        %969 = vmatpush1.bf16.msra.mxu0 0
        %970 = vmatprep.mubr.bf16.mxu0 0
        %971 = vmatmul.mubr.bf16.gmra.mrb[0].mxu0 %v932
        %v972 = vpop.f32.mrb[0].mxu0
        %v973 = vadd.f32 0.0, %v972
        %v974 = vpop.f32.mrb[0].mxu0
        %v975 = vpop.f32.mrb[0].mxu0
        %v976 = vpop.f32.mrb[0].mxu0
        %977 = vdwg.mxu0
        %v978 = vpack.c.bf16 %v973, %v973
        %vm979 = vcmask 60416
        %980 = vst.msk [vmem:[#allocation4] sm:$0xf] %vm979, %v978
        %v981 = vld [vmem:[#allocation2] sm:$0xf]
        %v982 = vld [vmem:[#allocation3] sm:$0xf]
        %984 = vrot.lane.b32.xlu0 %v869, 120
        %v985 = vpop.permute.xlu0 %984
        %v987 = vunpack.c.l.b16 %v981
        %v988 = vpack.c.b16 %v987, %v987
        %989 = vrot.lane.b32.xlu0 %v988, 120
        %v990 = vpop.permute.xlu0 %989
        %v992 = vsel %vm872, %v985, 0
        %v995 = vsel %vm872, %v990, 0
        %997 = vmatprep.subr.bf16.mxu0 0
        %998 = vmatpush1.bf16.xpose.msra.mxu0 %v995
        %999 = vmatprep.subr.bf16.mxu0 0
        %1000 = vmatpush1.bf16.xpose.msra.mxu0 0
        %1001 = vmatprep.subr.bf16.mxu0 0
        %1002 = vmatpush1.bf16.xpose.msra.mxu0 0
        %1003 = vmatprep.subr.bf16.mxu0 0
        %1004 = vmatpush1.bf16.xpose.msra.mxu0 0
        %1005 = vmatprep.subr.bf16.mxu0 0
        %1006 = vmatpush1.bf16.xpose.msra.mxu0 0
        %1007 = vmatprep.subr.bf16.mxu0 0
        %1008 = vmatpush1.bf16.xpose.msra.mxu0 0
        %1009 = vmatprep.subr.bf16.mxu0 0
        %1010 = vmatpush1.bf16.xpose.msra.mxu0 0
        %1011 = vmatprep.subr.bf16.mxu0 0
        %1012 = vmatpush1.bf16.xpose.msra.mxu0 0
        %1013 = vmatprep.subr.bf16.mxu0 0
        %1014 = vmatpush1.bf16.xpose.msra.mxu0 0
        %1015 = vmatprep.subr.bf16.mxu0 0
        %1016 = vmatpush1.bf16.xpose.msra.mxu0 0
        %1017 = vmatprep.subr.bf16.mxu0 0
        %1018 = vmatpush1.bf16.xpose.msra.mxu0 0
        %1019 = vmatprep.subr.bf16.mxu0 0
        %1020 = vmatpush1.bf16.xpose.msra.mxu0 0
        %1021 = vmatprep.subr.bf16.mxu0 0
        %1022 = vmatpush1.bf16.xpose.msra.mxu0 0
        %1023 = vmatprep.subr.bf16.mxu0 0
        %1024 = vmatpush1.bf16.xpose.msra.mxu0 0
        %1025 = vmatprep.subr.bf16.mxu0 0
        %1026 = vmatpush1.bf16.xpose.msra.mxu0 0
        %1027 = vmatprep.subr.bf16.mxu0 0
        %1028 = vmatpush1.bf16.xpose.msra.mxu0 0
        %1029 = vmatprep.mubr.bf16.mxu0 0
        %1030 = vmatmul.mubr.bf16.gmra.mrb[0].mxu0 %v992
        %v1031 = vpop.f32.mrb[0].mxu0
        %v1032 = vadd.f32 0.0, %v1031
        %v1033 = vpop.f32.mrb[0].mxu0
        %v1034 = vpop.f32.mrb[0].mxu0
        %v1035 = vpop.f32.mrb[0].mxu0
        %1036 = vdwg.mxu0
        %v1037 = vsel %vm872, %v1032, -inf
        %1038 = vmax.xlane.f32.xlu0 %v1037
        %v1039 = vpop.xlane.xlu0 %1038
        %v1040 = vsub.f32 %v1032, %v1039
        %v1041 = vmul.f32 %v1040, 1.442695
        %v1042 = vpow.pop %v1041
        %v1043 = vsel %vm872, %v1042, 0.0
        %1044 = vadd.xlane.f32.xlu0 %v1043
        %v1045 = vpop.xlane.xlu0 %1044
        %v1046 = vrcp.pop %v1045
        %v1047 = vmul.f32 %v1042, %v1046
        %v1048 = vpack.c.bf16 %v1047, %v1047
        %v1050 = vunpack.c.l.b16 %v982
        %v1051 = vpack.c.b16 %v1050, %v1050
        %1052 = vrot.lane.b32.xlu0 %v1051, 120
        %v1053 = vpop.permute.xlu0 %1052
        %v1055 = vsel %vm872, %v1048, 0
        %v1058 = vsel %vm934, %v1053, 0
        %1060 = vmatprep.subr.bf16.mxu0 0
        %1061 = vmatpush1.bf16.msra.mxu0 %v1058
        %1062 = vmatprep.subr.bf16.mxu0 0
        %1063 = vmatpush1.bf16.msra.mxu0 0
        %1064 = vmatprep.subr.bf16.mxu0 0
        %1065 = vmatpush1.bf16.msra.mxu0 0
        %1066 = vmatprep.subr.bf16.mxu0 0
        %1067 = vmatpush1.bf16.msra.mxu0 0
        %1068 = vmatprep.subr.bf16.mxu0 0
        %1069 = vmatpush1.bf16.msra.mxu0 0
        %1070 = vmatprep.subr.bf16.mxu0 0
        %1071 = vmatpush1.bf16.msra.mxu0 0
        %1072 = vmatprep.subr.bf16.mxu0 0
        %1073 = vmatpush1.bf16.msra.mxu0 0
        %1074 = vmatprep.subr.bf16.mxu0 0
        %1075 = vmatpush1.bf16.msra.mxu0 0
        %1076 = vmatprep.subr.bf16.mxu0 0
        %1077 = vmatpush1.bf16.msra.mxu0 0
        %1078 = vmatprep.subr.bf16.mxu0 0
        %1079 = vmatpush1.bf16.msra.mxu0 0
        %1080 = vmatprep.subr.bf16.mxu0 0
        %1081 = vmatpush1.bf16.msra.mxu0 0
        %1082 = vmatprep.subr.bf16.mxu0 0
        %1083 = vmatpush1.bf16.msra.mxu0 0
        %1084 = vmatprep.subr.bf16.mxu0 0
        %1085 = vmatpush1.bf16.msra.mxu0 0
        %1086 = vmatprep.subr.bf16.mxu0 0
        %1087 = vmatpush1.bf16.msra.mxu0 0
        %1088 = vmatprep.subr.bf16.mxu0 0
        %1089 = vmatpush1.bf16.msra.mxu0 0
        %1090 = vmatprep.subr.bf16.mxu0 0
        %1091 = vmatpush1.bf16.msra.mxu0 0
        %1092 = vmatprep.mubr.bf16.mxu0 0
        %1093 = vmatmul.mubr.bf16.gmra.mrb[0].mxu0 %v1055
        %v1094 = vpop.f32.mrb[0].mxu0
        %v1095 = vadd.f32 0.0, %v1094
        %v1096 = vpop.f32.mrb[0].mxu0
        %v1097 = vpop.f32.mrb[0].mxu0
        %v1098 = vpop.f32.mrb[0].mxu0
        %1099 = vdwg.mxu0
        %v1100 = vpack.c.bf16 %v1095, %v1095
        %v1102 = vunpack.c.l.b16 %v1100
        %v1103 = vpack.c.b16 %v1102, %v1102
        %1104 = vrot.lane.b32.xlu0 %v1103, 8
        %v1105 = vpop.permute.xlu0 %1104
        %vm1107 = vcmask 126016
        %1108 = vst.msk [vmem:[#allocation4] sm:$0xf] %vm1107, %v1105
        %v1109 = vld [vmem:[#allocation2] sm:$0xf]
        %v1110 = vld [vmem:[#allocation3] sm:$0xf]
        %1111 = vrot.lane.b32.xlu0 %v869, 112
        %v1112 = vpop.permute.xlu0 %1111
        %v1114 = vunpack.c.l.b16 %v1109
        %v1115 = vpack.c.b16 %v1114, %v1114
        %1116 = vrot.lane.b32.xlu0 %v1115, 112
        %v1117 = vpop.permute.xlu0 %1116
        %v1119 = vsel %vm872, %v1112, 0
        %v1122 = vsel %vm872, %v1117, 0
        %1124 = vmatprep.subr.bf16.mxu0 0
        %1125 = vmatpush1.bf16.xpose.msra.mxu0 %v1122
        %1126 = vmatprep.subr.bf16.mxu0 0
        %1127 = vmatpush1.bf16.xpose.msra.mxu0 0
        %1128 = vmatprep.subr.bf16.mxu0 0
        %1129 = vmatpush1.bf16.xpose.msra.mxu0 0
        %1130 = vmatprep.subr.bf16.mxu0 0
        %1131 = vmatpush1.bf16.xpose.msra.mxu0 0
        %1132 = vmatprep.subr.bf16.mxu0 0
        %1133 = vmatpush1.bf16.xpose.msra.mxu0 0
        %1134 = vmatprep.subr.bf16.mxu0 0
        %1135 = vmatpush1.bf16.xpose.msra.mxu0 0
        %1136 = vmatprep.subr.bf16.mxu0 0
        %1137 = vmatpush1.bf16.xpose.msra.mxu0 0
        %1138 = vmatprep.subr.bf16.mxu0 0
        %1139 = vmatpush1.bf16.xpose.msra.mxu0 0
        %1140 = vmatprep.subr.bf16.mxu0 0
        %1141 = vmatpush1.bf16.xpose.msra.mxu0 0
        %1142 = vmatprep.subr.bf16.mxu0 0
        %1143 = vmatpush1.bf16.xpose.msra.mxu0 0
        %1144 = vmatprep.subr.bf16.mxu0 0
        %1145 = vmatpush1.bf16.xpose.msra.mxu0 0
        %1146 = vmatprep.subr.bf16.mxu0 0
        %1147 = vmatpush1.bf16.xpose.msra.mxu0 0
        %1148 = vmatprep.subr.bf16.mxu0 0
        %1149 = vmatpush1.bf16.xpose.msra.mxu0 0
        %1150 = vmatprep.subr.bf16.mxu0 0
        %1151 = vmatpush1.bf16.xpose.msra.mxu0 0
        %1152 = vmatprep.subr.bf16.mxu0 0
        %1153 = vmatpush1.bf16.xpose.msra.mxu0 0
        %1154 = vmatprep.subr.bf16.mxu0 0
        %1155 = vmatpush1.bf16.xpose.msra.mxu0 0
        %1156 = vmatprep.mubr.bf16.mxu0 0
        %1157 = vmatmul.mubr.bf16.gmra.mrb[0].mxu0 %v1119
        %v1158 = vpop.f32.mrb[0].mxu0
        %v1159 = vadd.f32 0.0, %v1158
        %v1160 = vpop.f32.mrb[0].mxu0
        %v1161 = vpop.f32.mrb[0].mxu0
        %v1162 = vpop.f32.mrb[0].mxu0
        %1163 = vdwg.mxu0
        %v1164 = vsel %vm872, %v1159, -inf
        %1165 = vmax.xlane.f32.xlu0 %v1164
        %v1166 = vpop.xlane.xlu0 %1165
        %v1167 = vsub.f32 %v1159, %v1166
        %v1168 = vmul.f32 %v1167, 1.442695
        %v1169 = vpow.pop %v1168
        %v1170 = vsel %vm872, %v1169, 0.0
        %1171 = vadd.xlane.f32.xlu0 %v1170
        %v1172 = vpop.xlane.xlu0 %1171
        %v1173 = vrcp.pop %v1172
        %v1174 = vmul.f32 %v1169, %v1173
        %v1175 = vpack.c.bf16 %v1174, %v1174
        %v1177 = vunpack.c.l.b16 %v1110
        %v1178 = vpack.c.b16 %v1177, %v1177
        %1179 = vrot.lane.b32.xlu0 %v1178, 112
        %v1180 = vpop.permute.xlu0 %1179
        %v1182 = vsel %vm872, %v1175, 0
        %v1185 = vsel %vm934, %v1180, 0
        %1187 = vmatprep.subr.bf16.mxu0 0
        %1188 = vmatpush1.bf16.msra.mxu0 %v1185
        %1189 = vmatprep.subr.bf16.mxu0 0
        %1190 = vmatpush1.bf16.msra.mxu0 0
        %1191 = vmatprep.subr.bf16.mxu0 0
        %1192 = vmatpush1.bf16.msra.mxu0 0
        %1193 = vmatprep.subr.bf16.mxu0 0
        %1194 = vmatpush1.bf16.msra.mxu0 0
        %1195 = vmatprep.subr.bf16.mxu0 0
        %1196 = vmatpush1.bf16.msra.mxu0 0
        %1197 = vmatprep.subr.bf16.mxu0 0
        %1198 = vmatpush1.bf16.msra.mxu0 0
        %1199 = vmatprep.subr.bf16.mxu0 0
        %1200 = vmatpush1.bf16.msra.mxu0 0
        %1201 = vmatprep.subr.bf16.mxu0 0
        %1202 = vmatpush1.bf16.msra.mxu0 0
        %1203 = vmatprep.subr.bf16.mxu0 0
        %1204 = vmatpush1.bf16.msra.mxu0 0
        %1205 = vmatprep.subr.bf16.mxu0 0
        %1206 = vmatpush1.bf16.msra.mxu0 0
        %1207 = vmatprep.subr.bf16.mxu0 0
        %1208 = vmatpush1.bf16.msra.mxu0 0
        %1209 = vmatprep.subr.bf16.mxu0 0
        %1210 = vmatpush1.bf16.msra.mxu0 0
        %1211 = vmatprep.subr.bf16.mxu0 0
        %1212 = vmatpush1.bf16.msra.mxu0 0
        %1213 = vmatprep.subr.bf16.mxu0 0
        %1214 = vmatpush1.bf16.msra.mxu0 0
        %1215 = vmatprep.subr.bf16.mxu0 0
        %1216 = vmatpush1.bf16.msra.mxu0 0
        %1217 = vmatprep.subr.bf16.mxu0 0
        %1218 = vmatpush1.bf16.msra.mxu0 0
        %1219 = vmatprep.mubr.bf16.mxu0 0
        %1220 = vmatmul.mubr.bf16.gmra.mrb[0].mxu0 %v1182
        %v1221 = vpop.f32.mrb[0].mxu0
        %v1222 = vadd.f32 0.0, %v1221
        %v1223 = vpop.f32.mrb[0].mxu0
        %v1224 = vpop.f32.mrb[0].mxu0
        %v1225 = vpop.f32.mrb[0].mxu0
        %1226 = vdwg.mxu0
        %v1227 = vpack.c.bf16 %v1222, %v1222
        %v1229 = vunpack.c.l.b16 %v1227
        %v1230 = vpack.c.b16 %v1229, %v1229
        %1231 = vrot.lane.b32.xlu0 %v1230, 16
        %v1232 = vpop.permute.xlu0 %1231
        %vm1234 = vcmask 191616
        %1235 = vst.msk [vmem:[#allocation4] sm:$0xf] %vm1234, %v1232
        %v1236 = vld [vmem:[#allocation2] sm:$0xf]
        %v1237 = vld [vmem:[#allocation3] sm:$0xf]
        %1238 = vrot.lane.b32.xlu0 %v869, 104
        %v1239 = vpop.permute.xlu0 %1238
        %v1241 = vunpack.c.l.b16 %v1236
        %v1242 = vpack.c.b16 %v1241, %v1241
        %1243 = vrot.lane.b32.xlu0 %v1242, 104
        %v1244 = vpop.permute.xlu0 %1243
        %v1246 = vsel %vm872, %v1239, 0
        %v1249 = vsel %vm872, %v1244, 0
        %1251 = vmatprep.subr.bf16.mxu0 0
        %1252 = vmatpush1.bf16.xpose.msra.mxu0 %v1249
        %1253 = vmatprep.subr.bf16.mxu0 0
        %1254 = vmatpush1.bf16.xpose.msra.mxu0 0
        %1255 = vmatprep.subr.bf16.mxu0 0
        %1256 = vmatpush1.bf16.xpose.msra.mxu0 0
        %1257 = vmatprep.subr.bf16.mxu0 0
        %1258 = vmatpush1.bf16.xpose.msra.mxu0 0
        %1259 = vmatprep.subr.bf16.mxu0 0
        %1260 = vmatpush1.bf16.xpose.msra.mxu0 0
        %1261 = vmatprep.subr.bf16.mxu0 0
        %1262 = vmatpush1.bf16.xpose.msra.mxu0 0
        %1263 = vmatprep.subr.bf16.mxu0 0
        %1264 = vmatpush1.bf16.xpose.msra.mxu0 0
        %1265 = vmatprep.subr.bf16.mxu0 0
        %1266 = vmatpush1.bf16.xpose.msra.mxu0 0
        %1267 = vmatprep.subr.bf16.mxu0 0
        %1268 = vmatpush1.bf16.xpose.msra.mxu0 0
        %1269 = vmatprep.subr.bf16.mxu0 0
        %1270 = vmatpush1.bf16.xpose.msra.mxu0 0
        %1271 = vmatprep.subr.bf16.mxu0 0
        %1272 = vmatpush1.bf16.xpose.msra.mxu0 0
        %1273 = vmatprep.subr.bf16.mxu0 0
        %1274 = vmatpush1.bf16.xpose.msra.mxu0 0
        %1275 = vmatprep.subr.bf16.mxu0 0
        %1276 = vmatpush1.bf16.xpose.msra.mxu0 0
        %1277 = vmatprep.subr.bf16.mxu0 0
        %1278 = vmatpush1.bf16.xpose.msra.mxu0 0
        %1279 = vmatprep.subr.bf16.mxu0 0
        %1280 = vmatpush1.bf16.xpose.msra.mxu0 0
        %1281 = vmatprep.subr.bf16.mxu0 0
        %1282 = vmatpush1.bf16.xpose.msra.mxu0 0
        %1283 = vmatprep.mubr.bf16.mxu0 0
        %1284 = vmatmul.mubr.bf16.gmra.mrb[0].mxu0 %v1246
        %v1285 = vpop.f32.mrb[0].mxu0
        %v1286 = vadd.f32 0.0, %v1285
        %v1287 = vpop.f32.mrb[0].mxu0
        %v1288 = vpop.f32.mrb[0].mxu0
        %v1289 = vpop.f32.mrb[0].mxu0
        %1290 = vdwg.mxu0
        %v1291 = vsel %vm872, %v1286, -inf
        %1292 = vmax.xlane.f32.xlu0 %v1291
        %v1293 = vpop.xlane.xlu0 %1292
        %v1294 = vsub.f32 %v1286, %v1293
        %v1295 = vmul.f32 %v1294, 1.442695
        %v1296 = vpow.pop %v1295
        %v1297 = vsel %vm872, %v1296, 0.0
        %1298 = vadd.xlane.f32.xlu0 %v1297
        %v1299 = vpop.xlane.xlu0 %1298
        %v1300 = vrcp.pop %v1299
        %v1301 = vmul.f32 %v1296, %v1300
        %v1302 = vpack.c.bf16 %v1301, %v1301
        %v1304 = vunpack.c.l.b16 %v1237
        %v1305 = vpack.c.b16 %v1304, %v1304
        %1306 = vrot.lane.b32.xlu0 %v1305, 104
        %v1307 = vpop.permute.xlu0 %1306
        %v1309 = vsel %vm872, %v1302, 0
        %v1312 = vsel %vm934, %v1307, 0
        %1314 = vmatprep.subr.bf16.mxu0 0
        %1315 = vmatpush1.bf16.msra.mxu0 %v1312
        %1316 = vmatprep.subr.bf16.mxu0 0
        %1317 = vmatpush1.bf16.msra.mxu0 0
        %1318 = vmatprep.subr.bf16.mxu0 0
        %1319 = vmatpush1.bf16.msra.mxu0 0
        %1320 = vmatprep.subr.bf16.mxu0 0
        %1321 = vmatpush1.bf16.msra.mxu0 0
        %1322 = vmatprep.subr.bf16.mxu0 0
        %1323 = vmatpush1.bf16.msra.mxu0 0
        %1324 = vmatprep.subr.bf16.mxu0 0
        %1325 = vmatpush1.bf16.msra.mxu0 0
        %1326 = vmatprep.subr.bf16.mxu0 0
        %1327 = vmatpush1.bf16.msra.mxu0 0
        %1328 = vmatprep.subr.bf16.mxu0 0
        %1329 = vmatpush1.bf16.msra.mxu0 0
        %1330 = vmatprep.subr.bf16.mxu0 0
        %1331 = vmatpush1.bf16.msra.mxu0 0
        %1332 = vmatprep.subr.bf16.mxu0 0
        %1333 = vmatpush1.bf16.msra.mxu0 0
        %1334 = vmatprep.subr.bf16.mxu0 0
        %1335 = vmatpush1.bf16.msra.mxu0 0
        %1336 = vmatprep.subr.bf16.mxu0 0
        %1337 = vmatpush1.bf16.msra.mxu0 0
        %1338 = vmatprep.subr.bf16.mxu0 0
        %1339 = vmatpush1.bf16.msra.mxu0 0
        %1340 = vmatprep.subr.bf16.mxu0 0
        %1341 = vmatpush1.bf16.msra.mxu0 0
        %1342 = vmatprep.subr.bf16.mxu0 0
        %1343 = vmatpush1.bf16.msra.mxu0 0
        %1344 = vmatprep.subr.bf16.mxu0 0
        %1345 = vmatpush1.bf16.msra.mxu0 0
        %1346 = vmatprep.mubr.bf16.mxu0 0
        %1347 = vmatmul.mubr.bf16.gmra.mrb[0].mxu0 %v1309
        %v1348 = vpop.f32.mrb[0].mxu0
        %v1349 = vadd.f32 0.0, %v1348
        %v1350 = vpop.f32.mrb[0].mxu0
        %v1351 = vpop.f32.mrb[0].mxu0
        %v1352 = vpop.f32.mrb[0].mxu0
        %1353 = vdwg.mxu0
        %v1354 = vpack.c.bf16 %v1349, %v1349
        %v1356 = vunpack.c.l.b16 %v1354
        %v1357 = vpack.c.b16 %v1356, %v1356
        %1358 = vrot.lane.b32.xlu0 %v1357, 24
        %v1359 = vpop.permute.xlu0 %1358
        %vm1361 = vcmask 257216
        %1362 = vst.msk [vmem:[#allocation4] sm:$0xf] %vm1361, %v1359
        %v1363 = vld [vmem:[#allocation4] sm:$0xf]
        %v1364 = vld [vmem:[%s8] sm:$0xf]
        %v1365 = vld [vmem:[%s8 + $0x4] sm:$0xf]
        %v1366 = vld [vmem:[%s8 + $0x8] sm:$0xf]
        %v1367 = vld [vmem:[%s8 + $0xc] sm:$0xf]
        %v1368 = vld [vmem:[#allocation10] sm:$0x1]
        %v1370 = vlaneseq
        %v1371 = vshrl.u32 %v1370, 7
        %v1372 = vsub.s32 0, %v1371
        %v1373 = vrot.slane %v1368, %v1372
        %v1379 = vunpack.c.l.b16 %v1364
        %v1380 = vunpack.c.l.b16 %v1365
        %v1381 = vunpack.c.l.b16 %v1366
        %v1382 = vunpack.c.l.b16 %v1367
        %v1383 = vpack.c.b16 %v1380, %v1379
        %v1384 = vpack.c.b16 %v1382, %v1381
        %v1388 = vsel %vm824, %v1363, 0
        %1390 = vmatprep.subr.bf16.mxu0 0
        %1391 = vmatpush1.bf16.msra.mxu0 %v1383
        %1392 = vmatprep.subr.bf16.mxu0 0
        %1393 = vmatpush1.bf16.msra.mxu0 %v1384
        %1394 = vmatprep.subr.bf16.mxu0 0
        %1395 = vmatpush1.bf16.msra.mxu0 0
        %1396 = vmatprep.subr.bf16.mxu0 0
        %1397 = vmatpush1.bf16.msra.mxu0 0
        %1398 = vmatprep.subr.bf16.mxu0 0
        %1399 = vmatpush1.bf16.msra.mxu0 0
        %1400 = vmatprep.subr.bf16.mxu0 0
        %1401 = vmatpush1.bf16.msra.mxu0 0
        %1402 = vmatprep.subr.bf16.mxu0 0
        %1403 = vmatpush1.bf16.msra.mxu0 0
        %1404 = vmatprep.subr.bf16.mxu0 0
        %1405 = vmatpush1.bf16.msra.mxu0 0
        %1406 = vmatprep.subr.bf16.mxu0 0
        %1407 = vmatpush1.bf16.msra.mxu0 0
        %1408 = vmatprep.subr.bf16.mxu0 0
        %1409 = vmatpush1.bf16.msra.mxu0 0
        %1410 = vmatprep.subr.bf16.mxu0 0
        %1411 = vmatpush1.bf16.msra.mxu0 0
        %1412 = vmatprep.subr.bf16.mxu0 0
        %1413 = vmatpush1.bf16.msra.mxu0 0
        %1414 = vmatprep.subr.bf16.mxu0 0
        %1415 = vmatpush1.bf16.msra.mxu0 0
        %1416 = vmatprep.subr.bf16.mxu0 0
        %1417 = vmatpush1.bf16.msra.mxu0 0
        %1418 = vmatprep.subr.bf16.mxu0 0
        %1419 = vmatpush1.bf16.msra.mxu0 0
        %1420 = vmatprep.subr.bf16.mxu0 0
        %1421 = vmatpush1.bf16.msra.mxu0 0
        %1422 = vmatprep.mubr.bf16.mxu0 0
        %1423 = vmatmul.mubr.bf16.gmra.mrb[0].mxu0 %v1388
        %v1424 = vpop.f32.mrb[0].mxu0
        %v1425 = vadd.f32 %v1373, %v1424
        %v1426 = vpop.f32.mrb[0].mxu0
        %v1427 = vpop.f32.mrb[0].mxu0
        %v1428 = vpop.f32.mrb[0].mxu0
        %1429 = vdwg.mxu0
        %v1430 = vadd.f32 %v1425, %v659
        %v1431 = vsel %vm824, %v1430, 0.0
        %1432 = vadd.xlane.f32.xlu0 %v1431
        %v1433 = vpop.xlane.xlu0 %1432
        %v1434 = vrcp.pop 32.0
        %v1435 = vmul.f32 %v1433, %v1434
        %v1436 = vmul.f32 %v1430, %v1430
        %v1437 = vsel %vm824, %v1436, 0.0
        %1438 = vadd.xlane.f32.xlu0 %v1437
        %v1439 = vpop.xlane.xlu0 %1438
        %v1440 = vmul.f32 %v1439, %v1434
        %v1441 = vmul.f32 %v1435, %v1435
        %v1442 = vsub.f32 %v1440, %v1441
        %v1443 = vmax.f32 %v1442, 0.0
        %v1444 = vsub.f32 %v1430, %v1435
        %v1445 = vadd.f32 %v1443, 1e-05
        %v1446 = vrsqrt.pop %v1445
        %v1447 = vmul.f32 %v1444, %v1446
        %v1448 = vld [vmem:[%s10] sm:$0x1]
        %v1450 = vlaneseq
        %v1451 = vshrl.u32 %v1450, 7
        %v1452 = vsub.s32 0, %v1451
        %v1453 = vrot.slane %v1448, %v1452
        %v1455 = vmul.f32 %v1447, %v1453
        %v1456 = vld [vmem:[%s11] sm:$0x1]
        %v1458 = vlaneseq
        %v1459 = vshrl.u32 %v1458, 7
        %v1460 = vsub.s32 0, %v1459
        %v1461 = vrot.slane %v1456, %v1460
        %v1463 = vadd.f32 %v1455, %v1461
        %v1464 = vpack.c.bf16 %v1463, %v1463
        %v1465 = vld [vmem:[%s12] sm:$0xf]
        %v1466 = vld [vmem:[%s12 + $0x4] sm:$0xf]
        %v1467 = vld [vmem:[%s12 + $0x8] sm:$0xf]
        %v1468 = vld [vmem:[%s12 + $0xc] sm:$0xf]
        %v1469 = vld [vmem:[%s13] sm:$0x1]
        %v1471 = vlaneseq
        %v1472 = vshrl.u32 %v1471, 7
        %v1473 = vsub.s32 0, %v1472
        %v1474 = vrot.slane %v1469, %v1473
        %v1480 = vunpack.c.l.b16 %v1465
        %v1481 = vunpack.c.l.b16 %v1466
        %v1482 = vunpack.c.l.b16 %v1467
        %v1483 = vunpack.c.l.b16 %v1468
        %v1484 = vpack.c.b16 %v1481, %v1480
        %v1485 = vpack.c.b16 %v1483, %v1482
        %v1489 = vsel %vm824, %v1464, 0
        %1491 = vmatprep.subr.bf16.mxu0 0
        %1492 = vmatpush1.bf16.msra.mxu0 %v1484
        %1493 = vmatprep.subr.bf16.mxu0 0
        %1494 = vmatpush1.bf16.msra.mxu0 %v1485
        %1495 = vmatprep.subr.bf16.mxu0 0
        %1496 = vmatpush1.bf16.msra.mxu0 0
        %1497 = vmatprep.subr.bf16.mxu0 0
        %1498 = vmatpush1.bf16.msra.mxu0 0
        %1499 = vmatprep.subr.bf16.mxu0 0
        %1500 = vmatpush1.bf16.msra.mxu0 0
        %1501 = vmatprep.subr.bf16.mxu0 0
        %1502 = vmatpush1.bf16.msra.mxu0 0
        %1503 = vmatprep.subr.bf16.mxu0 0
        %1504 = vmatpush1.bf16.msra.mxu0 0
        %1505 = vmatprep.subr.bf16.mxu0 0
        %1506 = vmatpush1.bf16.msra.mxu0 0
        %1507 = vmatprep.subr.bf16.mxu0 0
        %1508 = vmatpush1.bf16.msra.mxu0 0
        %1509 = vmatprep.subr.bf16.mxu0 0
        %1510 = vmatpush1.bf16.msra.mxu0 0
        %1511 = vmatprep.subr.bf16.mxu0 0
        %1512 = vmatpush1.bf16.msra.mxu0 0
        %1513 = vmatprep.subr.bf16.mxu0 0
        %1514 = vmatpush1.bf16.msra.mxu0 0
        %1515 = vmatprep.subr.bf16.mxu0 0
        %1516 = vmatpush1.bf16.msra.mxu0 0
        %1517 = vmatprep.subr.bf16.mxu0 0
        %1518 = vmatpush1.bf16.msra.mxu0 0
        %1519 = vmatprep.subr.bf16.mxu0 0
        %1520 = vmatpush1.bf16.msra.mxu0 0
        %1521 = vmatprep.subr.bf16.mxu0 0
        %1522 = vmatpush1.bf16.msra.mxu0 0
        %1523 = vmatprep.mubr.bf16.mxu0 0
        %1524 = vmatmul.mubr.bf16.gmra.mrb[0].mxu0 %v1489
        %v1525 = vpop.f32.mrb[0].mxu0
        %v1526 = vadd.f32 %v1474, %v1525
        %v1527 = vpop.f32.mrb[0].mxu0
        %v1528 = vpop.f32.mrb[0].mxu0
        %v1529 = vpop.f32.mrb[0].mxu0
        %1530 = vdwg.mxu0
        %v1531 = vmax.f32 %v1526, 0.0
        %v1532 = vpack.c.bf16 %v1531, %v1531
        %v1533 = vld [vmem:[%s14] sm:$0xf]
        %v1534 = vld [vmem:[%s14 + $0x4] sm:$0xf]
        %v1535 = vld [vmem:[%s14 + $0x8] sm:$0xf]
        %v1536 = vld [vmem:[%s14 + $0xc] sm:$0xf]
        %v1537 = vld [vmem:[%s14 + $0x10] sm:$0xf]
        %v1538 = vld [vmem:[%s14 + $0x14] sm:$0xf]
        %v1539 = vld [vmem:[%s14 + $0x18] sm:$0xf]
        %v1540 = vld [vmem:[%s14 + $0x1c] sm:$0xf]
        %v1541 = vld [vmem:[%s14 + $0x20] sm:$0xf]
        %v1542 = vld [vmem:[%s14 + $0x24] sm:$0xf]
        %v1543 = vld [vmem:[%s14 + $0x28] sm:$0xf]
        %v1544 = vld [vmem:[%s14 + $0x2c] sm:$0xf]
        %v1545 = vld [vmem:[%s14 + $0x30] sm:$0xf]
        %v1546 = vld [vmem:[%s14 + $0x34] sm:$0xf]
        %v1547 = vld [vmem:[%s14 + $0x38] sm:$0xf]
        %v1548 = vld [vmem:[%s14 + $0x3c] sm:$0xf]
        %v1549 = vld [vmem:[%s15] sm:$0x1]
        %v1551 = vlaneseq
        %v1552 = vshrl.u32 %v1551, 7
        %v1553 = vsub.s32 0, %v1552
        %v1554 = vrot.slane %v1549, %v1553
        %v1572 = vunpack.c.l.b16 %v1533
        %v1573 = vunpack.c.l.b16 %v1534
        %v1574 = vunpack.c.l.b16 %v1535
        %v1575 = vunpack.c.l.b16 %v1536
        %v1576 = vunpack.c.l.b16 %v1537
        %v1577 = vunpack.c.l.b16 %v1538
        %v1578 = vunpack.c.l.b16 %v1539
        %v1579 = vunpack.c.l.b16 %v1540
        %v1580 = vunpack.c.l.b16 %v1541
        %v1581 = vunpack.c.l.b16 %v1542
        %v1582 = vunpack.c.l.b16 %v1543
        %v1583 = vunpack.c.l.b16 %v1544
        %v1584 = vunpack.c.l.b16 %v1545
        %v1585 = vunpack.c.l.b16 %v1546
        %v1586 = vunpack.c.l.b16 %v1547
        %v1587 = vunpack.c.l.b16 %v1548
        %v1588 = vpack.c.b16 %v1573, %v1572
        %v1589 = vpack.c.b16 %v1575, %v1574
        %v1590 = vpack.c.b16 %v1577, %v1576
        %v1591 = vpack.c.b16 %v1579, %v1578
        %v1592 = vpack.c.b16 %v1581, %v1580
        %v1593 = vpack.c.b16 %v1583, %v1582
        %v1594 = vpack.c.b16 %v1585, %v1584
        %v1595 = vpack.c.b16 %v1587, %v1586
        %1604 = vmatprep.subr.bf16.mxu0 0
        %1605 = vmatpush1.bf16.msra.mxu0 %v1588
        %1606 = vmatprep.subr.bf16.mxu0 0
        %1607 = vmatpush1.bf16.msra.mxu0 %v1589
        %1608 = vmatprep.subr.bf16.mxu0 0
        %1609 = vmatpush1.bf16.msra.mxu0 %v1590
        %1610 = vmatprep.subr.bf16.mxu0 0
        %1611 = vmatpush1.bf16.msra.mxu0 %v1591
        %1612 = vmatprep.subr.bf16.mxu0 0
        %1613 = vmatpush1.bf16.msra.mxu0 %v1592
        %1614 = vmatprep.subr.bf16.mxu0 0
        %1615 = vmatpush1.bf16.msra.mxu0 %v1593
        %1616 = vmatprep.subr.bf16.mxu0 0
        %1617 = vmatpush1.bf16.msra.mxu0 %v1594
        %1618 = vmatprep.subr.bf16.mxu0 0
        %1619 = vmatpush1.bf16.msra.mxu0 %v1595
        %1620 = vmatprep.subr.bf16.mxu0 0
        %1621 = vmatpush1.bf16.msra.mxu0 0
        %1622 = vmatprep.subr.bf16.mxu0 0
        %1623 = vmatpush1.bf16.msra.mxu0 0
        %1624 = vmatprep.subr.bf16.mxu0 0
        %1625 = vmatpush1.bf16.msra.mxu0 0
        %1626 = vmatprep.subr.bf16.mxu0 0
        %1627 = vmatpush1.bf16.msra.mxu0 0
        %1628 = vmatprep.subr.bf16.mxu0 0
        %1629 = vmatpush1.bf16.msra.mxu0 0
        %1630 = vmatprep.subr.bf16.mxu0 0
        %1631 = vmatpush1.bf16.msra.mxu0 0
        %1632 = vmatprep.subr.bf16.mxu0 0
        %1633 = vmatpush1.bf16.msra.mxu0 0
        %1634 = vmatprep.subr.bf16.mxu0 0
        %1635 = vmatpush1.bf16.msra.mxu0 0
        %1636 = vmatprep.mubr.bf16.mxu0 0
        %1637 = vmatmul.mubr.bf16.gmra.mrb[0].mxu0 %v1532
        %v1638 = vpop.f32.mrb[0].mxu0
        %v1639 = vadd.f32 %v1554, %v1638
        %v1640 = vpop.f32.mrb[0].mxu0
        %v1641 = vpop.f32.mrb[0].mxu0
        %v1642 = vpop.f32.mrb[0].mxu0
        %1643 = vdwg.mxu0
        %v1644 = vadd.f32 %v1639, %v1463
        %v1645 = vsel %vm824, %v1644, 0.0
        %1646 = vadd.xlane.f32.xlu0 %v1645
        %v1647 = vpop.xlane.xlu0 %1646
        %v1648 = vmul.f32 %v1647, %v1434
        %v1649 = vmul.f32 %v1644, %v1644
        %v1650 = vsel %vm824, %v1649, 0.0
        %1651 = vadd.xlane.f32.xlu0 %v1650
        %v1652 = vpop.xlane.xlu0 %1651
        %v1653 = vmul.f32 %v1652, %v1434
        %v1654 = vmul.f32 %v1648, %v1648
        %v1655 = vsub.f32 %v1653, %v1654
        %v1656 = vmax.f32 %v1655, 0.0
        %v1657 = vsub.f32 %v1644, %v1648
        %v1658 = vadd.f32 %v1656, 1e-05
        %v1659 = vrsqrt.pop %v1658
        %v1660 = vmul.f32 %v1657, %v1659
        %v1661 = vld [vmem:[%s16] sm:$0x1]
        %v1663 = vlaneseq
        %v1664 = vshrl.u32 %v1663, 7
        %v1665 = vsub.s32 0, %v1664
        %v1666 = vrot.slane %v1661, %v1665
        %v1668 = vmul.f32 %v1660, %v1666
        %v1669 = vld [vmem:[%s17] sm:$0x1]
        %v1671 = vlaneseq
        %v1672 = vshrl.u32 %v1671, 7
        %v1673 = vsub.s32 0, %v1672
        %v1674 = vrot.slane %v1669, %v1673
        %v1676 = vadd.f32 %v1668, %v1674
        %1677 = vst.msk [vmem:[%s650] sm:$0xff] %vm824, %v1676
        %s1678 = sand.u32 %s448, 1
        %s1679 = scalar_lea.sflag [#allocation7], %s1678
        %s1680 = sand.u32 %s448, 1
        %s1681 = smul.addr %s1680, 8
        %s1682 = scalar_lea.vmem [#allocation11], %s1681
        // Predicated region
        $region109: #{tpu_custom_call.1} parent=91 // pred_check
          %p1683 = pneg %p458
        $region110: #{tpu_custom_call.1} parent=91 // pred_check_branch
          %1685 = sbr.rel (%p1683) target = $region112
        $region111: #{tpu_custom_call.1} parent=91 // pred_region
          %s1687 = ssub.s32 128, 128
          %1688 = vsyncadd %s1679, %s1687
          %s1689 = sadd.s32 %s41, %s40
          %s1690 = smul.addr %s1689, 128
          %s1691 = scalar_lea.hbm %s18, %s1690
          %s1693 = sshll.u32 %s1682, 4
          %s1694 = int_to_ptr.vmem [resolvable:$true] %s1693
          %1696 = dma.vmem_to_hbm [thread:$0]  %s1694, 128, %s1691, %s1679
        $region112: #{tpu_custom_call.1} parent=91 // pred_fallthru
          _
      $region92: #{tpu_custom_call.1} parent=5 // pred_fallthru
        _
      %p1697 = scmp.le.s32.totalorder 2, %s31
      // Predicated region
      $region113: #{tpu_custom_call.1} parent=5 // pred_check
        %p1698 = pneg %p1697
      $region114: #{tpu_custom_call.1} parent=5 // pred_check_branch
        %1700 = sbr.rel (%p1698) target = $region116
      $region115: #{tpu_custom_call.1} parent=5 // pred_region
        %s1701 = ssub.s32 %s31, 2
        // Predicated region
        $region117: #{tpu_custom_call.1} parent=115 // pred_check
          %p1702 = pneg %p464
        $region118: #{tpu_custom_call.1} parent=115 // pred_check_branch
          %1704 = sbr.rel (%p1702) target = $region120
        $region119: #{tpu_custom_call.1} parent=115 // pred_region
          %s1705 = sand.u32 %s449, 1
          %s1706 = scalar_lea.sflag [#allocation7], %s1705
          %s1707 = sand.u32 %s449, 1
          %s1708 = smul.addr %s1707, 8
          %s1709 = scalar_lea.vmem [#allocation11], %s1708
          %1710 = dma.done %s1706, 128
        $region120: #{tpu_custom_call.1} parent=115 // pred_fallthru
          _
      $region116: #{tpu_custom_call.1} parent=5 // pred_fallthru
        _
    $region6: #{tpu_custom_call.1} parent=1 // loop_footer
      %s35 = sadd.s32 1, %s31
    $region7: #{tpu_custom_call.1} parent=1 // loop_footer_branch
      %30 = sbr.rel target = $region3
    $region8: #{tpu_custom_call.1} parent=1 // loop_exit
      _
    %1711 = vsyncpa [#allocation6], 1
    %s1712 = scalar_lea.sflag [#allocation6], 1
    %1713 = vsyncpa %s1712, 1
    %1714 = vsyncpa [#allocation9], 1
    %1715 = vsyncpa [#allocation7], 1
    %s1716 = scalar_lea.sflag [#allocation7], 1
    %1717 = vsyncpa %s1716, 1

</llo_original>
